<compile_context>
chip_gen: v6e
topology: v6e:2x2x1
jax: 0.10.0
libtpu: 0.0.40
codegen_flags: <defaults>
</compile_context>

<pallas_src>
import math
import functools

import jax
import jax.numpy as jnp
from jax.experimental import pallas as pl
from jax.experimental.pallas import tpu as pltpu


def _mha_kernel(q_ref, k_ref, v_ref,
                wq_ref, bq_ref, wk_ref, bk_ref, wv_ref, bv_ref,
                wo_ref, bo_ref,
                out_ref,
                *, n_head: int, d_k: int):
    Bt, S, D = q_ref.shape
    M = Bt * S

    # ---- Linear projections on flattened (Bt*S, D): bf16 -> MXU, f32 accumulation.
    xq = q_ref[...].reshape(M, D)
    xk = k_ref[...].reshape(M, D)
    xv = v_ref[...].reshape(M, D)

    Q = jnp.dot(xq, wq_ref[...], preferred_element_type=jnp.float32) + bq_ref[...]
    K = jnp.dot(xk, wk_ref[...], preferred_element_type=jnp.float32) + bk_ref[...]
    V = jnp.dot(xv, wv_ref[...], preferred_element_type=jnp.float32) + bv_ref[...]

    # Fold 1/sqrt(d_k) into Q once (O(M*D)) instead of scaling the (S,S) scores.
    Q = Q * (1.0 / math.sqrt(d_k))

    # ---- Gather heads onto a leading "group" axis: (Bt, S, D) -> (H*Bt, S, d_k).
    # Group index g = h*Bt + b.
    def split_heads(x):
        x = x.reshape(Bt, S, D)
        return jnp.concatenate(
            [x[:, :, h * d_k:(h + 1) * d_k] for h in range(n_head)], axis=0)

    Qg = split_heads(Q).astype(jnp.bfloat16)      # (G, S, d_k), G = H*Bt
    Kg = split_heads(K).astype(jnp.bfloat16)
    Vg = split_heads(V).astype(jnp.bfloat16)

    # ---- Attention for all heads/batch rows in one batched einsum.
    # Contracts the last dim of Q and K directly (no kh.T / XLU transpose).
    scores = jnp.einsum("gqd,gkd->gqk", Qg, Kg,
                        preferred_element_type=jnp.float32)     # (G, S, S) f32

    # Numerically-stable softmax, kept in f32.
    m = jnp.max(scores, axis=-1, keepdims=True)
    p = jnp.exp(scores - m)
    denom = jnp.sum(p, axis=-1, keepdims=True)
    probs = p * pl.reciprocal(denom, approx=True)
    # TODO(synk): dropout(p=0.1) on probs (training mode) not implemented (eval identity).

    ctx = jnp.einsum("gqk,gkd->gqd", probs.astype(jnp.bfloat16), Vg,
                     preferred_element_type=jnp.float32)        # (G, S, d_k) f32

    # ---- Merge heads back to (Bt, S, D) in torch concat order (head-major features).
    concat = jnp.concatenate(
        [ctx[h * Bt:(h + 1) * Bt] for h in range(n_head)], axis=-1)

    out = jnp.dot(concat.reshape(M, D).astype(jnp.bfloat16), wo_ref[...],
                  preferred_element_type=jnp.float32) + bo_ref[...]
    out_ref[...] = out.reshape(Bt, S, D).astype(out_ref.dtype)


def multi_head_attention(q, k, v, params, *, n_head: int, block_b=None):
    """q, k, v: [B, S, D].  params: weights pre-transposed to [D_in, D_out], biases [1, D]."""
    B, S, D = q.shape
    assert D % n_head == 0, "d_model must be divisible by n_head"
    d_k = D // n_head
    out_dtype = q.dtype

    # Batch rows per grid step: make projection M = block_b*S reasonably large, but
    # keep >= 2 grid steps when B allows it (parallel batch axis feeds v7x's 2nd core).
    if block_b is None:
        block_b = max(1, min(B, 256 // max(S, 1)))
        if B >= 2:
            block_b = max(1, min(block_b, B // 2))
    while B % block_b:
        block_b -= 1
    grid_b = B // block_b

    # bf16 operands for the MXU; biases stay f32 (added to f32 accumulators).
    f16 = jnp.bfloat16
    qb, kb, vb = q.astype(f16), k.astype(f16), v.astype(f16)
    wq, wk = params["wq"].astype(f16), params["wk"].astype(f16)
    wv, wo = params["wv"].astype(f16), params["wo"].astype(f16)
    bq = params["bq"].astype(jnp.float32)
    bk = params["bk"].astype(jnp.float32)
    bv = params["bv"].astype(jnp.float32)
    bo = params["bo"].astype(jnp.float32)

    kernel = functools.partial(_mha_kernel, n_head=n_head, d_k=d_k)
    act_spec = pl.BlockSpec((block_b, S, D), lambda b: (b, 0, 0))

    # Advisory cost for XLA's scheduler.
    cost = pl.CostEstimate(
        flops=8 * B * S * D * D + 4 * B * S * S * D,
        transcendentals=B * n_head * S * S,
        bytes_accessed=3 * B * S * D * 2 + B * S * D * 4 + 4 * D * D * 2 + 4 * D * 4,
    )

    def build(single_buffer_weights: bool):
        # Weights/biases are grid-invariant; single-buffering halves their resident
        # VMEM (the difference between fitting and not fitting large D on v7x).
        kw = {"pipeline_mode": pl.Buffered(1)} if single_buffer_weights else {}
        w_spec = pl.BlockSpec((D, D), lambda b: (0, 0), **kw)
        b_spec = pl.BlockSpec((1, D), lambda b: (0, 0), **kw)
        return pl.pallas_call(
            kernel,
            out_shape=jax.ShapeDtypeStruct((B, S, D), out_dtype),
            grid_spec=pltpu.PrefetchScalarGridSpec(
                num_scalar_prefetch=0,
                grid=(grid_b,),
                in_specs=[act_spec, act_spec, act_spec,
                          w_spec, b_spec, w_spec, b_spec, w_spec, b_spec,
                          w_spec, b_spec],
                out_specs=act_spec,
            ),
            compiler_params=pltpu.CompilerParams(
                dimension_semantics=("parallel",),
                vmem_limit_bytes=48 * 1024 * 1024,   # explicit budget, fits v7x's 64 MiB
            ),
            cost_estimate=cost,
        )

    args = (qb, kb, vb, wq, bq, wk, bk, wv, bv, wo, bo)
    try:
        return build(True)(*args)
    except Exception:
        # Compatibility fallback if BlockSpec.pipeline_mode / Buffered(1) is unavailable:
        # default double-buffered weight blocks (identical numerics).
        return build(False)(*args)


def _reference(q, k, v, params, n_head):
    """Pure-JAX f32 reference mirroring the PyTorch forward."""
    B, S, D = q.shape
    d_k = D // n_head

    def lin(x, w, b):
        return x @ w + b

    Q = lin(q, params["wq"], params["bq"]).reshape(B, S, n_head, d_k).transpose(0, 2, 1, 3)
    K = lin(k, params["wk"], params["bk"]).reshape(B, S, n_head, d_k).transpose(0, 2, 1, 3)
    V = lin(v, params["wv"], params["bv"]).reshape(B, S, n_head, d_k).transpose(0, 2, 1, 3)

    scores = jnp.einsum("bhqd,bhkd->bhqk", Q, K) / math.sqrt(d_k)
    probs = jax.nn.softmax(scores, axis=-1)
    out = jnp.einsum("bhqk,bhkd->bhqd", probs, V)
    concat = out.transpose(0, 2, 1, 3).reshape(B, S, D)
    return lin(concat, params["wo"], params["bo"])


def _init_params(key, d_model):
    """Deterministic init matching nn.Linear shapes; weights stored transposed [in, out]."""
    ks = jax.random.split(key, 8)
    bound = 1.0 / math.sqrt(d_model)

    def w(k):
        return jax.random.uniform(k, (d_model, d_model), jnp.float32, -bound, bound)

    def b(k):
        return jax.random.uniform(k, (1, d_model), jnp.float32, -bound, bound)

    return {
        "wq": w(ks[0]), "bq": b(ks[1]),
        "wk": w(ks[2]), "bk": b(ks[3]),
        "wv": w(ks[4]), "bv": b(ks[5]),
        "wo": w(ks[6]), "bo": b(ks[7]),
    }


if __name__ == "__main__":
    B, S, D, H = 2, 8, 32, 4   # batch, seq, d_model, n_head (d_k = 8)

    key = jax.random.PRNGKey(0)
    k_params, k_q, k_k, k_v = jax.random.split(key, 4)

    params = _init_params(k_params, D)
    q = jax.random.normal(k_q, (B, S, D), jnp.float32)
    k = jax.random.normal(k_k, (B, S, D), jnp.float32)
    v = jax.random.normal(k_v, (B, S, D), jnp.float32)

    out = multi_head_attention(q, k, v, params, n_head=H)
    out = jax.block_until_ready(out)

    ref = _reference(q, k, v, params, H)
    assert out.shape == (B, S, D)
    # bf16 MXU inputs -> compare with a looser tolerance than a pure-f32 kernel.
    assert jnp.allclose(out, ref, atol=2e-2, rtol=2e-2), "mismatch vs reference"

    print("KERNEL_OK")
</pallas_src>

<mosaic_0001>
module attributes {stable_mosaic.version = 11 : i64} {
  func.func @_mha_kernel(%arg0: i32, %arg1: memref<1x8x32xbf16, #tpu.memory_space<vmem>>, %arg2: memref<1x8x32xbf16, #tpu.memory_space<vmem>>, %arg3: memref<1x8x32xbf16, #tpu.memory_space<vmem>>, %arg4: memref<32x32xbf16, #tpu.memory_space<vmem>>, %arg5: memref<1x32xf32, #tpu.memory_space<vmem>>, %arg6: memref<32x32xbf16, #tpu.memory_space<vmem>>, %arg7: memref<1x32xf32, #tpu.memory_space<vmem>>, %arg8: memref<32x32xbf16, #tpu.memory_space<vmem>>, %arg9: memref<1x32xf32, #tpu.memory_space<vmem>>, %arg10: memref<32x32xbf16, #tpu.memory_space<vmem>>, %arg11: memref<1x32xf32, #tpu.memory_space<vmem>>, %arg12: memref<1x8x32xf32, #tpu.memory_space<vmem>>) attributes {dimension_semantics = [#tpu.dimension_semantics<parallel>], iteration_bounds = array<i64: 2>, scalar_prefetch = 0 : i64, scratch_operands = 0 : i64, tpu.core_type = #tpu.core_type<tc>, window_params = [{transform_indices = @transform_0, window_bounds = array<i64: 1, 8, 32>}, {transform_indices = @transform_1, window_bounds = array<i64: 1, 8, 32>}, {transform_indices = @transform_2, window_bounds = array<i64: 1, 8, 32>}, {pipeline_mode = #tpu.pipeline_mode<synchronous>, transform_indices = @transform_3, window_bounds = array<i64: 32, 32>}, {pipeline_mode = #tpu.pipeline_mode<synchronous>, transform_indices = @transform_4, window_bounds = array<i64: 1, 32>}, {pipeline_mode = #tpu.pipeline_mode<synchronous>, transform_indices = @transform_5, window_bounds = array<i64: 32, 32>}, {pipeline_mode = #tpu.pipeline_mode<synchronous>, transform_indices = @transform_6, window_bounds = array<i64: 1, 32>}, {pipeline_mode = #tpu.pipeline_mode<synchronous>, transform_indices = @transform_7, window_bounds = array<i64: 32, 32>}, {pipeline_mode = #tpu.pipeline_mode<synchronous>, transform_indices = @transform_8, window_bounds = array<i64: 1, 32>}, {pipeline_mode = #tpu.pipeline_mode<synchronous>, transform_indices = @transform_9, window_bounds = array<i64: 32, 32>}, {pipeline_mode = #tpu.pipeline_mode<synchronous>, transform_indices = @transform_10, window_bounds = array<i64: 1, 32>}, {transform_indices = @transform_11, window_bounds = array<i64: 1, 8, 32>}]} {
    %c0 = arith.constant 0 : index
    %c0_0 = arith.constant 0 : index
    %c0_1 = arith.constant 0 : index
    %0 = vector.load %arg1[%c0, %c0_0, %c0_1] : memref<1x8x32xbf16, #tpu.memory_space<vmem>>, vector<1x8x32xbf16>
    %1 = vector.shape_cast %0 : vector<1x8x32xbf16> to vector<8x32xbf16>
    %c0_2 = arith.constant 0 : index
    %c0_3 = arith.constant 0 : index
    %c0_4 = arith.constant 0 : index
    %2 = vector.load %arg2[%c0_2, %c0_3, %c0_4] : memref<1x8x32xbf16, #tpu.memory_space<vmem>>, vector<1x8x32xbf16>
    %3 = vector.shape_cast %2 : vector<1x8x32xbf16> to vector<8x32xbf16>
    %c0_5 = arith.constant 0 : index
    %c0_6 = arith.constant 0 : index
    %c0_7 = arith.constant 0 : index
    %4 = vector.load %arg3[%c0_5, %c0_6, %c0_7] : memref<1x8x32xbf16, #tpu.memory_space<vmem>>, vector<1x8x32xbf16>
    %5 = vector.shape_cast %4 : vector<1x8x32xbf16> to vector<8x32xbf16>
    %c0_8 = arith.constant 0 : index
    %c0_9 = arith.constant 0 : index
    %6 = vector.load %arg4[%c0_8, %c0_9] : memref<32x32xbf16, #tpu.memory_space<vmem>>, vector<32x32xbf16>
    %cst = arith.constant dense<0.000000e+00> : vector<8x32xf32>
    %7 = tpu.matmul %1, %6, %cst {dimension_numbers = #tpu.dot_dimension_numbers<[1], [0], [0], [1], [0, 0, 1, 1], [], []>} : vector<8x32xbf16>, vector<32x32xbf16>, vector<8x32xf32> -> vector<8x32xf32>
    %c0_10 = arith.constant 0 : index
    %c0_11 = arith.constant 0 : index
    %8 = vector.load %arg5[%c0_10, %c0_11] : memref<1x32xf32, #tpu.memory_space<vmem>>, vector<1x32xf32>
    %9 = vector.broadcast %8 : vector<1x32xf32> to vector<8x32xf32>
    %10 = arith.addf %7, %9 : vector<8x32xf32>
    %c0_12 = arith.constant 0 : index
    %c0_13 = arith.constant 0 : index
    %11 = vector.load %arg6[%c0_12, %c0_13] : memref<32x32xbf16, #tpu.memory_space<vmem>>, vector<32x32xbf16>
    %cst_14 = arith.constant dense<0.000000e+00> : vector<8x32xf32>
    %12 = tpu.matmul %3, %11, %cst_14 {dimension_numbers = #tpu.dot_dimension_numbers<[1], [0], [0], [1], [0, 0, 1, 1], [], []>} : vector<8x32xbf16>, vector<32x32xbf16>, vector<8x32xf32> -> vector<8x32xf32>
    %c0_15 = arith.constant 0 : index
    %c0_16 = arith.constant 0 : index
    %13 = vector.load %arg7[%c0_15, %c0_16] : memref<1x32xf32, #tpu.memory_space<vmem>>, vector<1x32xf32>
    %14 = vector.broadcast %13 : vector<1x32xf32> to vector<8x32xf32>
    %15 = arith.addf %12, %14 : vector<8x32xf32>
    %c0_17 = arith.constant 0 : index
    %c0_18 = arith.constant 0 : index
    %16 = vector.load %arg8[%c0_17, %c0_18] : memref<32x32xbf16, #tpu.memory_space<vmem>>, vector<32x32xbf16>
    %cst_19 = arith.constant dense<0.000000e+00> : vector<8x32xf32>
    %17 = tpu.matmul %5, %16, %cst_19 {dimension_numbers = #tpu.dot_dimension_numbers<[1], [0], [0], [1], [0, 0, 1, 1], [], []>} : vector<8x32xbf16>, vector<32x32xbf16>, vector<8x32xf32> -> vector<8x32xf32>
    %c0_20 = arith.constant 0 : index
    %c0_21 = arith.constant 0 : index
    %18 = vector.load %arg9[%c0_20, %c0_21] : memref<1x32xf32, #tpu.memory_space<vmem>>, vector<1x32xf32>
    %19 = vector.broadcast %18 : vector<1x32xf32> to vector<8x32xf32>
    %20 = arith.addf %17, %19 : vector<8x32xf32>
    %cst_22 = arith.constant 0.353553385 : f32
    %21 = vector.broadcast %cst_22 : f32 to vector<8x32xf32>
    %22 = arith.mulf %10, %21 : vector<8x32xf32>
    %23 = vector.shape_cast %22 : vector<8x32xf32> to vector<1x8x32xf32>
    %24 = vector.extract_strided_slice %23 {offsets = [0, 0, 0], sizes = [1, 8, 8], strides = [1, 1, 1]} : vector<1x8x32xf32> to vector<1x8x8xf32>
    %25 = vector.extract_strided_slice %23 {offsets = [0, 0, 8], sizes = [1, 8, 8], strides = [1, 1, 1]} : vector<1x8x32xf32> to vector<1x8x8xf32>
    %26 = vector.extract_strided_slice %23 {offsets = [0, 0, 16], sizes = [1, 8, 8], strides = [1, 1, 1]} : vector<1x8x32xf32> to vector<1x8x8xf32>
    %27 = vector.extract_strided_slice %23 {offsets = [0, 0, 24], sizes = [1, 8, 8], strides = [1, 1, 1]} : vector<1x8x32xf32> to vector<1x8x8xf32>
    %28 = tpu.concatenate %24, %25, %26, %27 in 0 : vector<1x8x8xf32>, vector<1x8x8xf32>, vector<1x8x8xf32>, vector<1x8x8xf32> -> vector<4x8x8xf32>
    %29 = arith.truncf %28 : vector<4x8x8xf32> to vector<4x8x8xbf16>
    %30 = vector.shape_cast %15 : vector<8x32xf32> to vector<1x8x32xf32>
    %31 = vector.extract_strided_slice %30 {offsets = [0, 0, 0], sizes = [1, 8, 8], strides = [1, 1, 1]} : vector<1x8x32xf32> to vector<1x8x8xf32>
    %32 = vector.extract_strided_slice %30 {offsets = [0, 0, 8], sizes = [1, 8, 8], strides = [1, 1, 1]} : vector<1x8x32xf32> to vector<1x8x8xf32>
    %33 = vector.extract_strided_slice %30 {offsets = [0, 0, 16], sizes = [1, 8, 8], strides = [1, 1, 1]} : vector<1x8x32xf32> to vector<1x8x8xf32>
    %34 = vector.extract_strided_slice %30 {offsets = [0, 0, 24], sizes = [1, 8, 8], strides = [1, 1, 1]} : vector<1x8x32xf32> to vector<1x8x8xf32>
    %35 = tpu.concatenate %31, %32, %33, %34 in 0 : vector<1x8x8xf32>, vector<1x8x8xf32>, vector<1x8x8xf32>, vector<1x8x8xf32> -> vector<4x8x8xf32>
    %36 = arith.truncf %35 : vector<4x8x8xf32> to vector<4x8x8xbf16>
    %37 = vector.shape_cast %20 : vector<8x32xf32> to vector<1x8x32xf32>
    %38 = vector.extract_strided_slice %37 {offsets = [0, 0, 0], sizes = [1, 8, 8], strides = [1, 1, 1]} : vector<1x8x32xf32> to vector<1x8x8xf32>
    %39 = vector.extract_strided_slice %37 {offsets = [0, 0, 8], sizes = [1, 8, 8], strides = [1, 1, 1]} : vector<1x8x32xf32> to vector<1x8x8xf32>
    %40 = vector.extract_strided_slice %37 {offsets = [0, 0, 16], sizes = [1, 8, 8], strides = [1, 1, 1]} : vector<1x8x32xf32> to vector<1x8x8xf32>
    %41 = vector.extract_strided_slice %37 {offsets = [0, 0, 24], sizes = [1, 8, 8], strides = [1, 1, 1]} : vector<1x8x32xf32> to vector<1x8x8xf32>
    %42 = tpu.concatenate %38, %39, %40, %41 in 0 : vector<1x8x8xf32>, vector<1x8x8xf32>, vector<1x8x8xf32>, vector<1x8x8xf32> -> vector<4x8x8xf32>
    %43 = arith.truncf %42 : vector<4x8x8xf32> to vector<4x8x8xbf16>
    "tpu.trace_start"() <{level = 10 : i32, message = "gqd,gkd->gqk"}> : () -> ()
    %cst_23 = arith.constant dense<0.000000e+00> : vector<4x8x8xf32>
    %44 = tpu.matmul %29, %36, %cst_23 {dimension_numbers = #tpu.dot_dimension_numbers<[2], [2], [1], [1], [0, 0, 0, 1, 1, 1], [0], [0]>} : vector<4x8x8xbf16>, vector<4x8x8xbf16>, vector<4x8x8xf32> -> vector<4x8x8xf32>
    "tpu.trace_stop"() : () -> ()
    %cst_24 = arith.constant dense<0xFF800000> : vector<4x8xf32>
    %45 = vector.multi_reduction <maximumf>, %44, %cst_24 [2] : vector<4x8x8xf32> to vector<4x8xf32>
    %46 = vector.shape_cast %45 : vector<4x8xf32> to vector<4x8x1xf32>
    %47 = vector.broadcast %46 : vector<4x8x1xf32> to vector<4x8x8xf32>
    %48 = arith.subf %44, %47 : vector<4x8x8xf32>
    %49 = math.exp %48 : vector<4x8x8xf32>
    %cst_25 = arith.constant dense<0.000000e+00> : vector<4x8xf32>
    %50 = vector.multi_reduction <add>, %49, %cst_25 [2] : vector<4x8x8xf32> to vector<4x8xf32>
    %51 = vector.shape_cast %50 : vector<4x8xf32> to vector<4x8x1xf32>
    %52 = tpu.reciprocal %51 {approx = true} : vector<4x8x1xf32> -> vector<4x8x1xf32>
    %53 = vector.broadcast %52 : vector<4x8x1xf32> to vector<4x8x8xf32>
    %54 = arith.mulf %49, %53 : vector<4x8x8xf32>
    %55 = arith.truncf %54 : vector<4x8x8xf32> to vector<4x8x8xbf16>
    "tpu.trace_start"() <{level = 10 : i32, message = "gqk,gkd->gqd"}> : () -> ()
    %cst_26 = arith.constant dense<0.000000e+00> : vector<4x8x8xf32>
    %56 = tpu.matmul %55, %43, %cst_26 {dimension_numbers = #tpu.dot_dimension_numbers<[2], [1], [1], [2], [0, 0, 0, 1, 1, 2], [0], [0]>} : vector<4x8x8xbf16>, vector<4x8x8xbf16>, vector<4x8x8xf32> -> vector<4x8x8xf32>
    "tpu.trace_stop"() : () -> ()
    %57 = vector.extract_strided_slice %56 {offsets = [0, 0, 0], sizes = [1, 8, 8], strides = [1, 1, 1]} : vector<4x8x8xf32> to vector<1x8x8xf32>
    %58 = vector.extract_strided_slice %56 {offsets = [1, 0, 0], sizes = [1, 8, 8], strides = [1, 1, 1]} : vector<4x8x8xf32> to vector<1x8x8xf32>
    %59 = vector.extract_strided_slice %56 {offsets = [2, 0, 0], sizes = [1, 8, 8], strides = [1, 1, 1]} : vector<4x8x8xf32> to vector<1x8x8xf32>
    %60 = vector.extract_strided_slice %56 {offsets = [3, 0, 0], sizes = [1, 8, 8], strides = [1, 1, 1]} : vector<4x8x8xf32> to vector<1x8x8xf32>
    %61 = tpu.concatenate %57, %58, %59, %60 in 2 : vector<1x8x8xf32>, vector<1x8x8xf32>, vector<1x8x8xf32>, vector<1x8x8xf32> -> vector<1x8x32xf32>
    %62 = vector.shape_cast %61 : vector<1x8x32xf32> to vector<8x32xf32>
    %63 = arith.truncf %62 : vector<8x32xf32> to vector<8x32xbf16>
    %c0_27 = arith.constant 0 : index
    %c0_28 = arith.constant 0 : index
    %64 = vector.load %arg10[%c0_27, %c0_28] : memref<32x32xbf16, #tpu.memory_space<vmem>>, vector<32x32xbf16>
    %cst_29 = arith.constant dense<0.000000e+00> : vector<8x32xf32>
    %65 = tpu.matmul %63, %64, %cst_29 {dimension_numbers = #tpu.dot_dimension_numbers<[1], [0], [0], [1], [0, 0, 1, 1], [], []>} : vector<8x32xbf16>, vector<32x32xbf16>, vector<8x32xf32> -> vector<8x32xf32>
    %c0_30 = arith.constant 0 : index
    %c0_31 = arith.constant 0 : index
    %66 = vector.load %arg11[%c0_30, %c0_31] : memref<1x32xf32, #tpu.memory_space<vmem>>, vector<1x32xf32>
    %67 = vector.broadcast %66 : vector<1x32xf32> to vector<8x32xf32>
    %68 = arith.addf %65, %67 : vector<8x32xf32>
    %69 = vector.shape_cast %68 : vector<8x32xf32> to vector<1x8x32xf32>
    %c0_32 = arith.constant 0 : index
    %c0_33 = arith.constant 0 : index
    %c0_34 = arith.constant 0 : index
    %70 = vector.load %arg12[%c0_32, %c0_33, %c0_34] : memref<1x8x32xf32, #tpu.memory_space<vmem>>, vector<1x8x32xf32>
    tpu.vector_store %arg12[%c0_32, %c0_33, %c0_34], %69 {strides = array<i32>} : memref<1x8x32xf32, #tpu.memory_space<vmem>>, vector<1x8x32xf32>,
    return
  }
  func.func @transform_0(%arg0: i32) -> (i32, i32, i32) {
    %c0_i32 = arith.constant 0 : i32
    %c0_i32_0 = arith.constant 0 : i32
    %c0_i32_1 = arith.constant 0 : i32
    return %arg0, %c0_i32, %c0_i32_0 : i32, i32, i32
  }
  func.func @transform_1(%arg0: i32) -> (i32, i32, i32) {
    %c0_i32 = arith.constant 0 : i32
    %c0_i32_0 = arith.constant 0 : i32
    %c0_i32_1 = arith.constant 0 : i32
    return %arg0, %c0_i32, %c0_i32_0 : i32, i32, i32
  }
  func.func @transform_2(%arg0: i32) -> (i32, i32, i32) {
    %c0_i32 = arith.constant 0 : i32
    %c0_i32_0 = arith.constant 0 : i32
    %c0_i32_1 = arith.constant 0 : i32
    return %arg0, %c0_i32, %c0_i32_0 : i32, i32, i32
  }
  func.func @transform_3(%arg0: i32) -> (i32, i32) {
    %c0_i32 = arith.constant 0 : i32
    %c0_i32_0 = arith.constant 0 : i32
    %c0_i32_1 = arith.constant 0 : i32
    return %c0_i32, %c0_i32_0 : i32, i32
  }
  func.func @transform_4(%arg0: i32) -> (i32, i32) {
    %c0_i32 = arith.constant 0 : i32
    %c0_i32_0 = arith.constant 0 : i32
    %c0_i32_1 = arith.constant 0 : i32
    return %c0_i32, %c0_i32_0 : i32, i32
  }
  func.func @transform_5(%arg0: i32) -> (i32, i32) {
    %c0_i32 = arith.constant 0 : i32
    %c0_i32_0 = arith.constant 0 : i32
    %c0_i32_1 = arith.constant 0 : i32
    return %c0_i32, %c0_i32_0 : i32, i32
  }
  func.func @transform_6(%arg0: i32) -> (i32, i32) {
    %c0_i32 = arith.constant 0 : i32
    %c0_i32_0 = arith.constant 0 : i32
    %c0_i32_1 = arith.constant 0 : i32
    return %c0_i32, %c0_i32_0 : i32, i32
  }
  func.func @transform_7(%arg0: i32) -> (i32, i32) {
    %c0_i32 = arith.constant 0 : i32
    %c0_i32_0 = arith.constant 0 : i32
    %c0_i32_1 = arith.constant 0 : i32
    return %c0_i32, %c0_i32_0 : i32, i32
  }
  func.func @transform_8(%arg0: i32) -> (i32, i32) {
    %c0_i32 = arith.constant 0 : i32
    %c0_i32_0 = arith.constant 0 : i32
    %c0_i32_1 = arith.constant 0 : i32
    return %c0_i32, %c0_i32_0 : i32, i32
  }
  func.func @transform_9(%arg0: i32) -> (i32, i32) {
    %c0_i32 = arith.constant 0 : i32
    %c0_i32_0 = arith.constant 0 : i32
    %c0_i32_1 = arith.constant 0 : i32
    return %c0_i32, %c0_i32_0 : i32, i32
  }
  func.func @transform_10(%arg0: i32) -> (i32, i32) {
    %c0_i32 = arith.constant 0 : i32
    %c0_i32_0 = arith.constant 0 : i32
    %c0_i32_1 = arith.constant 0 : i32
    return %c0_i32, %c0_i32_0 : i32, i32
  }
  func.func @transform_11(%arg0: i32) -> (i32, i32, i32) {
    %c0_i32 = arith.constant 0 : i32
    %c0_i32_0 = arith.constant 0 : i32
    %c0_i32_1 = arith.constant 0 : i32
    return %arg0, %c0_i32, %c0_i32_0 : i32, i32, i32
  }
}

module attributes {stable_mosaic.version = 11 : i64} {
  func.func @_mha_kernel(%arg0: i32, %arg1: memref<1x8x32xbf16, #tpu.memory_space<vmem>>, %arg2: memref<1x8x32xbf16, #tpu.memory_space<vmem>>, %arg3: memref<1x8x32xbf16, #tpu.memory_space<vmem>>, %arg4: memref<32x32xbf16, #tpu.memory_space<vmem>>, %arg5: memref<1x32xf32, #tpu.memory_space<vmem>>, %arg6: memref<32x32xbf16, #tpu.memory_space<vmem>>, %arg7: memref<1x32xf32, #tpu.memory_space<vmem>>, %arg8: memref<32x32xbf16, #tpu.memory_space<vmem>>, %arg9: memref<1x32xf32, #tpu.memory_space<vmem>>, %arg10: memref<32x32xbf16, #tpu.memory_space<vmem>>, %arg11: memref<1x32xf32, #tpu.memory_space<vmem>>, %arg12: memref<1x8x32xf32, #tpu.memory_space<vmem>>) attributes {dimension_semantics = [#tpu.dimension_semantics<parallel>], iteration_bounds = array<i64: 2>, scalar_prefetch = 0 : i64, scratch_operands = 0 : i64, tpu.core_type = #tpu.core_type<tc>, window_params = [{transform_indices = @transform_0, window_bounds = array<i64: 1, 8, 32>}, {transform_indices = @transform_1, window_bounds = array<i64: 1, 8, 32>}, {transform_indices = @transform_2, window_bounds = array<i64: 1, 8, 32>}, {pipeline_mode = #tpu.pipeline_mode<synchronous>, transform_indices = @transform_3, window_bounds = array<i64: 32, 32>}, {pipeline_mode = #tpu.pipeline_mode<synchronous>, transform_indices = @transform_4, window_bounds = array<i64: 1, 32>}, {pipeline_mode = #tpu.pipeline_mode<synchronous>, transform_indices = @transform_5, window_bounds = array<i64: 32, 32>}, {pipeline_mode = #tpu.pipeline_mode<synchronous>, transform_indices = @transform_6, window_bounds = array<i64: 1, 32>}, {pipeline_mode = #tpu.pipeline_mode<synchronous>, transform_indices = @transform_7, window_bounds = array<i64: 32, 32>}, {pipeline_mode = #tpu.pipeline_mode<synchronous>, transform_indices = @transform_8, window_bounds = array<i64: 1, 32>}, {pipeline_mode = #tpu.pipeline_mode<synchronous>, transform_indices = @transform_9, window_bounds = array<i64: 32, 32>}, {pipeline_mode = #tpu.pipeline_mode<synchronous>, transform_indices = @transform_10, window_bounds = array<i64: 1, 32>}, {transform_indices = @transform_11, window_bounds = array<i64: 1, 8, 32>}]} {
    %c0 = arith.constant 0 : index
    %c0_0 = arith.constant 0 : index
    %c0_1 = arith.constant 0 : index
    %0 = vector.load %arg1[%c0, %c0_0, %c0_1] : memref<1x8x32xbf16, #tpu.memory_space<vmem>>, vector<1x8x32xbf16>
    %1 = vector.shape_cast %0 : vector<1x8x32xbf16> to vector<8x32xbf16>
    %c0_2 = arith.constant 0 : index
    %c0_3 = arith.constant 0 : index
    %c0_4 = arith.constant 0 : index
    %2 = vector.load %arg2[%c0_2, %c0_3, %c0_4] : memref<1x8x32xbf16, #tpu.memory_space<vmem>>, vector<1x8x32xbf16>
    %3 = vector.shape_cast %2 : vector<1x8x32xbf16> to vector<8x32xbf16>
    %c0_5 = arith.constant 0 : index
    %c0_6 = arith.constant 0 : index
    %c0_7 = arith.constant 0 : index
    %4 = vector.load %arg3[%c0_5, %c0_6, %c0_7] : memref<1x8x32xbf16, #tpu.memory_space<vmem>>, vector<1x8x32xbf16>
    %5 = vector.shape_cast %4 : vector<1x8x32xbf16> to vector<8x32xbf16>
    %c0_8 = arith.constant 0 : index
    %c0_9 = arith.constant 0 : index
    %6 = vector.load %arg4[%c0_8, %c0_9] : memref<32x32xbf16, #tpu.memory_space<vmem>>, vector<32x32xbf16>
    %cst = arith.constant dense<0.000000e+00> : vector<8x32xf32>
    %7 = tpu.matmul %1, %6, %cst {dimension_numbers = #tpu.dot_dimension_numbers<[1], [0], [0], [1], [0, 0, 1, 1], [], []>} : vector<8x32xbf16>, vector<32x32xbf16>, vector<8x32xf32> -> vector<8x32xf32>
    %c0_10 = arith.constant 0 : index
    %c0_11 = arith.constant 0 : index
    %8 = vector.load %arg5[%c0_10, %c0_11] : memref<1x32xf32, #tpu.memory_space<vmem>>, vector<1x32xf32>
    %9 = vector.broadcast %8 : vector<1x32xf32> to vector<8x32xf32>
    %10 = arith.addf %7, %9 : vector<8x32xf32>
    %c0_12 = arith.constant 0 : index
    %c0_13 = arith.constant 0 : index
    %11 = vector.load %arg6[%c0_12, %c0_13] : memref<32x32xbf16, #tpu.memory_space<vmem>>, vector<32x32xbf16>
    %cst_14 = arith.constant dense<0.000000e+00> : vector<8x32xf32>
    %12 = tpu.matmul %3, %11, %cst_14 {dimension_numbers = #tpu.dot_dimension_numbers<[1], [0], [0], [1], [0, 0, 1, 1], [], []>} : vector<8x32xbf16>, vector<32x32xbf16>, vector<8x32xf32> -> vector<8x32xf32>
    %c0_15 = arith.constant 0 : index
    %c0_16 = arith.constant 0 : index
    %13 = vector.load %arg7[%c0_15, %c0_16] : memref<1x32xf32, #tpu.memory_space<vmem>>, vector<1x32xf32>
    %14 = vector.broadcast %13 : vector<1x32xf32> to vector<8x32xf32>
    %15 = arith.addf %12, %14 : vector<8x32xf32>
    %c0_17 = arith.constant 0 : index
    %c0_18 = arith.constant 0 : index
    %16 = vector.load %arg8[%c0_17, %c0_18] : memref<32x32xbf16, #tpu.memory_space<vmem>>, vector<32x32xbf16>
    %cst_19 = arith.constant dense<0.000000e+00> : vector<8x32xf32>
    %17 = tpu.matmul %5, %16, %cst_19 {dimension_numbers = #tpu.dot_dimension_numbers<[1], [0], [0], [1], [0, 0, 1, 1], [], []>} : vector<8x32xbf16>, vector<32x32xbf16>, vector<8x32xf32> -> vector<8x32xf32>
    %c0_20 = arith.constant 0 : index
    %c0_21 = arith.constant 0 : index
    %18 = vector.load %arg9[%c0_20, %c0_21] : memref<1x32xf32, #tpu.memory_space<vmem>>, vector<1x32xf32>
    %19 = vector.broadcast %18 : vector<1x32xf32> to vector<8x32xf32>
    %20 = arith.addf %17, %19 : vector<8x32xf32>
    %cst_22 = arith.constant 0.353553385 : f32
    %21 = vector.broadcast %cst_22 : f32 to vector<8x32xf32>
    %22 = arith.mulf %10, %21 : vector<8x32xf32>
    %23 = vector.shape_cast %22 : vector<8x32xf32> to vector<1x8x32xf32>
    %24 = vector.extract_strided_slice %23 {offsets = [0, 0, 0], sizes = [1, 8, 8], strides = [1, 1, 1]} : vector<1x8x32xf32> to vector<1x8x8xf32>
    %25 = vector.extract_strided_slice %23 {offsets = [0, 0, 8], sizes = [1, 8, 8], strides = [1, 1, 1]} : vector<1x8x32xf32> to vector<1x8x8xf32>
    %26 = vector.extract_strided_slice %23 {offsets = [0, 0, 16], sizes = [1, 8, 8], strides = [1, 1, 1]} : vector<1x8x32xf32> to vector<1x8x8xf32>
    %27 = vector.extract_strided_slice %23 {offsets = [0, 0, 24], sizes = [1, 8, 8], strides = [1, 1, 1]} : vector<1x8x32xf32> to vector<1x8x8xf32>
    %28 = tpu.concatenate %24, %25, %26, %27 in 0 : vector<1x8x8xf32>, vector<1x8x8xf32>, vector<1x8x8xf32>, vector<1x8x8xf32> -> vector<4x8x8xf32>
    %29 = arith.truncf %28 : vector<4x8x8xf32> to vector<4x8x8xbf16>
    %30 = vector.shape_cast %15 : vector<8x32xf32> to vector<1x8x32xf32>
    %31 = vector.extract_strided_slice %30 {offsets = [0, 0, 0], sizes = [1, 8, 8], strides = [1, 1, 1]} : vector<1x8x32xf32> to vector<1x8x8xf32>
    %32 = vector.extract_strided_slice %30 {offsets = [0, 0, 8], sizes = [1, 8, 8], strides = [1, 1, 1]} : vector<1x8x32xf32> to vector<1x8x8xf32>
    %33 = vector.extract_strided_slice %30 {offsets = [0, 0, 16], sizes = [1, 8, 8], strides = [1, 1, 1]} : vector<1x8x32xf32> to vector<1x8x8xf32>
    %34 = vector.extract_strided_slice %30 {offsets = [0, 0, 24], sizes = [1, 8, 8], strides = [1, 1, 1]} : vector<1x8x32xf32> to vector<1x8x8xf32>
    %35 = tpu.concatenate %31, %32, %33, %34 in 0 : vector<1x8x8xf32>, vector<1x8x8xf32>, vector<1x8x8xf32>, vector<1x8x8xf32> -> vector<4x8x8xf32>
    %36 = arith.truncf %35 : vector<4x8x8xf32> to vector<4x8x8xbf16>
    %37 = vector.shape_cast %20 : vector<8x32xf32> to vector<1x8x32xf32>
    %38 = vector.extract_strided_slice %37 {offsets = [0, 0, 0], sizes = [1, 8, 8], strides = [1, 1, 1]} : vector<1x8x32xf32> to vector<1x8x8xf32>
    %39 = vector.extract_strided_slice %37 {offsets = [0, 0, 8], sizes = [1, 8, 8], strides = [1, 1, 1]} : vector<1x8x32xf32> to vector<1x8x8xf32>
    %40 = vector.extract_strided_slice %37 {offsets = [0, 0, 16], sizes = [1, 8, 8], strides = [1, 1, 1]} : vector<1x8x32xf32> to vector<1x8x8xf32>
    %41 = vector.extract_strided_slice %37 {offsets = [0, 0, 24], sizes = [1, 8, 8], strides = [1, 1, 1]} : vector<1x8x32xf32> to vector<1x8x8xf32>
    %42 = tpu.concatenate %38, %39, %40, %41 in 0 : vector<1x8x8xf32>, vector<1x8x8xf32>, vector<1x8x8xf32>, vector<1x8x8xf32> -> vector<4x8x8xf32>
    %43 = arith.truncf %42 : vector<4x8x8xf32> to vector<4x8x8xbf16>
    "tpu.trace_start"() <{level = 10 : i32, message = "gqd,gkd->gqk"}> : () -> ()
    %cst_23 = arith.constant dense<0.000000e+00> : vector<4x8x8xf32>
    %44 = tpu.matmul %29, %36, %cst_23 {dimension_numbers = #tpu.dot_dimension_numbers<[2], [2], [1], [1], [0, 0, 0, 1, 1, 1], [0], [0]>} : vector<4x8x8xbf16>, vector<4x8x8xbf16>, vector<4x8x8xf32> -> vector<4x8x8xf32>
    "tpu.trace_stop"() : () -> ()
    %cst_24 = arith.constant dense<0xFF800000> : vector<4x8xf32>
    %45 = vector.multi_reduction <maximumf>, %44, %cst_24 [2] : vector<4x8x8xf32> to vector<4x8xf32>
    %46 = vector.shape_cast %45 : vector<4x8xf32> to vector<4x8x1xf32>
    %47 = vector.broadcast %46 : vector<4x8x1xf32> to vector<4x8x8xf32>
    %48 = arith.subf %44, %47 : vector<4x8x8xf32>
    %49 = math.exp %48 : vector<4x8x8xf32>
    %cst_25 = arith.constant dense<0.000000e+00> : vector<4x8xf32>
    %50 = vector.multi_reduction <add>, %49, %cst_25 [2] : vector<4x8x8xf32> to vector<4x8xf32>
    %51 = vector.shape_cast %50 : vector<4x8xf32> to vector<4x8x1xf32>
    %52 = tpu.reciprocal %51 {approx = true} : vector<4x8x1xf32> -> vector<4x8x1xf32>
    %53 = vector.broadcast %52 : vector<4x8x1xf32> to vector<4x8x8xf32>
    %54 = arith.mulf %49, %53 : vector<4x8x8xf32>
    %55 = arith.truncf %54 : vector<4x8x8xf32> to vector<4x8x8xbf16>
    "tpu.trace_start"() <{level = 10 : i32, message = "gqk,gkd->gqd"}> : () -> ()
    %cst_26 = arith.constant dense<0.000000e+00> : vector<4x8x8xf32>
    %56 = tpu.matmul %55, %43, %cst_26 {dimension_numbers = #tpu.dot_dimension_numbers<[2], [1], [1], [2], [0, 0, 0, 1, 1, 2], [0], [0]>} : vector<4x8x8xbf16>, vector<4x8x8xbf16>, vector<4x8x8xf32> -> vector<4x8x8xf32>
    "tpu.trace_stop"() : () -> ()
    %57 = vector.extract_strided_slice %56 {offsets = [0, 0, 0], sizes = [1, 8, 8], strides = [1, 1, 1]} : vector<4x8x8xf32> to vector<1x8x8xf32>
    %58 = vector.extract_strided_slice %56 {offsets = [1, 0, 0], sizes = [1, 8, 8], strides = [1, 1, 1]} : vector<4x8x8xf32> to vector<1x8x8xf32>
    %59 = vector.extract_strided_slice %56 {offsets = [2, 0, 0], sizes = [1, 8, 8], strides = [1, 1, 1]} : vector<4x8x8xf32> to vector<1x8x8xf32>
    %60 = vector.extract_strided_slice %56 {offsets = [3, 0, 0], sizes = [1, 8, 8], strides = [1, 1, 1]} : vector<4x8x8xf32> to vector<1x8x8xf32>
    %61 = tpu.concatenate %57, %58, %59, %60 in 2 : vector<1x8x8xf32>, vector<1x8x8xf32>, vector<1x8x8xf32>, vector<1x8x8xf32> -> vector<1x8x32xf32>
    %62 = vector.shape_cast %61 : vector<1x8x32xf32> to vector<8x32xf32>
    %63 = arith.truncf %62 : vector<8x32xf32> to vector<8x32xbf16>
    %c0_27 = arith.constant 0 : index
    %c0_28 = arith.constant 0 : index
    %64 = vector.load %arg10[%c0_27, %c0_28] : memref<32x32xbf16, #tpu.memory_space<vmem>>, vector<32x32xbf16>
    %cst_29 = arith.constant dense<0.000000e+00> : vector<8x32xf32>
    %65 = tpu.matmul %63, %64, %cst_29 {dimension_numbers = #tpu.dot_dimension_numbers<[1], [0], [0], [1], [0, 0, 1, 1], [], []>} : vector<8x32xbf16>, vector<32x32xbf16>, vector<8x32xf32> -> vector<8x32xf32>
    %c0_30 = arith.constant 0 : index
    %c0_31 = arith.constant 0 : index
    %66 = vector.load %arg11[%c0_30, %c0_31] : memref<1x32xf32, #tpu.memory_space<vmem>>, vector<1x32xf32>
    %67 = vector.broadcast %66 : vector<1x32xf32> to vector<8x32xf32>
    %68 = arith.addf %65, %67 : vector<8x32xf32>
    %69 = vector.shape_cast %68 : vector<8x32xf32> to vector<1x8x32xf32>
    %c0_32 = arith.constant 0 : index
    %c0_33 = arith.constant 0 : index
    %c0_34 = arith.constant 0 : index
    %70 = vector.load %arg12[%c0_32, %c0_33, %c0_34] : memref<1x8x32xf32, #tpu.memory_space<vmem>>, vector<1x8x32xf32>
    tpu.vector_store %arg12[%c0_32, %c0_33, %c0_34], %69 {strides = array<i32>} : memref<1x8x32xf32, #tpu.memory_space<vmem>>, vector<1x8x32xf32>,
    return
  }
  func.func @transform_0(%arg0: i32) -> (i32, i32, i32) {
    %c0_i32 = arith.constant 0 : i32
    %c0_i32_0 = arith.constant 0 : i32
    %c0_i32_1 = arith.constant 0 : i32
    return %arg0, %c0_i32, %c0_i32_0 : i32, i32, i32
  }
  func.func @transform_1(%arg0: i32) -> (i32, i32, i32) {
    %c0_i32 = arith.constant 0 : i32
    %c0_i32_0 = arith.constant 0 : i32
    %c0_i32_1 = arith.constant 0 : i32
    return %arg0, %c0_i32, %c0_i32_0 : i32, i32, i32
  }
  func.func @transform_2(%arg0: i32) -> (i32, i32, i32) {
    %c0_i32 = arith.constant 0 : i32
    %c0_i32_0 = arith.constant 0 : i32
    %c0_i32_1 = arith.constant 0 : i32
    return %arg0, %c0_i32, %c0_i32_0 : i32, i32, i32
  }
  func.func @transform_3(%arg0: i32) -> (i32, i32) {
    %c0_i32 = arith.constant 0 : i32
    %c0_i32_0 = arith.constant 0 : i32
    %c0_i32_1 = arith.constant 0 : i32
    return %c0_i32, %c0_i32_0 : i32, i32
  }
  func.func @transform_4(%arg0: i32) -> (i32, i32) {
    %c0_i32 = arith.constant 0 : i32
    %c0_i32_0 = arith.constant 0 : i32
    %c0_i32_1 = arith.constant 0 : i32
    return %c0_i32, %c0_i32_0 : i32, i32
  }
  func.func @transform_5(%arg0: i32) -> (i32, i32) {
    %c0_i32 = arith.constant 0 : i32
    %c0_i32_0 = arith.constant 0 : i32
    %c0_i32_1 = arith.constant 0 : i32
    return %c0_i32, %c0_i32_0 : i32, i32
  }
  func.func @transform_6(%arg0: i32) -> (i32, i32) {
    %c0_i32 = arith.constant 0 : i32
    %c0_i32_0 = arith.constant 0 : i32
    %c0_i32_1 = arith.constant 0 : i32
    return %c0_i32, %c0_i32_0 : i32, i32
  }
  func.func @transform_7(%arg0: i32) -> (i32, i32) {
    %c0_i32 = arith.constant 0 : i32
    %c0_i32_0 = arith.constant 0 : i32
    %c0_i32_1 = arith.constant 0 : i32
    return %c0_i32, %c0_i32_0 : i32, i32
  }
  func.func @transform_8(%arg0: i32) -> (i32, i32) {
    %c0_i32 = arith.constant 0 : i32
    %c0_i32_0 = arith.constant 0 : i32
    %c0_i32_1 = arith.constant 0 : i32
    return %c0_i32, %c0_i32_0 : i32, i32
  }
  func.func @transform_9(%arg0: i32) -> (i32, i32) {
    %c0_i32 = arith.constant 0 : i32
    %c0_i32_0 = arith.constant 0 : i32
    %c0_i32_1 = arith.constant 0 : i32
    return %c0_i32, %c0_i32_0 : i32, i32
  }
  func.func @transform_10(%arg0: i32) -> (i32, i32) {
    %c0_i32 = arith.constant 0 : i32
    %c0_i32_0 = arith.constant 0 : i32
    %c0_i32_1 = arith.constant 0 : i32
    return %c0_i32, %c0_i32_0 : i32, i32
  }
  func.func @transform_11(%arg0: i32) -> (i32, i32, i32) {
    %c0_i32 = arith.constant 0 : i32
    %c0_i32_0 = arith.constant 0 : i32
    %c0_i32_1 = arith.constant 0 : i32
    return %arg0, %c0_i32, %c0_i32_0 : i32, i32, i32
  }
}

</mosaic_0001>

<llo_original>
// kernel: tpu_custom_call.1
$region0: #{tpu_custom_call.1}
  #allocation0 [shape = 'u32[]', space=smem, size = 0x4, offset = 0x4, fixed_abs, tag = 'smem constant byte address 0x4 - core index']
  #allocation1 [shape = 'u32[144,128]{1,0:T(1,128)}', space=vmem, size = 0x12000, scoped, tag = 'internal scratch']
  %s0 = inlined_call_operand.hbm [shape: bf16[2,8,32], index: 0, kind: input, shape index: {}]
  %s1 = inlined_call_operand.hbm [shape: bf16[2,8,32], index: 1, kind: input, shape index: {}]
  %s2 = inlined_call_operand.hbm [shape: bf16[2,8,32], index: 2, kind: input, shape index: {}]
  %s3 = inlined_call_operand.hbm [shape: bf16[32,32], index: 3, kind: input, shape index: {}]
  %s4 = inlined_call_operand.hbm [shape: f32[1,32], index: 4, kind: input, shape index: {}]
  %s5 = inlined_call_operand.hbm [shape: bf16[32,32], index: 5, kind: input, shape index: {}]
  %s6 = inlined_call_operand.hbm [shape: f32[1,32], index: 6, kind: input, shape index: {}]
  %s7 = inlined_call_operand.hbm [shape: bf16[32,32], index: 7, kind: input, shape index: {}]
  %s8 = inlined_call_operand.hbm [shape: f32[1,32], index: 8, kind: input, shape index: {}]
  %s9 = inlined_call_operand.vmem [shape: bf16[32,32], index: 9, kind: input, shape index: {}]
  %s10 = inlined_call_operand.vmem [shape: f32[1,32], index: 10, kind: input, shape index: {}]
  %s11 = inlined_call_operand.hbm [shape: f32[2,8,32], index: 11, kind: output, shape index: {}]
  %s12 = sld [smem:[#allocation0]]
  $region113: #{tpu_custom_call.1} parent=0
    _
  %s14 = ssub.s32 1, %s12
  %s15 = scalar_select 0, %s14, %s12
  $region1: #{tpu_custom_call.1} parent=0
    #allocation2 [shape = 'u8[4096]{0}', space=vmem, size = 0x1000, scoped, tag = 'input window, operand 0']
    #allocation3 [shape = 's32[2]{0}', space=sflag, size = 0x8, scoped, tag = 'scoped memory for tpu_custom_call.1']
    #allocation4 [shape = 's32[2]{0}', space=sflag, size = 0x8, scoped, tag = 'scoped memory for tpu_custom_call.1']
    #allocation5 [shape = 'u8[4096]{0}', space=vmem, size = 0x1000, scoped, tag = 'input window, operand 1']
    #allocation6 [shape = 's32[2]{0}', space=sflag, size = 0x8, scoped, tag = 'scoped memory for tpu_custom_call.1']
    #allocation7 [shape = 'u8[4096]{0}', space=vmem, size = 0x1000, scoped, tag = 'input window, operand 2']
    #allocation8 [shape = 'u8[8192]{0}', space=vmem, size = 0x2000, scoped, tag = 'input window, operand 3, single buffered']
    #allocation9 [shape = 's32[1]{0}', space=sflag, size = 0x4, scoped, tag = 'scoped memory for tpu_custom_call.1']
    #allocation10 [shape = 'u8[512]{0}', space=vmem, size = 0x400, scoped, tag = 'input window, operand 4, single buffered']
    #allocation11 [shape = 'u8[8192]{0}', space=vmem, size = 0x2000, scoped, tag = 'input window, operand 5, single buffered']
    #allocation12 [shape = 's32[1]{0}', space=sflag, size = 0x4, scoped, tag = 'scoped memory for tpu_custom_call.1']
    #allocation13 [shape = 'u8[512]{0}', space=vmem, size = 0x400, scoped, tag = 'input window, operand 6, single buffered']
    #allocation14 [shape = 'u8[8192]{0}', space=vmem, size = 0x2000, scoped, tag = 'input window, operand 7, single buffered']
    #allocation15 [shape = 's32[1]{0}', space=sflag, size = 0x4, scoped, tag = 'scoped memory for tpu_custom_call.1']
    #allocation16 [shape = 'u8[512]{0}', space=vmem, size = 0x400, scoped, tag = 'input window, operand 8, single buffered']
    #allocation17 [shape = 'u8[8192]{0}', space=vmem, size = 0x2000, scoped, tag = 'output window, operand 0']
    %16 = vsyncpa [#allocation3], 0
    %s17 = scalar_lea.sflag [#allocation3], 1
    %18 = vsyncpa %s17, 0
    %19 = vsyncpa [#allocation6], 0
    %s20 = scalar_lea.sflag [#allocation6], 1
    %21 = vsyncpa %s20, 0
    %22 = vsyncpa [#allocation9], 0
    %23 = vsyncpa [#allocation12], 0
    %24 = vsyncpa [#allocation15], 0
    %25 = vsyncpa [#allocation4], 0
    %s26 = scalar_lea.sflag [#allocation4], 1
    %27 = vsyncpa %s26, 0
    loop: start=0, step=1, limit=4
    $region2: #{tpu_custom_call.1} parent=1 // loop_pre_header
      _
    $region3: #{tpu_custom_call.1} parent=1 // loop_header
      %s29 = sphi 0, %s33
      %p30 = scmp.ge.s32.totalorder %s29, 4
      %s39 = sphi 0, %s41
      %s42 = sphi 0, %s39
      %s43 = sphi 0, %s42
      %s59 = sphi 0, %s43
      %s65 = sphi 0, %s67
      %s68 = sphi 0, %s65
      %s69 = sphi 0, %s68
      %s85 = sphi 0, %s69
      %s91 = sphi 0, %s93
      %s94 = sphi 0, %s91
      %s95 = sphi 0, %s94
      %s111 = sphi 0, %s95
      %s115 = sphi 0, %s115
      %s117 = sphi 0, %s115
      %s118 = sphi 0, %s117
      %s132 = sphi 0, %s118
      %s136 = sphi 0, %s136
      %s138 = sphi 0, %s136
      %s139 = sphi 0, %s138
      %s153 = sphi 0, %s139
      %s157 = sphi 0, %s157
      %s159 = sphi 0, %s157
      %s160 = sphi 0, %s159
      %s174 = sphi 0, %s160
      %s178 = sphi 0, %s178
      %s180 = sphi 0, %s178
      %s181 = sphi 0, %s180
      %s195 = sphi 0, %s181
      %s199 = sphi 0, %s199
      %s201 = sphi 0, %s199
      %s202 = sphi 0, %s201
      %s216 = sphi 0, %s202
      %s220 = sphi 0, %s220
      %s222 = sphi 0, %s220
      %s223 = sphi 0, %s222
      %s237 = sphi 0, %s223
      %s241 = sphi 0, %s241
      %s243 = sphi 0, %s241
      %s244 = sphi 0, %s243
      %s258 = sphi 0, %s244
      %s262 = sphi 0, %s262
      %s264 = sphi 0, %s262
      %s265 = sphi 0, %s264
      %s279 = sphi 0, %s265
      %s285 = sphi 0, %s287
      %s288 = sphi 0, %s285
      %s289 = sphi 0, %s288
      %s305 = sphi 0, %s289
    $region4: #{tpu_custom_call.1} parent=1 // loop_header_branch
      %32 = sbr.rel (%p30) target = $region8
    $region5: #{tpu_custom_call.1} parent=1 // loop_body
      %s34 = ssub.s32 %s29, 1
      %s35 = ssub.s32 %s29, 2
      %s36 = sadd.s32 %s29, 1
      %s37 = ssub.s32 %s29, %s36
      %p38 = scmp.eq.s32.totalorder %s37, 0
      %s40 = sadd.s32 %s39, 1
      %s41 = scalar_select %p38, %s39, %s40
      %p44 = pneg %p38
      %p45 = scmp.eq.s32.totalorder %s29, 1
      %p46 = por %p44, %p45
      %p47 = scmp.ne.s32.totalorder %s39, %s42
      %p48 = scmp.eq.s32.totalorder %s29, 0
      %p49 = por %p47, %p48
      %p50 = scmp.ne.s32.totalorder %s39, %s42
      %p51 = scmp.eq.s32.totalorder %s34, 1
      %p52 = por %p50, %p51
      %p53 = scmp.ne.s32.totalorder %s42, %s43
      %p54 = scmp.eq.s32.totalorder %s34, 0
      %p55 = por %p53, %p54
      %p56 = scmp.ne.s32.totalorder %s42, %s43
      %p57 = scmp.eq.s32.totalorder %s35, 1
      %p58 = por %p56, %p57
      %p60 = scmp.ne.s32.totalorder %s43, %s59
      %p61 = scmp.eq.s32.totalorder %s35, 0
      %p62 = por %p60, %p61
      %s63 = ssub.s32 %s29, %s36
      %p64 = scmp.eq.s32.totalorder %s63, 0
      %s66 = sadd.s32 %s65, 1
      %s67 = scalar_select %p64, %s65, %s66
      %p70 = pneg %p64
      %p71 = scmp.eq.s32.totalorder %s29, 1
      %p72 = por %p70, %p71
      %p73 = scmp.ne.s32.totalorder %s65, %s68
      %p74 = scmp.eq.s32.totalorder %s29, 0
      %p75 = por %p73, %p74
      %p76 = scmp.ne.s32.totalorder %s65, %s68
      %p77 = scmp.eq.s32.totalorder %s34, 1
      %p78 = por %p76, %p77
      %p79 = scmp.ne.s32.totalorder %s68, %s69
      %p80 = scmp.eq.s32.totalorder %s34, 0
      %p81 = por %p79, %p80
      %p82 = scmp.ne.s32.totalorder %s68, %s69
      %p83 = scmp.eq.s32.totalorder %s35, 1
      %p84 = por %p82, %p83
      %p86 = scmp.ne.s32.totalorder %s69, %s85
      %p87 = scmp.eq.s32.totalorder %s35, 0
      %p88 = por %p86, %p87
      %s89 = ssub.s32 %s29, %s36
      %p90 = scmp.eq.s32.totalorder %s89, 0
      %s92 = sadd.s32 %s91, 1
      %s93 = scalar_select %p90, %s91, %s92
      %p96 = pneg %p90
      %p97 = scmp.eq.s32.totalorder %s29, 1
      %p98 = por %p96, %p97
      %p99 = scmp.ne.s32.totalorder %s91, %s94
      %p100 = scmp.eq.s32.totalorder %s29, 0
      %p101 = por %p99, %p100
      %p102 = scmp.ne.s32.totalorder %s91, %s94
      %p103 = scmp.eq.s32.totalorder %s34, 1
      %p104 = por %p102, %p103
      %p105 = scmp.ne.s32.totalorder %s94, %s95
      %p106 = scmp.eq.s32.totalorder %s34, 0
      %p107 = por %p105, %p106
      %p108 = scmp.ne.s32.totalorder %s94, %s95
      %p109 = scmp.eq.s32.totalorder %s35, 1
      %p110 = por %p108, %p109
      %p112 = scmp.ne.s32.totalorder %s95, %s111
      %p113 = scmp.eq.s32.totalorder %s35, 0
      %p114 = por %p112, %p113
      %s116 = sadd.s32 %s115, 1
      %p119 = scmp.eq.s32.totalorder %s29, 1
      %p120 = scmp.ne.s32.totalorder %s115, %s117
      %p121 = scmp.eq.s32.totalorder %s29, 0
      %p122 = por %p120, %p121
      %p123 = scmp.ne.s32.totalorder %s115, %s117
      %p124 = scmp.eq.s32.totalorder %s34, 1
      %p125 = por %p123, %p124
      %p126 = scmp.ne.s32.totalorder %s117, %s118
      %p127 = scmp.eq.s32.totalorder %s34, 0
      %p128 = por %p126, %p127
      %p129 = scmp.ne.s32.totalorder %s117, %s118
      %p130 = scmp.eq.s32.totalorder %s35, 1
      %p131 = por %p129, %p130
      %p133 = scmp.ne.s32.totalorder %s118, %s132
      %p134 = scmp.eq.s32.totalorder %s35, 0
      %p135 = por %p133, %p134
      %s137 = sadd.s32 %s136, 1
      %p140 = scmp.eq.s32.totalorder %s29, 1
      %p141 = scmp.ne.s32.totalorder %s136, %s138
      %p142 = scmp.eq.s32.totalorder %s29, 0
      %p143 = por %p141, %p142
      %p144 = scmp.ne.s32.totalorder %s136, %s138
      %p145 = scmp.eq.s32.totalorder %s34, 1
      %p146 = por %p144, %p145
      %p147 = scmp.ne.s32.totalorder %s138, %s139
      %p148 = scmp.eq.s32.totalorder %s34, 0
      %p149 = por %p147, %p148
      %p150 = scmp.ne.s32.totalorder %s138, %s139
      %p151 = scmp.eq.s32.totalorder %s35, 1
      %p152 = por %p150, %p151
      %p154 = scmp.ne.s32.totalorder %s139, %s153
      %p155 = scmp.eq.s32.totalorder %s35, 0
      %p156 = por %p154, %p155
      %s158 = sadd.s32 %s157, 1
      %p161 = scmp.eq.s32.totalorder %s29, 1
      %p162 = scmp.ne.s32.totalorder %s157, %s159
      %p163 = scmp.eq.s32.totalorder %s29, 0
      %p164 = por %p162, %p163
      %p165 = scmp.ne.s32.totalorder %s157, %s159
      %p166 = scmp.eq.s32.totalorder %s34, 1
      %p167 = por %p165, %p166
      %p168 = scmp.ne.s32.totalorder %s159, %s160
      %p169 = scmp.eq.s32.totalorder %s34, 0
      %p170 = por %p168, %p169
      %p171 = scmp.ne.s32.totalorder %s159, %s160
      %p172 = scmp.eq.s32.totalorder %s35, 1
      %p173 = por %p171, %p172
      %p175 = scmp.ne.s32.totalorder %s160, %s174
      %p176 = scmp.eq.s32.totalorder %s35, 0
      %p177 = por %p175, %p176
      %s179 = sadd.s32 %s178, 1
      %p182 = scmp.eq.s32.totalorder %s29, 1
      %p183 = scmp.ne.s32.totalorder %s178, %s180
      %p184 = scmp.eq.s32.totalorder %s29, 0
      %p185 = por %p183, %p184
      %p186 = scmp.ne.s32.totalorder %s178, %s180
      %p187 = scmp.eq.s32.totalorder %s34, 1
      %p188 = por %p186, %p187
      %p189 = scmp.ne.s32.totalorder %s180, %s181
      %p190 = scmp.eq.s32.totalorder %s34, 0
      %p191 = por %p189, %p190
      %p192 = scmp.ne.s32.totalorder %s180, %s181
      %p193 = scmp.eq.s32.totalorder %s35, 1
      %p194 = por %p192, %p193
      %p196 = scmp.ne.s32.totalorder %s181, %s195
      %p197 = scmp.eq.s32.totalorder %s35, 0
      %p198 = por %p196, %p197
      %s200 = sadd.s32 %s199, 1
      %p203 = scmp.eq.s32.totalorder %s29, 1
      %p204 = scmp.ne.s32.totalorder %s199, %s201
      %p205 = scmp.eq.s32.totalorder %s29, 0
      %p206 = por %p204, %p205
      %p207 = scmp.ne.s32.totalorder %s199, %s201
      %p208 = scmp.eq.s32.totalorder %s34, 1
      %p209 = por %p207, %p208
      %p210 = scmp.ne.s32.totalorder %s201, %s202
      %p211 = scmp.eq.s32.totalorder %s34, 0
      %p212 = por %p210, %p211
      %p213 = scmp.ne.s32.totalorder %s201, %s202
      %p214 = scmp.eq.s32.totalorder %s35, 1
      %p215 = por %p213, %p214
      %p217 = scmp.ne.s32.totalorder %s202, %s216
      %p218 = scmp.eq.s32.totalorder %s35, 0
      %p219 = por %p217, %p218
      %s221 = sadd.s32 %s220, 1
      %p224 = scmp.eq.s32.totalorder %s29, 1
      %p225 = scmp.ne.s32.totalorder %s220, %s222
      %p226 = scmp.eq.s32.totalorder %s29, 0
      %p227 = por %p225, %p226
      %p228 = scmp.ne.s32.totalorder %s220, %s222
      %p229 = scmp.eq.s32.totalorder %s34, 1
      %p230 = por %p228, %p229
      %p231 = scmp.ne.s32.totalorder %s222, %s223
      %p232 = scmp.eq.s32.totalorder %s34, 0
      %p233 = por %p231, %p232
      %p234 = scmp.ne.s32.totalorder %s222, %s223
      %p235 = scmp.eq.s32.totalorder %s35, 1
      %p236 = por %p234, %p235
      %p238 = scmp.ne.s32.totalorder %s223, %s237
      %p239 = scmp.eq.s32.totalorder %s35, 0
      %p240 = por %p238, %p239
      %s242 = sadd.s32 %s241, 1
      %p245 = scmp.eq.s32.totalorder %s29, 1
      %p246 = scmp.ne.s32.totalorder %s241, %s243
      %p247 = scmp.eq.s32.totalorder %s29, 0
      %p248 = por %p246, %p247
      %p249 = scmp.ne.s32.totalorder %s241, %s243
      %p250 = scmp.eq.s32.totalorder %s34, 1
      %p251 = por %p249, %p250
      %p252 = scmp.ne.s32.totalorder %s243, %s244
      %p253 = scmp.eq.s32.totalorder %s34, 0
      %p254 = por %p252, %p253
      %p255 = scmp.ne.s32.totalorder %s243, %s244
      %p256 = scmp.eq.s32.totalorder %s35, 1
      %p257 = por %p255, %p256
      %p259 = scmp.ne.s32.totalorder %s244, %s258
      %p260 = scmp.eq.s32.totalorder %s35, 0
      %p261 = por %p259, %p260
      %s263 = sadd.s32 %s262, 1
      %p266 = scmp.eq.s32.totalorder %s29, 1
      %p267 = scmp.ne.s32.totalorder %s262, %s264
      %p268 = scmp.eq.s32.totalorder %s29, 0
      %p269 = por %p267, %p268
      %p270 = scmp.ne.s32.totalorder %s262, %s264
      %p271 = scmp.eq.s32.totalorder %s34, 1
      %p272 = por %p270, %p271
      %p273 = scmp.ne.s32.totalorder %s264, %s265
      %p274 = scmp.eq.s32.totalorder %s34, 0
      %p275 = por %p273, %p274
      %p276 = scmp.ne.s32.totalorder %s264, %s265
      %p277 = scmp.eq.s32.totalorder %s35, 1
      %p278 = por %p276, %p277
      %p280 = scmp.ne.s32.totalorder %s265, %s279
      %p281 = scmp.eq.s32.totalorder %s35, 0
      %p282 = por %p280, %p281
      %s283 = ssub.s32 %s29, %s36
      %p284 = scmp.eq.s32.totalorder %s283, 0
      %s286 = sadd.s32 %s285, 1
      %s287 = scalar_select %p284, %s285, %s286
      %p290 = pneg %p284
      %p291 = scmp.eq.s32.totalorder %s29, 1
      %p292 = por %p290, %p291
      %p293 = scmp.ne.s32.totalorder %s285, %s288
      %p294 = scmp.eq.s32.totalorder %s29, 0
      %p295 = por %p293, %p294
      %p296 = scmp.ne.s32.totalorder %s285, %s288
      %p297 = scmp.eq.s32.totalorder %s34, 1
      %p298 = por %p296, %p297
      %p299 = scmp.ne.s32.totalorder %s288, %s289
      %p300 = scmp.eq.s32.totalorder %s34, 0
      %p301 = por %p299, %p300
      %p302 = scmp.ne.s32.totalorder %s288, %s289
      %p303 = scmp.eq.s32.totalorder %s35, 1
      %p304 = por %p302, %p303
      %p306 = scmp.ne.s32.totalorder %s289, %s305
      %p307 = scmp.eq.s32.totalorder %s35, 0
      %p308 = por %p306, %p307
      %p309 = scmp.le.s32.totalorder 1, %s29
      %p310 = scmp.lt.s32.totalorder %s29, 3
      %p311 = pnand %p309, %p310
      %p312 = pneg %p311
      // Predicated region
      $region9: #{tpu_custom_call.1} parent=5 // pred_check
        _
      $region10: #{tpu_custom_call.1} parent=5 // pred_check_branch
        %314 = sbr.rel (%p311) target = $region12
      $region11: #{tpu_custom_call.1} parent=5 // pred_region
        %s315 = ssub.s32 %s29, 1
        // Predicated region
        $region13: #{tpu_custom_call.1} parent=11 // pred_check
          %p316 = pneg %p128
        $region14: #{tpu_custom_call.1} parent=11 // pred_check_branch
          %318 = sbr.rel (%p316) target = $region16
        $region15: #{tpu_custom_call.1} parent=11 // pred_region
          %s320 = ssub.s32 256, 256
          %321 = vsyncadd [#allocation9], %s320
          %s322 = sshll.u32 [#allocation8], 4
          %s323 = int_to_ptr.vmem [resolvable:$true] %s322
          %328 = dma.hbm_to_vmem [thread:$0]  %s3, 256, %s323, [#allocation9], 64, 64, 4
        $region16: #{tpu_custom_call.1} parent=11 // pred_fallthru
          _
        // Predicated region
        $region17: #{tpu_custom_call.1} parent=11 // pred_check
          %p329 = pneg %p149
        $region18: #{tpu_custom_call.1} parent=11 // pred_check_branch
          %331 = sbr.rel (%p329) target = $region20
        $region19: #{tpu_custom_call.1} parent=11 // pred_region
          %s333 = ssub.s32 16, 16
          %334 = vsyncadd [#allocation9], %s333
          %s336 = sshll.u32 [#allocation10], 4
          %s337 = int_to_ptr.vmem [resolvable:$true] %s336
          %339 = dma.hbm_to_vmem [thread:$0]  %s4, 16, %s337, [#allocation9]
        $region20: #{tpu_custom_call.1} parent=11 // pred_fallthru
          _
        // Predicated region
        $region21: #{tpu_custom_call.1} parent=11 // pred_check
          %p340 = pneg %p170
        $region22: #{tpu_custom_call.1} parent=11 // pred_check_branch
          %342 = sbr.rel (%p340) target = $region24
        $region23: #{tpu_custom_call.1} parent=11 // pred_region
          %s344 = ssub.s32 256, 256
          %345 = vsyncadd [#allocation12], %s344
          %s346 = sshll.u32 [#allocation11], 4
          %s347 = int_to_ptr.vmem [resolvable:$true] %s346
          %352 = dma.hbm_to_vmem [thread:$0]  %s5, 256, %s347, [#allocation12], 64, 64, 4
        $region24: #{tpu_custom_call.1} parent=11 // pred_fallthru
          _
        // Predicated region
        $region25: #{tpu_custom_call.1} parent=11 // pred_check
          %p353 = pneg %p191
        $region26: #{tpu_custom_call.1} parent=11 // pred_check_branch
          %355 = sbr.rel (%p353) target = $region28
        $region27: #{tpu_custom_call.1} parent=11 // pred_region
          %s357 = ssub.s32 16, 16
          %358 = vsyncadd [#allocation12], %s357
          %s360 = sshll.u32 [#allocation13], 4
          %s361 = int_to_ptr.vmem [resolvable:$true] %s360
          %363 = dma.hbm_to_vmem [thread:$0]  %s6, 16, %s361, [#allocation12]
        $region28: #{tpu_custom_call.1} parent=11 // pred_fallthru
          _
        // Predicated region
        $region29: #{tpu_custom_call.1} parent=11 // pred_check
          %p364 = pneg %p212
        $region30: #{tpu_custom_call.1} parent=11 // pred_check_branch
          %366 = sbr.rel (%p364) target = $region32
        $region31: #{tpu_custom_call.1} parent=11 // pred_region
          %s368 = ssub.s32 256, 256
          %369 = vsyncadd [#allocation15], %s368
          %s370 = sshll.u32 [#allocation14], 4
          %s371 = int_to_ptr.vmem [resolvable:$true] %s370
          %376 = dma.hbm_to_vmem [thread:$0]  %s7, 256, %s371, [#allocation15], 64, 64, 4
        $region32: #{tpu_custom_call.1} parent=11 // pred_fallthru
          _
        // Predicated region
        $region33: #{tpu_custom_call.1} parent=11 // pred_check
          %p377 = pneg %p233
        $region34: #{tpu_custom_call.1} parent=11 // pred_check_branch
          %379 = sbr.rel (%p377) target = $region36
        $region35: #{tpu_custom_call.1} parent=11 // pred_region
          %s381 = ssub.s32 16, 16
          %382 = vsyncadd [#allocation15], %s381
          %s384 = sshll.u32 [#allocation16], 4
          %s385 = int_to_ptr.vmem [resolvable:$true] %s384
          %387 = dma.hbm_to_vmem [thread:$0]  %s8, 16, %s385, [#allocation15]
        $region36: #{tpu_custom_call.1} parent=11 // pred_fallthru
          _
        // Predicated region
        $region37: #{tpu_custom_call.1} parent=11 // pred_check
          %p388 = pneg %p254
        $region38: #{tpu_custom_call.1} parent=11 // pred_check_branch
          %390 = sbr.rel (%p388) target = $region40
        $region39: #{tpu_custom_call.1} parent=11 // pred_region
          _
        $region40: #{tpu_custom_call.1} parent=11 // pred_fallthru
          _
        // Predicated region
        $region41: #{tpu_custom_call.1} parent=11 // pred_check
          %p391 = pneg %p275
        $region42: #{tpu_custom_call.1} parent=11 // pred_check_branch
          %393 = sbr.rel (%p391) target = $region44
        $region43: #{tpu_custom_call.1} parent=11 // pred_region
          _
        $region44: #{tpu_custom_call.1} parent=11 // pred_fallthru
          _
      $region12: #{tpu_custom_call.1} parent=5 // pred_fallthru
        _
      %p394 = scmp.lt.s32.totalorder %s29, 2
      // Predicated region
      $region45: #{tpu_custom_call.1} parent=5 // pred_check
        %p395 = pneg %p394
      $region46: #{tpu_custom_call.1} parent=5 // pred_check_branch
        %397 = sbr.rel (%p395) target = $region48
      $region47: #{tpu_custom_call.1} parent=5 // pred_region
        // Predicated region
        $region49: #{tpu_custom_call.1} parent=47 // pred_check
          %p398 = pneg %p49
        $region50: #{tpu_custom_call.1} parent=47 // pred_check_branch
          %400 = sbr.rel (%p398) target = $region52
        $region51: #{tpu_custom_call.1} parent=47 // pred_region
          %s401 = sand.u32 %s39, 1
          %s402 = scalar_lea.sflag [#allocation3], %s401
          %s403 = sand.u32 %s39, 1
          %s404 = smul.addr %s403, 4
          %s405 = scalar_lea.vmem [#allocation2], %s404
          %s407 = ssub.s32 64, 64
          %408 = vsyncadd %s402, %s407
          %s409 = smul.addr %s29, 64
          %s410 = scalar_lea.hbm %s0, %s409
          %s412 = sshll.u32 %s405, 4
          %s413 = int_to_ptr.vmem [resolvable:$true] %s412
          %415 = dma.hbm_to_vmem [thread:$0]  %s410, 64, %s413, %s402
        $region52: #{tpu_custom_call.1} parent=47 // pred_fallthru
          _
        // Predicated region
        $region53: #{tpu_custom_call.1} parent=47 // pred_check
          %p416 = pneg %p75
        $region54: #{tpu_custom_call.1} parent=47 // pred_check_branch
          %418 = sbr.rel (%p416) target = $region56
        $region55: #{tpu_custom_call.1} parent=47 // pred_region
          %s419 = sand.u32 %s29, 1
          %s420 = scalar_lea.sflag [#allocation6], %s419
          %s421 = sand.u32 %s65, 1
          %s422 = smul.addr %s421, 4
          %s423 = scalar_lea.vmem [#allocation5], %s422
          %s425 = ssub.s32 64, 64
          %426 = vsyncadd %s420, %s425
          %s427 = smul.addr %s29, 64
          %s428 = scalar_lea.hbm %s1, %s427
          %s430 = sshll.u32 %s423, 4
          %s431 = int_to_ptr.vmem [resolvable:$true] %s430
          %433 = dma.hbm_to_vmem [thread:$0]  %s428, 64, %s431, %s420
        $region56: #{tpu_custom_call.1} parent=47 // pred_fallthru
          _
        // Predicated region
        $region57: #{tpu_custom_call.1} parent=47 // pred_check
          %p434 = pneg %p101
        $region58: #{tpu_custom_call.1} parent=47 // pred_check_branch
          %436 = sbr.rel (%p434) target = $region60
        $region59: #{tpu_custom_call.1} parent=47 // pred_region
          %s437 = sand.u32 %s29, 1
          %s438 = scalar_lea.sflag [#allocation6], %s437
          %s439 = sand.u32 %s91, 1
          %s440 = smul.addr %s439, 4
          %s441 = scalar_lea.vmem [#allocation7], %s440
          %s443 = ssub.s32 64, 64
          %444 = vsyncadd %s438, %s443
          %s445 = smul.addr %s29, 64
          %s446 = scalar_lea.hbm %s2, %s445
          %s448 = sshll.u32 %s441, 4
          %s449 = int_to_ptr.vmem [resolvable:$true] %s448
          %451 = dma.hbm_to_vmem [thread:$0]  %s446, 64, %s449, %s438
        $region60: #{tpu_custom_call.1} parent=47 // pred_fallthru
          _
      $region48: #{tpu_custom_call.1} parent=5 // pred_fallthru
        _
      %p452 = scmp.le.s32.totalorder 1, %s29
      %p453 = scmp.lt.s32.totalorder %s29, 3
      %p454 = pnand %p452, %p453
      %p455 = pneg %p454
      // Predicated region
      $region61: #{tpu_custom_call.1} parent=5 // pred_check
        _
      $region62: #{tpu_custom_call.1} parent=5 // pred_check_branch
        %457 = sbr.rel (%p454) target = $region64
      $region63: #{tpu_custom_call.1} parent=5 // pred_region
        %s458 = ssub.s32 %s29, 1
        %s459 = sand.u32 %s42, 1
        %s460 = scalar_lea.sflag [#allocation3], %s459
        %s461 = sand.u32 %s42, 1
        %s462 = smul.addr %s461, 4
        %s463 = scalar_lea.vmem [#allocation2], %s462
        // Predicated region
        $region65: #{tpu_custom_call.1} parent=63 // pred_check
          %p464 = pneg %p55
        $region66: #{tpu_custom_call.1} parent=63 // pred_check_branch
          %466 = sbr.rel (%p464) target = $region68
        $region67: #{tpu_custom_call.1} parent=63 // pred_region
          %467 = dma.done %s460, 64
        $region68: #{tpu_custom_call.1} parent=63 // pred_fallthru
          _
        %s468 = sand.u32 %s34, 1
        %s469 = scalar_lea.sflag [#allocation6], %s468
        %s470 = sand.u32 %s68, 1
        %s471 = smul.addr %s470, 4
        %s472 = scalar_lea.vmem [#allocation5], %s471
        // Predicated region
        $region69: #{tpu_custom_call.1} parent=63 // pred_check
          %p473 = pneg %p81
        $region70: #{tpu_custom_call.1} parent=63 // pred_check_branch
          %475 = sbr.rel (%p473) target = $region72
        $region71: #{tpu_custom_call.1} parent=63 // pred_region
          %476 = dma.done %s469, 64
        $region72: #{tpu_custom_call.1} parent=63 // pred_fallthru
          _
        %s477 = sand.u32 %s34, 1
        %s478 = scalar_lea.sflag [#allocation6], %s477
        %s479 = sand.u32 %s94, 1
        %s480 = smul.addr %s479, 4
        %s481 = scalar_lea.vmem [#allocation7], %s480
        // Predicated region
        $region73: #{tpu_custom_call.1} parent=63 // pred_check
          %p482 = pneg %p107
        $region74: #{tpu_custom_call.1} parent=63 // pred_check_branch
          %484 = sbr.rel (%p482) target = $region76
        $region75: #{tpu_custom_call.1} parent=63 // pred_region
          %485 = dma.done %s478, 64
        $region76: #{tpu_custom_call.1} parent=63 // pred_fallthru
          _
        // Predicated region
        $region77: #{tpu_custom_call.1} parent=63 // pred_check
          %p486 = pneg %p128
        $region78: #{tpu_custom_call.1} parent=63 // pred_check_branch
          %488 = sbr.rel (%p486) target = $region80
        $region79: #{tpu_custom_call.1} parent=63 // pred_region
          %489 = dma.done [#allocation9], 256
        $region80: #{tpu_custom_call.1} parent=63 // pred_fallthru
          _
        // Predicated region
        $region81: #{tpu_custom_call.1} parent=63 // pred_check
          %p490 = pneg %p149
        $region82: #{tpu_custom_call.1} parent=63 // pred_check_branch
          %492 = sbr.rel (%p490) target = $region84
        $region83: #{tpu_custom_call.1} parent=63 // pred_region
          %493 = dma.done [#allocation9], 16
        $region84: #{tpu_custom_call.1} parent=63 // pred_fallthru
          _
        // Predicated region
        $region85: #{tpu_custom_call.1} parent=63 // pred_check
          %p494 = pneg %p170
        $region86: #{tpu_custom_call.1} parent=63 // pred_check_branch
          %496 = sbr.rel (%p494) target = $region88
        $region87: #{tpu_custom_call.1} parent=63 // pred_region
          %497 = dma.done [#allocation12], 256
        $region88: #{tpu_custom_call.1} parent=63 // pred_fallthru
          _
        // Predicated region
        $region89: #{tpu_custom_call.1} parent=63 // pred_check
          %p498 = pneg %p191
        $region90: #{tpu_custom_call.1} parent=63 // pred_check_branch
          %500 = sbr.rel (%p498) target = $region92
        $region91: #{tpu_custom_call.1} parent=63 // pred_region
          %501 = dma.done [#allocation12], 16
        $region92: #{tpu_custom_call.1} parent=63 // pred_fallthru
          _
        // Predicated region
        $region93: #{tpu_custom_call.1} parent=63 // pred_check
          %p502 = pneg %p212
        $region94: #{tpu_custom_call.1} parent=63 // pred_check_branch
          %504 = sbr.rel (%p502) target = $region96
        $region95: #{tpu_custom_call.1} parent=63 // pred_region
          %505 = dma.done [#allocation15], 256
        $region96: #{tpu_custom_call.1} parent=63 // pred_fallthru
          _
        // Predicated region
        $region97: #{tpu_custom_call.1} parent=63 // pred_check
          %p506 = pneg %p233
        $region98: #{tpu_custom_call.1} parent=63 // pred_check_branch
          %508 = sbr.rel (%p506) target = $region100
        $region99: #{tpu_custom_call.1} parent=63 // pred_region
          %509 = dma.done [#allocation15], 16
        $region100: #{tpu_custom_call.1} parent=63 // pred_fallthru
          _
        %s510 = sand.u32 %s42, 1
        %s511 = scalar_lea.sflag [#allocation3], %s510
        %s512 = sand.u32 %s42, 1
        %s513 = smul.addr %s512, 4
        %s514 = scalar_lea.vmem [#allocation2], %s513
        %p515 = pneg %p55
        %p516 = pneg %p52
        %s517 = sand.u32 %s34, 1
        %s518 = scalar_lea.sflag [#allocation6], %s517
        %s519 = sand.u32 %s68, 1
        %s520 = smul.addr %s519, 4
        %s521 = scalar_lea.vmem [#allocation5], %s520
        %p522 = pneg %p81
        %p523 = pneg %p78
        %s524 = sand.u32 %s34, 1
        %s525 = scalar_lea.sflag [#allocation6], %s524
        %s526 = sand.u32 %s94, 1
        %s527 = smul.addr %s526, 4
        %s528 = scalar_lea.vmem [#allocation7], %s527
        %p529 = pneg %p107
        %p530 = pneg %p104
        %p531 = pneg %p128
        %p532 = pneg %p125
        %p533 = pneg %p149
        %p534 = pneg %p146
        %p535 = pneg %p170
        %p536 = pneg %p167
        %p537 = pneg %p191
        %p538 = pneg %p188
        %p539 = pneg %p212
        %p540 = pneg %p209
        %p541 = pneg %p233
        %p542 = pneg %p230
        %p543 = pneg %p254
        %p544 = pneg %p251
        %p545 = pneg %p275
        %p546 = pneg %p272
        %p547 = pneg %p301
        %p548 = pneg %p298
        %s549 = sand.u32 %s288, 1
        %s550 = scalar_lea.sflag [#allocation4], %s549
        %s551 = sand.u32 %s288, 1
        %s552 = smul.addr %s551, 8
        %s553 = scalar_lea.vmem [#allocation17], %s552
        %v555 = vld [vmem:[%s463] sm:$0xf]
        %v556 = vld [vmem:[%s472] sm:$0xf]
        %v557 = vld [vmem:[%s481] sm:$0xf]
        %v558 = vld [vmem:[#allocation8] sm:$0xf]
        %v559 = vld [vmem:[#allocation8 + $0x4] sm:$0xf]
        %v560 = vld [vmem:[#allocation8 + $0x8] sm:$0xf]
        %v561 = vld [vmem:[#allocation8 + $0xc] sm:$0xf]
        %v562 = vld [vmem:[#allocation10] sm:$0x1]
        %v564 = vlaneseq
        %v565 = vshrl.u32 %v564, 7
        %v566 = vsub.s32 0, %v565
        %v567 = vrot.slane %v562, %v566
        %v573 = vunpack.c.l.b16 %v558
        %v574 = vunpack.c.l.b16 %v559
        %v575 = vunpack.c.l.b16 %v560
        %v576 = vunpack.c.l.b16 %v561
        %v577 = vpack.c.b16 %v574, %v573
        %v578 = vpack.c.b16 %v576, %v575
        %vm581 = vcmask 261120
        %v583 = vsel %vm581, %v555, 0
        %585 = vmatprep.subr.bf16.mxu0 0
        %586 = vmatpush1.bf16.msra.mxu0 0
        %587 = vmatprep.subr.bf16.mxu0 0
        %588 = vmatpush1.bf16.msra.mxu0 0
        %589 = vmatprep.subr.bf16.mxu0 0
        %590 = vmatpush1.bf16.msra.mxu0 0
        %591 = vmatprep.subr.bf16.mxu0 0
        %592 = vmatpush1.bf16.msra.mxu0 0
        %593 = vmatprep.subr.bf16.mxu0 0
        %594 = vmatpush1.bf16.msra.mxu0 0
        %595 = vmatprep.subr.bf16.mxu0 0
        %596 = vmatpush1.bf16.msra.mxu0 0
        %597 = vmatprep.subr.bf16.mxu0 0
        %598 = vmatpush1.bf16.msra.mxu0 %v578
        %599 = vmatprep.subr.bf16.mxu0 0
        %600 = vmatpush1.bf16.msra.mxu0 %v577
        %601 = vmatprep.subr.bf16.mxu0 0
        %602 = vmatpush2.bf16.msra.mxu0 0
        %603 = vmatprep.subr.bf16.mxu0 0
        %604 = vmatpush2.bf16.msra.mxu0 0
        %605 = vmatprep.subr.bf16.mxu0 0
        %606 = vmatpush2.bf16.msra.mxu0 0
        %607 = vmatprep.subr.bf16.mxu0 0
        %608 = vmatpush2.bf16.msra.mxu0 0
        %609 = vmatprep.subr.bf16.mxu0 0
        %610 = vmatpush2.bf16.msra.mxu0 0
        %611 = vmatprep.subr.bf16.mxu0 0
        %612 = vmatpush2.bf16.msra.mxu0 0
        %613 = vmatprep.subr.bf16.mxu0 0
        %614 = vmatpush2.bf16.msra.mxu0 0
        %615 = vmatprep.subr.bf16.mxu0 0
        %616 = vmatpush2.bf16.msra.mxu0 0
        %617 = vmatprep.mubr.bf16.mxu0 0
        %618 = vmatmul.mubr.bf16.gmra.mxu0 %v583
        %v619 = vpop.f32.mrf.mxu0
        %v620 = vadd.f32 %v567, %v619
        %v621 = vpop.f32.mrf.mxu0
        %v622 = vpop.f32.mrf.mxu0
        %v623 = vpop.f32.mrf.mxu0
        %624 = vdwg.mxu0
        %v625 = vld [vmem:[#allocation11] sm:$0xf]
        %v626 = vld [vmem:[#allocation11 + $0x4] sm:$0xf]
        %v627 = vld [vmem:[#allocation11 + $0x8] sm:$0xf]
        %v628 = vld [vmem:[#allocation11 + $0xc] sm:$0xf]
        %v629 = vld [vmem:[#allocation13] sm:$0x1]
        %v631 = vlaneseq
        %v632 = vshrl.u32 %v631, 7
        %v633 = vsub.s32 0, %v632
        %v634 = vrot.slane %v629, %v633
        %v640 = vunpack.c.l.b16 %v625
        %v641 = vunpack.c.l.b16 %v626
        %v642 = vunpack.c.l.b16 %v627
        %v643 = vunpack.c.l.b16 %v628
        %v644 = vpack.c.b16 %v641, %v640
        %v645 = vpack.c.b16 %v643, %v642
        %v649 = vsel %vm581, %v556, 0
        %651 = vmatprep.subr.bf16.mxu0 0
        %652 = vmatpush1.bf16.msra.mxu0 0
        %653 = vmatprep.subr.bf16.mxu0 0
        %654 = vmatpush1.bf16.msra.mxu0 0
        %655 = vmatprep.subr.bf16.mxu0 0
        %656 = vmatpush1.bf16.msra.mxu0 0
        %657 = vmatprep.subr.bf16.mxu0 0
        %658 = vmatpush1.bf16.msra.mxu0 0
        %659 = vmatprep.subr.bf16.mxu0 0
        %660 = vmatpush1.bf16.msra.mxu0 0
        %661 = vmatprep.subr.bf16.mxu0 0
        %662 = vmatpush1.bf16.msra.mxu0 0
        %663 = vmatprep.subr.bf16.mxu0 0
        %664 = vmatpush1.bf16.msra.mxu0 %v645
        %665 = vmatprep.subr.bf16.mxu0 0
        %666 = vmatpush1.bf16.msra.mxu0 %v644
        %667 = vmatprep.subr.bf16.mxu0 0
        %668 = vmatpush2.bf16.msra.mxu0 0
        %669 = vmatprep.subr.bf16.mxu0 0
        %670 = vmatpush2.bf16.msra.mxu0 0
        %671 = vmatprep.subr.bf16.mxu0 0
        %672 = vmatpush2.bf16.msra.mxu0 0
        %673 = vmatprep.subr.bf16.mxu0 0
        %674 = vmatpush2.bf16.msra.mxu0 0
        %675 = vmatprep.subr.bf16.mxu0 0
        %676 = vmatpush2.bf16.msra.mxu0 0
        %677 = vmatprep.subr.bf16.mxu0 0
        %678 = vmatpush2.bf16.msra.mxu0 0
        %679 = vmatprep.subr.bf16.mxu0 0
        %680 = vmatpush2.bf16.msra.mxu0 0
        %681 = vmatprep.subr.bf16.mxu0 0
        %682 = vmatpush2.bf16.msra.mxu0 0
        %683 = vmatprep.mubr.bf16.mxu0 0
        %684 = vmatmul.mubr.bf16.gmra.mxu0 %v649
        %v685 = vpop.f32.mrf.mxu0
        %v686 = vadd.f32 %v634, %v685
        %v687 = vpop.f32.mrf.mxu0
        %v688 = vpop.f32.mrf.mxu0
        %v689 = vpop.f32.mrf.mxu0
        %690 = vdwg.mxu0
        %v691 = vld [vmem:[#allocation14] sm:$0xf]
        %v692 = vld [vmem:[#allocation14 + $0x4] sm:$0xf]
        %v693 = vld [vmem:[#allocation14 + $0x8] sm:$0xf]
        %v694 = vld [vmem:[#allocation14 + $0xc] sm:$0xf]
        %v695 = vld [vmem:[#allocation16] sm:$0x1]
        %v697 = vlaneseq
        %v698 = vshrl.u32 %v697, 7
        %v699 = vsub.s32 0, %v698
        %v700 = vrot.slane %v695, %v699
        %v706 = vunpack.c.l.b16 %v691
        %v707 = vunpack.c.l.b16 %v692
        %v708 = vunpack.c.l.b16 %v693
        %v709 = vunpack.c.l.b16 %v694
        %v710 = vpack.c.b16 %v707, %v706
        %v711 = vpack.c.b16 %v709, %v708
        %v715 = vsel %vm581, %v557, 0
        %717 = vmatprep.subr.bf16.mxu0 0
        %718 = vmatpush1.bf16.msra.mxu0 0
        %719 = vmatprep.subr.bf16.mxu0 0
        %720 = vmatpush1.bf16.msra.mxu0 0
        %721 = vmatprep.subr.bf16.mxu0 0
        %722 = vmatpush1.bf16.msra.mxu0 0
        %723 = vmatprep.subr.bf16.mxu0 0
        %724 = vmatpush1.bf16.msra.mxu0 0
        %725 = vmatprep.subr.bf16.mxu0 0
        %726 = vmatpush1.bf16.msra.mxu0 0
        %727 = vmatprep.subr.bf16.mxu0 0
        %728 = vmatpush1.bf16.msra.mxu0 0
        %729 = vmatprep.subr.bf16.mxu0 0
        %730 = vmatpush1.bf16.msra.mxu0 %v711
        %731 = vmatprep.subr.bf16.mxu0 0
        %732 = vmatpush1.bf16.msra.mxu0 %v710
        %733 = vmatprep.subr.bf16.mxu0 0
        %734 = vmatpush2.bf16.msra.mxu0 0
        %735 = vmatprep.subr.bf16.mxu0 0
        %736 = vmatpush2.bf16.msra.mxu0 0
        %737 = vmatprep.subr.bf16.mxu0 0
        %738 = vmatpush2.bf16.msra.mxu0 0
        %739 = vmatprep.subr.bf16.mxu0 0
        %740 = vmatpush2.bf16.msra.mxu0 0
        %741 = vmatprep.subr.bf16.mxu0 0
        %742 = vmatpush2.bf16.msra.mxu0 0
        %743 = vmatprep.subr.bf16.mxu0 0
        %744 = vmatpush2.bf16.msra.mxu0 0
        %745 = vmatprep.subr.bf16.mxu0 0
        %746 = vmatpush2.bf16.msra.mxu0 0
        %747 = vmatprep.subr.bf16.mxu0 0
        %748 = vmatpush2.bf16.msra.mxu0 0
        %749 = vmatprep.mubr.bf16.mxu0 0
        %750 = vmatmul.mubr.bf16.gmra.mxu0 %v715
        %v751 = vpop.f32.mrf.mxu0
        %v752 = vadd.f32 %v700, %v751
        %v753 = vpop.f32.mrf.mxu0
        %v754 = vpop.f32.mrf.mxu0
        %v755 = vpop.f32.mrf.mxu0
        %756 = vdwg.mxu0
        %v757 = vmul.f32 %v620, 0.35355338
        %759 = vrot.lane.b32.xlu0 %v757, 120
        %v760 = vpop.permute.xlu0 %759
        %762 = vrot.lane.b32.xlu0 %v757, 112
        %v763 = vpop.permute.xlu0 %762
        %765 = vrot.lane.b32.xlu0 %v757, 104
        %v766 = vpop.permute.xlu0 %765
        %v768 = vpack.c.bf16 %v757, %v757
        %v769 = vpack.c.bf16 %v760, %v760
        %v770 = vpack.c.bf16 %v763, %v763
        %v771 = vpack.c.bf16 %v766, %v766
        %773 = vrot.lane.b32.xlu0 %v686, 120
        %v774 = vpop.permute.xlu0 %773
        %776 = vrot.lane.b32.xlu0 %v686, 112
        %v777 = vpop.permute.xlu0 %776
        %779 = vrot.lane.b32.xlu0 %v686, 104
        %v780 = vpop.permute.xlu0 %779
        %v782 = vpack.c.bf16 %v686, %v686
        %v783 = vpack.c.bf16 %v774, %v774
        %v784 = vpack.c.bf16 %v777, %v777
        %v785 = vpack.c.bf16 %v780, %v780
        %787 = vrot.lane.b32.xlu0 %v752, 120
        %v788 = vpop.permute.xlu0 %787
        %790 = vrot.lane.b32.xlu0 %v752, 112
        %v791 = vpop.permute.xlu0 %790
        %793 = vrot.lane.b32.xlu0 %v752, 104
        %v794 = vpop.permute.xlu0 %793
        %v796 = vpack.c.bf16 %v752, %v752
        %v797 = vpack.c.bf16 %v788, %v788
        %v798 = vpack.c.bf16 %v791, %v791
        %v799 = vpack.c.bf16 %v794, %v794
        %vm800 = vcmask 64512
        %v802 = vsel %vm800, %v768, 0
        %v805 = vsel %vm800, %v782, 0
        %807 = vmatprep.subr.bf16.mxu0 0
        %808 = vmatpush1.bf16.xpose.msra.mxu0 0
        %809 = vmatprep.subr.bf16.mxu0 0
        %810 = vmatpush1.bf16.xpose.msra.mxu0 0
        %811 = vmatprep.subr.bf16.mxu0 0
        %812 = vmatpush1.bf16.xpose.msra.mxu0 0
        %813 = vmatprep.subr.bf16.mxu0 0
        %814 = vmatpush1.bf16.xpose.msra.mxu0 0
        %815 = vmatprep.subr.bf16.mxu0 0
        %816 = vmatpush1.bf16.xpose.msra.mxu0 0
        %817 = vmatprep.subr.bf16.mxu0 0
        %818 = vmatpush1.bf16.xpose.msra.mxu0 0
        %819 = vmatprep.subr.bf16.mxu0 0
        %820 = vmatpush1.bf16.xpose.msra.mxu0 0
        %821 = vmatprep.subr.bf16.mxu0 0
        %822 = vmatpush1.bf16.xpose.msra.mxu0 %v805
        %823 = vmatprep.subr.bf16.mxu0 0
        %824 = vmatpush2.bf16.xpose.msra.mxu0 0
        %825 = vmatprep.subr.bf16.mxu0 0
        %826 = vmatpush2.bf16.xpose.msra.mxu0 0
        %827 = vmatprep.subr.bf16.mxu0 0
        %828 = vmatpush2.bf16.xpose.msra.mxu0 0
        %829 = vmatprep.subr.bf16.mxu0 0
        %830 = vmatpush2.bf16.xpose.msra.mxu0 0
        %831 = vmatprep.subr.bf16.mxu0 0
        %832 = vmatpush2.bf16.xpose.msra.mxu0 0
        %833 = vmatprep.subr.bf16.mxu0 0
        %834 = vmatpush2.bf16.xpose.msra.mxu0 0
        %835 = vmatprep.subr.bf16.mxu0 0
        %836 = vmatpush2.bf16.xpose.msra.mxu0 0
        %837 = vmatprep.subr.bf16.mxu0 0
        %838 = vmatpush2.bf16.xpose.msra.mxu0 0
        %839 = vmatprep.mubr.bf16.mxu0 0
        %840 = vmatmul.mubr.bf16.gmra.mxu0 %v802
        %v841 = vpop.f32.mrf.mxu0
        %v842 = vadd.f32 0.0, %v841
        %v843 = vpop.f32.mrf.mxu0
        %v844 = vpop.f32.mrf.mxu0
        %v845 = vpop.f32.mrf.mxu0
        %846 = vdwg.mxu0
        %v848 = vsel %vm800, %v769, 0
        %v851 = vsel %vm800, %v783, 0
        %853 = vmatprep.subr.bf16.mxu0 0
        %854 = vmatpush1.bf16.xpose.msra.mxu0 0
        %855 = vmatprep.subr.bf16.mxu0 0
        %856 = vmatpush1.bf16.xpose.msra.mxu0 0
        %857 = vmatprep.subr.bf16.mxu0 0
        %858 = vmatpush1.bf16.xpose.msra.mxu0 0
        %859 = vmatprep.subr.bf16.mxu0 0
        %860 = vmatpush1.bf16.xpose.msra.mxu0 0
        %861 = vmatprep.subr.bf16.mxu0 0
        %862 = vmatpush1.bf16.xpose.msra.mxu0 0
        %863 = vmatprep.subr.bf16.mxu0 0
        %864 = vmatpush1.bf16.xpose.msra.mxu0 0
        %865 = vmatprep.subr.bf16.mxu0 0
        %866 = vmatpush1.bf16.xpose.msra.mxu0 0
        %867 = vmatprep.subr.bf16.mxu0 0
        %868 = vmatpush1.bf16.xpose.msra.mxu0 %v851
        %869 = vmatprep.subr.bf16.mxu0 0
        %870 = vmatpush2.bf16.xpose.msra.mxu0 0
        %871 = vmatprep.subr.bf16.mxu0 0
        %872 = vmatpush2.bf16.xpose.msra.mxu0 0
        %873 = vmatprep.subr.bf16.mxu0 0
        %874 = vmatpush2.bf16.xpose.msra.mxu0 0
        %875 = vmatprep.subr.bf16.mxu0 0
        %876 = vmatpush2.bf16.xpose.msra.mxu0 0
        %877 = vmatprep.subr.bf16.mxu0 0
        %878 = vmatpush2.bf16.xpose.msra.mxu0 0
        %879 = vmatprep.subr.bf16.mxu0 0
        %880 = vmatpush2.bf16.xpose.msra.mxu0 0
        %881 = vmatprep.subr.bf16.mxu0 0
        %882 = vmatpush2.bf16.xpose.msra.mxu0 0
        %883 = vmatprep.subr.bf16.mxu0 0
        %884 = vmatpush2.bf16.xpose.msra.mxu0 0
        %885 = vmatprep.mubr.bf16.mxu0 0
        %886 = vmatmul.mubr.bf16.gmra.mxu0 %v848
        %v887 = vpop.f32.mrf.mxu0
        %v888 = vadd.f32 0.0, %v887
        %v889 = vpop.f32.mrf.mxu0
        %v890 = vpop.f32.mrf.mxu0
        %v891 = vpop.f32.mrf.mxu0
        %892 = vdwg.mxu0
        %v894 = vsel %vm800, %v770, 0
        %v897 = vsel %vm800, %v784, 0
        %899 = vmatprep.subr.bf16.mxu0 0
        %900 = vmatpush1.bf16.xpose.msra.mxu0 0
        %901 = vmatprep.subr.bf16.mxu0 0
        %902 = vmatpush1.bf16.xpose.msra.mxu0 0
        %903 = vmatprep.subr.bf16.mxu0 0
        %904 = vmatpush1.bf16.xpose.msra.mxu0 0
        %905 = vmatprep.subr.bf16.mxu0 0
        %906 = vmatpush1.bf16.xpose.msra.mxu0 0
        %907 = vmatprep.subr.bf16.mxu0 0
        %908 = vmatpush1.bf16.xpose.msra.mxu0 0
        %909 = vmatprep.subr.bf16.mxu0 0
        %910 = vmatpush1.bf16.xpose.msra.mxu0 0
        %911 = vmatprep.subr.bf16.mxu0 0
        %912 = vmatpush1.bf16.xpose.msra.mxu0 0
        %913 = vmatprep.subr.bf16.mxu0 0
        %914 = vmatpush1.bf16.xpose.msra.mxu0 %v897
        %915 = vmatprep.subr.bf16.mxu0 0
        %916 = vmatpush2.bf16.xpose.msra.mxu0 0
        %917 = vmatprep.subr.bf16.mxu0 0
        %918 = vmatpush2.bf16.xpose.msra.mxu0 0
        %919 = vmatprep.subr.bf16.mxu0 0
        %920 = vmatpush2.bf16.xpose.msra.mxu0 0
        %921 = vmatprep.subr.bf16.mxu0 0
        %922 = vmatpush2.bf16.xpose.msra.mxu0 0
        %923 = vmatprep.subr.bf16.mxu0 0
        %924 = vmatpush2.bf16.xpose.msra.mxu0 0
        %925 = vmatprep.subr.bf16.mxu0 0
        %926 = vmatpush2.bf16.xpose.msra.mxu0 0
        %927 = vmatprep.subr.bf16.mxu0 0
        %928 = vmatpush2.bf16.xpose.msra.mxu0 0
        %929 = vmatprep.subr.bf16.mxu0 0
        %930 = vmatpush2.bf16.xpose.msra.mxu0 0
        %931 = vmatprep.mubr.bf16.mxu0 0
        %932 = vmatmul.mubr.bf16.gmra.mxu0 %v894
        %v933 = vpop.f32.mrf.mxu0
        %v934 = vadd.f32 0.0, %v933
        %v935 = vpop.f32.mrf.mxu0
        %v936 = vpop.f32.mrf.mxu0
        %v937 = vpop.f32.mrf.mxu0
        %938 = vdwg.mxu0
        %v940 = vsel %vm800, %v771, 0
        %v943 = vsel %vm800, %v785, 0
        %945 = vmatprep.subr.bf16.mxu0 0
        %946 = vmatpush1.bf16.xpose.msra.mxu0 0
        %947 = vmatprep.subr.bf16.mxu0 0
        %948 = vmatpush1.bf16.xpose.msra.mxu0 0
        %949 = vmatprep.subr.bf16.mxu0 0
        %950 = vmatpush1.bf16.xpose.msra.mxu0 0
        %951 = vmatprep.subr.bf16.mxu0 0
        %952 = vmatpush1.bf16.xpose.msra.mxu0 0
        %953 = vmatprep.subr.bf16.mxu0 0
        %954 = vmatpush1.bf16.xpose.msra.mxu0 0
        %955 = vmatprep.subr.bf16.mxu0 0
        %956 = vmatpush1.bf16.xpose.msra.mxu0 0
        %957 = vmatprep.subr.bf16.mxu0 0
        %958 = vmatpush1.bf16.xpose.msra.mxu0 0
        %959 = vmatprep.subr.bf16.mxu0 0
        %960 = vmatpush1.bf16.xpose.msra.mxu0 %v943
        %961 = vmatprep.subr.bf16.mxu0 0
        %962 = vmatpush2.bf16.xpose.msra.mxu0 0
        %963 = vmatprep.subr.bf16.mxu0 0
        %964 = vmatpush2.bf16.xpose.msra.mxu0 0
        %965 = vmatprep.subr.bf16.mxu0 0
        %966 = vmatpush2.bf16.xpose.msra.mxu0 0
        %967 = vmatprep.subr.bf16.mxu0 0
        %968 = vmatpush2.bf16.xpose.msra.mxu0 0
        %969 = vmatprep.subr.bf16.mxu0 0
        %970 = vmatpush2.bf16.xpose.msra.mxu0 0
        %971 = vmatprep.subr.bf16.mxu0 0
        %972 = vmatpush2.bf16.xpose.msra.mxu0 0
        %973 = vmatprep.subr.bf16.mxu0 0
        %974 = vmatpush2.bf16.xpose.msra.mxu0 0
        %975 = vmatprep.subr.bf16.mxu0 0
        %976 = vmatpush2.bf16.xpose.msra.mxu0 0
        %977 = vmatprep.mubr.bf16.mxu0 0
        %978 = vmatmul.mubr.bf16.gmra.mxu0 %v940
        %v979 = vpop.f32.mrf.mxu0
        %v980 = vadd.f32 0.0, %v979
        %v981 = vpop.f32.mrf.mxu0
        %v982 = vpop.f32.mrf.mxu0
        %v983 = vpop.f32.mrf.mxu0
        %984 = vdwg.mxu0
        %v985 = vsel %vm800, %v842, -inf
        %986 = vmax.xlane.f32.xlu0 %v985
        %v987 = vpop.xlane.xlu0 %986
        %v988 = vsel %vm800, %v888, -inf
        %989 = vmax.xlane.f32.xlu0 %v988
        %v990 = vpop.xlane.xlu0 %989
        %v991 = vsel %vm800, %v934, -inf
        %992 = vmax.xlane.f32.xlu0 %v991
        %v993 = vpop.xlane.xlu0 %992
        %v994 = vsel %vm800, %v980, -inf
        %995 = vmax.xlane.f32.xlu0 %v994
        %v996 = vpop.xlane.xlu0 %995
        %v997 = vsub.f32 %v842, %v987
        %v998 = vsub.f32 %v888, %v990
        %v999 = vsub.f32 %v934, %v993
        %v1000 = vsub.f32 %v980, %v996
        %v1001 = vmul.f32 %v997, 1.442695
        %v1002 = vpow.pop %v1001
        %v1003 = vmul.f32 %v998, 1.442695
        %v1004 = vpow.pop %v1003
        %v1005 = vmul.f32 %v999, 1.442695
        %v1006 = vpow.pop %v1005
        %v1007 = vmul.f32 %v1000, 1.442695
        %v1008 = vpow.pop %v1007
        %v1009 = vsel %vm800, %v1002, 0.0
        %1010 = vadd.xlane.f32.xlu0 %v1009
        %v1011 = vpop.xlane.xlu0 %1010
        %v1012 = vsel %vm800, %v1004, 0.0
        %1013 = vadd.xlane.f32.xlu0 %v1012
        %v1014 = vpop.xlane.xlu0 %1013
        %v1015 = vsel %vm800, %v1006, 0.0
        %1016 = vadd.xlane.f32.xlu0 %v1015
        %v1017 = vpop.xlane.xlu0 %1016
        %v1018 = vsel %vm800, %v1008, 0.0
        %1019 = vadd.xlane.f32.xlu0 %v1018
        %v1020 = vpop.xlane.xlu0 %1019
        %v1021 = vrcp.pop %v1011
        %v1022 = vrcp.pop %v1014
        %v1023 = vrcp.pop %v1017
        %v1024 = vrcp.pop %v1020
        %v1025 = vmul.f32 %v1002, %v1021
        %v1026 = vmul.f32 %v1004, %v1022
        %v1027 = vmul.f32 %v1006, %v1023
        %v1028 = vmul.f32 %v1008, %v1024
        %v1029 = vpack.c.bf16 %v1025, %v1025
        %v1030 = vpack.c.bf16 %v1026, %v1026
        %v1031 = vpack.c.bf16 %v1027, %v1027
        %v1032 = vpack.c.bf16 %v1028, %v1028
        %v1034 = vsel %vm800, %v1029, 0
        %vm1036 = vcmask 1043456
        %v1038 = vsel %vm1036, %v796, 0
        %1040 = vmatprep.subr.bf16.mxu0 0
        %1041 = vmatpush1.bf16.msra.mxu0 0
        %1042 = vmatprep.subr.bf16.mxu0 0
        %1043 = vmatpush1.bf16.msra.mxu0 0
        %1044 = vmatprep.subr.bf16.mxu0 0
        %1045 = vmatpush1.bf16.msra.mxu0 0
        %1046 = vmatprep.subr.bf16.mxu0 0
        %1047 = vmatpush1.bf16.msra.mxu0 0
        %1048 = vmatprep.subr.bf16.mxu0 0
        %1049 = vmatpush1.bf16.msra.mxu0 0
        %1050 = vmatprep.subr.bf16.mxu0 0
        %1051 = vmatpush1.bf16.msra.mxu0 0
        %1052 = vmatprep.subr.bf16.mxu0 0
        %1053 = vmatpush1.bf16.msra.mxu0 0
        %1054 = vmatprep.subr.bf16.mxu0 0
        %1055 = vmatpush1.bf16.msra.mxu0 %v1038
        %1056 = vmatprep.subr.bf16.mxu0 0
        %1057 = vmatpush2.bf16.msra.mxu0 0
        %1058 = vmatprep.subr.bf16.mxu0 0
        %1059 = vmatpush2.bf16.msra.mxu0 0
        %1060 = vmatprep.subr.bf16.mxu0 0
        %1061 = vmatpush2.bf16.msra.mxu0 0
        %1062 = vmatprep.subr.bf16.mxu0 0
        %1063 = vmatpush2.bf16.msra.mxu0 0
        %1064 = vmatprep.subr.bf16.mxu0 0
        %1065 = vmatpush2.bf16.msra.mxu0 0
        %1066 = vmatprep.subr.bf16.mxu0 0
        %1067 = vmatpush2.bf16.msra.mxu0 0
        %1068 = vmatprep.subr.bf16.mxu0 0
        %1069 = vmatpush2.bf16.msra.mxu0 0
        %1070 = vmatprep.subr.bf16.mxu0 0
        %1071 = vmatpush2.bf16.msra.mxu0 0
        %1072 = vmatprep.mubr.bf16.mxu0 0
        %1073 = vmatmul.mubr.bf16.gmra.mxu0 %v1034
        %v1074 = vpop.f32.mrf.mxu0
        %v1075 = vadd.f32 0.0, %v1074
        %v1076 = vpop.f32.mrf.mxu0
        %v1077 = vpop.f32.mrf.mxu0
        %v1078 = vpop.f32.mrf.mxu0
        %1079 = vdwg.mxu0
        %v1081 = vsel %vm800, %v1030, 0
        %v1084 = vsel %vm1036, %v797, 0
        %1086 = vmatprep.subr.bf16.mxu0 0
        %1087 = vmatpush1.bf16.msra.mxu0 0
        %1088 = vmatprep.subr.bf16.mxu0 0
        %1089 = vmatpush1.bf16.msra.mxu0 0
        %1090 = vmatprep.subr.bf16.mxu0 0
        %1091 = vmatpush1.bf16.msra.mxu0 0
        %1092 = vmatprep.subr.bf16.mxu0 0
        %1093 = vmatpush1.bf16.msra.mxu0 0
        %1094 = vmatprep.subr.bf16.mxu0 0
        %1095 = vmatpush1.bf16.msra.mxu0 0
        %1096 = vmatprep.subr.bf16.mxu0 0
        %1097 = vmatpush1.bf16.msra.mxu0 0
        %1098 = vmatprep.subr.bf16.mxu0 0
        %1099 = vmatpush1.bf16.msra.mxu0 0
        %1100 = vmatprep.subr.bf16.mxu0 0
        %1101 = vmatpush1.bf16.msra.mxu0 %v1084
        %1102 = vmatprep.subr.bf16.mxu0 0
        %1103 = vmatpush2.bf16.msra.mxu0 0
        %1104 = vmatprep.subr.bf16.mxu0 0
        %1105 = vmatpush2.bf16.msra.mxu0 0
        %1106 = vmatprep.subr.bf16.mxu0 0
        %1107 = vmatpush2.bf16.msra.mxu0 0
        %1108 = vmatprep.subr.bf16.mxu0 0
        %1109 = vmatpush2.bf16.msra.mxu0 0
        %1110 = vmatprep.subr.bf16.mxu0 0
        %1111 = vmatpush2.bf16.msra.mxu0 0
        %1112 = vmatprep.subr.bf16.mxu0 0
        %1113 = vmatpush2.bf16.msra.mxu0 0
        %1114 = vmatprep.subr.bf16.mxu0 0
        %1115 = vmatpush2.bf16.msra.mxu0 0
        %1116 = vmatprep.subr.bf16.mxu0 0
        %1117 = vmatpush2.bf16.msra.mxu0 0
        %1118 = vmatprep.mubr.bf16.mxu0 0
        %1119 = vmatmul.mubr.bf16.gmra.mxu0 %v1081
        %v1120 = vpop.f32.mrf.mxu0
        %v1121 = vadd.f32 0.0, %v1120
        %v1122 = vpop.f32.mrf.mxu0
        %v1123 = vpop.f32.mrf.mxu0
        %v1124 = vpop.f32.mrf.mxu0
        %1125 = vdwg.mxu0
        %v1127 = vsel %vm800, %v1031, 0
        %v1130 = vsel %vm1036, %v798, 0
        %1132 = vmatprep.subr.bf16.mxu0 0
        %1133 = vmatpush1.bf16.msra.mxu0 0
        %1134 = vmatprep.subr.bf16.mxu0 0
        %1135 = vmatpush1.bf16.msra.mxu0 0
        %1136 = vmatprep.subr.bf16.mxu0 0
        %1137 = vmatpush1.bf16.msra.mxu0 0
        %1138 = vmatprep.subr.bf16.mxu0 0
        %1139 = vmatpush1.bf16.msra.mxu0 0
        %1140 = vmatprep.subr.bf16.mxu0 0
        %1141 = vmatpush1.bf16.msra.mxu0 0
        %1142 = vmatprep.subr.bf16.mxu0 0
        %1143 = vmatpush1.bf16.msra.mxu0 0
        %1144 = vmatprep.subr.bf16.mxu0 0
        %1145 = vmatpush1.bf16.msra.mxu0 0
        %1146 = vmatprep.subr.bf16.mxu0 0
        %1147 = vmatpush1.bf16.msra.mxu0 %v1130
        %1148 = vmatprep.subr.bf16.mxu0 0
        %1149 = vmatpush2.bf16.msra.mxu0 0
        %1150 = vmatprep.subr.bf16.mxu0 0
        %1151 = vmatpush2.bf16.msra.mxu0 0
        %1152 = vmatprep.subr.bf16.mxu0 0
        %1153 = vmatpush2.bf16.msra.mxu0 0
        %1154 = vmatprep.subr.bf16.mxu0 0
        %1155 = vmatpush2.bf16.msra.mxu0 0
        %1156 = vmatprep.subr.bf16.mxu0 0
        %1157 = vmatpush2.bf16.msra.mxu0 0
        %1158 = vmatprep.subr.bf16.mxu0 0
        %1159 = vmatpush2.bf16.msra.mxu0 0
        %1160 = vmatprep.subr.bf16.mxu0 0
        %1161 = vmatpush2.bf16.msra.mxu0 0
        %1162 = vmatprep.subr.bf16.mxu0 0
        %1163 = vmatpush2.bf16.msra.mxu0 0
        %1164 = vmatprep.mubr.bf16.mxu0 0
        %1165 = vmatmul.mubr.bf16.gmra.mxu0 %v1127
        %v1166 = vpop.f32.mrf.mxu0
        %v1167 = vadd.f32 0.0, %v1166
        %v1168 = vpop.f32.mrf.mxu0
        %v1169 = vpop.f32.mrf.mxu0
        %v1170 = vpop.f32.mrf.mxu0
        %1171 = vdwg.mxu0
        %v1173 = vsel %vm800, %v1032, 0
        %v1176 = vsel %vm1036, %v799, 0
        %1178 = vmatprep.subr.bf16.mxu0 0
        %1179 = vmatpush1.bf16.msra.mxu0 0
        %1180 = vmatprep.subr.bf16.mxu0 0
        %1181 = vmatpush1.bf16.msra.mxu0 0
        %1182 = vmatprep.subr.bf16.mxu0 0
        %1183 = vmatpush1.bf16.msra.mxu0 0
        %1184 = vmatprep.subr.bf16.mxu0 0
        %1185 = vmatpush1.bf16.msra.mxu0 0
        %1186 = vmatprep.subr.bf16.mxu0 0
        %1187 = vmatpush1.bf16.msra.mxu0 0
        %1188 = vmatprep.subr.bf16.mxu0 0
        %1189 = vmatpush1.bf16.msra.mxu0 0
        %1190 = vmatprep.subr.bf16.mxu0 0
        %1191 = vmatpush1.bf16.msra.mxu0 0
        %1192 = vmatprep.subr.bf16.mxu0 0
        %1193 = vmatpush1.bf16.msra.mxu0 %v1176
        %1194 = vmatprep.subr.bf16.mxu0 0
        %1195 = vmatpush2.bf16.msra.mxu0 0
        %1196 = vmatprep.subr.bf16.mxu0 0
        %1197 = vmatpush2.bf16.msra.mxu0 0
        %1198 = vmatprep.subr.bf16.mxu0 0
        %1199 = vmatpush2.bf16.msra.mxu0 0
        %1200 = vmatprep.subr.bf16.mxu0 0
        %1201 = vmatpush2.bf16.msra.mxu0 0
        %1202 = vmatprep.subr.bf16.mxu0 0
        %1203 = vmatpush2.bf16.msra.mxu0 0
        %1204 = vmatprep.subr.bf16.mxu0 0
        %1205 = vmatpush2.bf16.msra.mxu0 0
        %1206 = vmatprep.subr.bf16.mxu0 0
        %1207 = vmatpush2.bf16.msra.mxu0 0
        %1208 = vmatprep.subr.bf16.mxu0 0
        %1209 = vmatpush2.bf16.msra.mxu0 0
        %1210 = vmatprep.mubr.bf16.mxu0 0
        %1211 = vmatmul.mubr.bf16.gmra.mxu0 %v1173
        %v1212 = vpop.f32.mrf.mxu0
        %v1213 = vadd.f32 0.0, %v1212
        %v1214 = vpop.f32.mrf.mxu0
        %v1215 = vpop.f32.mrf.mxu0
        %v1216 = vpop.f32.mrf.mxu0
        %1217 = vdwg.mxu0
        %1219 = vrot.lane.b32.xlu0 %v1121, 8
        %v1220 = vpop.permute.xlu0 %1219
        %1223 = vrot.lane.b32.xlu0 %v1167, 16
        %v1224 = vpop.permute.xlu0 %1223
        %1227 = vrot.lane.b32.xlu0 %v1213, 24
        %v1228 = vpop.permute.xlu0 %1227
        %v1230 = vsel %vm800, %v1075, %v1220
        %vm1231 = vcmask 130048
        %v1232 = vsel %vm1231, %v1230, %v1224
        %vm1233 = vcmask 195584
        %v1234 = vsel %vm1233, %v1232, %v1228
        %v1235 = vpack.c.bf16 %v1234, %v1234
        %v1236 = vld [vmem:[%s9] sm:$0xf]
        %v1237 = vld [vmem:[%s9 + $0x4] sm:$0xf]
        %v1238 = vld [vmem:[%s9 + $0x8] sm:$0xf]
        %v1239 = vld [vmem:[%s9 + $0xc] sm:$0xf]
        %v1240 = vld [vmem:[%s10] sm:$0x1]
        %v1242 = vlaneseq
        %v1243 = vshrl.u32 %v1242, 7
        %v1244 = vsub.s32 0, %v1243
        %v1245 = vrot.slane %v1240, %v1244
        %v1251 = vunpack.c.l.b16 %v1236
        %v1252 = vunpack.c.l.b16 %v1237
        %v1253 = vunpack.c.l.b16 %v1238
        %v1254 = vunpack.c.l.b16 %v1239
        %v1255 = vpack.c.b16 %v1252, %v1251
        %v1256 = vpack.c.b16 %v1254, %v1253
        %v1260 = vsel %vm581, %v1235, 0
        %1262 = vmatprep.subr.bf16.mxu0 0
        %1263 = vmatpush1.bf16.msra.mxu0 0
        %1264 = vmatprep.subr.bf16.mxu0 0
        %1265 = vmatpush1.bf16.msra.mxu0 0
        %1266 = vmatprep.subr.bf16.mxu0 0
        %1267 = vmatpush1.bf16.msra.mxu0 0
        %1268 = vmatprep.subr.bf16.mxu0 0
        %1269 = vmatpush1.bf16.msra.mxu0 0
        %1270 = vmatprep.subr.bf16.mxu0 0
        %1271 = vmatpush1.bf16.msra.mxu0 0
        %1272 = vmatprep.subr.bf16.mxu0 0
        %1273 = vmatpush1.bf16.msra.mxu0 0
        %1274 = vmatprep.subr.bf16.mxu0 0
        %1275 = vmatpush1.bf16.msra.mxu0 %v1256
        %1276 = vmatprep.subr.bf16.mxu0 0
        %1277 = vmatpush1.bf16.msra.mxu0 %v1255
        %1278 = vmatprep.subr.bf16.mxu0 0
        %1279 = vmatpush2.bf16.msra.mxu0 0
        %1280 = vmatprep.subr.bf16.mxu0 0
        %1281 = vmatpush2.bf16.msra.mxu0 0
        %1282 = vmatprep.subr.bf16.mxu0 0
        %1283 = vmatpush2.bf16.msra.mxu0 0
        %1284 = vmatprep.subr.bf16.mxu0 0
        %1285 = vmatpush2.bf16.msra.mxu0 0
        %1286 = vmatprep.subr.bf16.mxu0 0
        %1287 = vmatpush2.bf16.msra.mxu0 0
        %1288 = vmatprep.subr.bf16.mxu0 0
        %1289 = vmatpush2.bf16.msra.mxu0 0
        %1290 = vmatprep.subr.bf16.mxu0 0
        %1291 = vmatpush2.bf16.msra.mxu0 0
        %1292 = vmatprep.subr.bf16.mxu0 0
        %1293 = vmatpush2.bf16.msra.mxu0 0
        %1294 = vmatprep.mubr.bf16.mxu0 0
        %1295 = vmatmul.mubr.bf16.gmra.mxu0 %v1260
        %v1296 = vpop.f32.mrf.mxu0
        %v1297 = vadd.f32 %v1245, %v1296
        %v1298 = vpop.f32.mrf.mxu0
        %v1299 = vpop.f32.mrf.mxu0
        %v1300 = vpop.f32.mrf.mxu0
        %1301 = vdwg.mxu0
        %1302 = vst.msk [vmem:[%s553] sm:$0xff] %vm581, %v1297
        %s1303 = sand.u32 %s288, 1
        %s1304 = scalar_lea.sflag [#allocation4], %s1303
        %s1305 = sand.u32 %s288, 1
        %s1306 = smul.addr %s1305, 8
        %s1307 = scalar_lea.vmem [#allocation17], %s1306
        // Predicated region
        $region101: #{tpu_custom_call.1} parent=63 // pred_check
          %p1308 = pneg %p298
        $region102: #{tpu_custom_call.1} parent=63 // pred_check_branch
          %1310 = sbr.rel (%p1308) target = $region104
        $region103: #{tpu_custom_call.1} parent=63 // pred_region
          %s1312 = ssub.s32 128, 128
          %1313 = vsyncadd %s1304, %s1312
          %s1314 = smul.addr %s34, 128
          %s1315 = scalar_lea.hbm %s11, %s1314
          %s1317 = sshll.u32 %s1307, 4
          %s1318 = int_to_ptr.vmem [resolvable:$true] %s1317
          %1320 = dma.vmem_to_hbm [thread:$0]  %s1318, 128, %s1315, %s1304
        $region104: #{tpu_custom_call.1} parent=63 // pred_fallthru
          _
      $region64: #{tpu_custom_call.1} parent=5 // pred_fallthru
        _
      %p1321 = scmp.le.s32.totalorder 2, %s29
      // Predicated region
      $region105: #{tpu_custom_call.1} parent=5 // pred_check
        %p1322 = pneg %p1321
      $region106: #{tpu_custom_call.1} parent=5 // pred_check_branch
        %1324 = sbr.rel (%p1322) target = $region108
      $region107: #{tpu_custom_call.1} parent=5 // pred_region
        %s1325 = ssub.s32 %s29, 2
        // Predicated region
        $region109: #{tpu_custom_call.1} parent=107 // pred_check
          %p1326 = pneg %p304
        $region110: #{tpu_custom_call.1} parent=107 // pred_check_branch
          %1328 = sbr.rel (%p1326) target = $region112
        $region111: #{tpu_custom_call.1} parent=107 // pred_region
          %s1329 = sand.u32 %s289, 1
          %s1330 = scalar_lea.sflag [#allocation4], %s1329
          %s1331 = sand.u32 %s289, 1
          %s1332 = smul.addr %s1331, 8
          %s1333 = scalar_lea.vmem [#allocation17], %s1332
          %1334 = dma.done %s1330, 128
        $region112: #{tpu_custom_call.1} parent=107 // pred_fallthru
          _
      $region108: #{tpu_custom_call.1} parent=5 // pred_fallthru
        _
    $region6: #{tpu_custom_call.1} parent=1 // loop_footer
      %s33 = sadd.s32 1, %s29
    $region7: #{tpu_custom_call.1} parent=1 // loop_footer_branch
      %28 = sbr.rel target = $region3
    $region8: #{tpu_custom_call.1} parent=1 // loop_exit
      _
    %1335 = vsyncpa [#allocation3], 1
    %s1336 = scalar_lea.sflag [#allocation3], 1
    %1337 = vsyncpa %s1336, 1
    %1338 = vsyncpa [#allocation6], 1
    %s1339 = scalar_lea.sflag [#allocation6], 1
    %1340 = vsyncpa %s1339, 1
    %1341 = vsyncpa [#allocation9], 1
    %1342 = vsyncpa [#allocation12], 1
    %1343 = vsyncpa [#allocation15], 1
    %1344 = vsyncpa [#allocation4], 1
    %s1345 = scalar_lea.sflag [#allocation4], 1
    %1346 = vsyncpa %s1345, 1

// kernel: tpu_custom_call.1
$region0: #{tpu_custom_call.1}
  #allocation0 [shape = 'u32[]', space=smem, size = 0x4, offset = 0x4, fixed_abs, tag = 'smem constant byte address 0x4 - core index']
  #allocation1 [shape = 'u32[144,128]{1,0:T(1,128)}', space=vmem, size = 0x12000, scoped, tag = 'internal scratch']
  %s0 = inlined_call_operand.hbm [shape: bf16[2,8,32], index: 0, kind: input, shape index: {}]
  %s1 = inlined_call_operand.hbm [shape: bf16[2,8,32], index: 1, kind: input, shape index: {}]
  %s2 = inlined_call_operand.hbm [shape: bf16[2,8,32], index: 2, kind: input, shape index: {}]
  %s3 = inlined_call_operand.hbm [shape: bf16[32,32], index: 3, kind: input, shape index: {}]
  %s4 = inlined_call_operand.hbm [shape: f32[1,32], index: 4, kind: input, shape index: {}]
  %s5 = inlined_call_operand.hbm [shape: bf16[32,32], index: 5, kind: input, shape index: {}]
  %s6 = inlined_call_operand.hbm [shape: f32[1,32], index: 6, kind: input, shape index: {}]
  %s7 = inlined_call_operand.hbm [shape: bf16[32,32], index: 7, kind: input, shape index: {}]
  %s8 = inlined_call_operand.hbm [shape: f32[1,32], index: 8, kind: input, shape index: {}]
  %s9 = inlined_call_operand.vmem [shape: bf16[32,32], index: 9, kind: input, shape index: {}]
  %s10 = inlined_call_operand.vmem [shape: f32[1,32], index: 10, kind: input, shape index: {}]
  %s11 = inlined_call_operand.hbm [shape: f32[2,8,32], index: 11, kind: output, shape index: {}]
  %s12 = sld [smem:[#allocation0]]
  $region113: #{tpu_custom_call.1} parent=0
    _
  %s14 = ssub.s32 1, %s12
  %s15 = scalar_select 0, %s14, %s12
  $region1: #{tpu_custom_call.1} parent=0
    #allocation2 [shape = 'u8[4096]{0}', space=vmem, size = 0x1000, scoped, tag = 'input window, operand 0']
    #allocation3 [shape = 's32[2]{0}', space=sflag, size = 0x8, scoped, tag = 'scoped memory for tpu_custom_call.1']
    #allocation4 [shape = 's32[2]{0}', space=sflag, size = 0x8, scoped, tag = 'scoped memory for tpu_custom_call.1']
    #allocation5 [shape = 'u8[4096]{0}', space=vmem, size = 0x1000, scoped, tag = 'input window, operand 1']
    #allocation6 [shape = 's32[2]{0}', space=sflag, size = 0x8, scoped, tag = 'scoped memory for tpu_custom_call.1']
    #allocation7 [shape = 'u8[4096]{0}', space=vmem, size = 0x1000, scoped, tag = 'input window, operand 2']
    #allocation8 [shape = 'u8[8192]{0}', space=vmem, size = 0x2000, scoped, tag = 'input window, operand 3, single buffered']
    #allocation9 [shape = 's32[1]{0}', space=sflag, size = 0x4, scoped, tag = 'scoped memory for tpu_custom_call.1']
    #allocation10 [shape = 'u8[512]{0}', space=vmem, size = 0x400, scoped, tag = 'input window, operand 4, single buffered']
    #allocation11 [shape = 'u8[8192]{0}', space=vmem, size = 0x2000, scoped, tag = 'input window, operand 5, single buffered']
    #allocation12 [shape = 's32[1]{0}', space=sflag, size = 0x4, scoped, tag = 'scoped memory for tpu_custom_call.1']
    #allocation13 [shape = 'u8[512]{0}', space=vmem, size = 0x400, scoped, tag = 'input window, operand 6, single buffered']
    #allocation14 [shape = 'u8[8192]{0}', space=vmem, size = 0x2000, scoped, tag = 'input window, operand 7, single buffered']
    #allocation15 [shape = 's32[1]{0}', space=sflag, size = 0x4, scoped, tag = 'scoped memory for tpu_custom_call.1']
    #allocation16 [shape = 'u8[512]{0}', space=vmem, size = 0x400, scoped, tag = 'input window, operand 8, single buffered']
    #allocation17 [shape = 'u8[8192]{0}', space=vmem, size = 0x2000, scoped, tag = 'output window, operand 0']
    %16 = vsyncpa [#allocation3], 0
    %s17 = scalar_lea.sflag [#allocation3], 1
    %18 = vsyncpa %s17, 0
    %19 = vsyncpa [#allocation6], 0
    %s20 = scalar_lea.sflag [#allocation6], 1
    %21 = vsyncpa %s20, 0
    %22 = vsyncpa [#allocation9], 0
    %23 = vsyncpa [#allocation12], 0
    %24 = vsyncpa [#allocation15], 0
    %25 = vsyncpa [#allocation4], 0
    %s26 = scalar_lea.sflag [#allocation4], 1
    %27 = vsyncpa %s26, 0
    loop: start=0, step=1, limit=4
    $region2: #{tpu_custom_call.1} parent=1 // loop_pre_header
      _
    $region3: #{tpu_custom_call.1} parent=1 // loop_header
      %s29 = sphi 0, %s33
      %p30 = scmp.ge.s32.totalorder %s29, 4
      %s39 = sphi 0, %s41
      %s42 = sphi 0, %s39
      %s43 = sphi 0, %s42
      %s59 = sphi 0, %s43
      %s65 = sphi 0, %s67
      %s68 = sphi 0, %s65
      %s69 = sphi 0, %s68
      %s85 = sphi 0, %s69
      %s91 = sphi 0, %s93
      %s94 = sphi 0, %s91
      %s95 = sphi 0, %s94
      %s111 = sphi 0, %s95
      %s115 = sphi 0, %s115
      %s117 = sphi 0, %s115
      %s118 = sphi 0, %s117
      %s132 = sphi 0, %s118
      %s136 = sphi 0, %s136
      %s138 = sphi 0, %s136
      %s139 = sphi 0, %s138
      %s153 = sphi 0, %s139
      %s157 = sphi 0, %s157
      %s159 = sphi 0, %s157
      %s160 = sphi 0, %s159
      %s174 = sphi 0, %s160
      %s178 = sphi 0, %s178
      %s180 = sphi 0, %s178
      %s181 = sphi 0, %s180
      %s195 = sphi 0, %s181
      %s199 = sphi 0, %s199
      %s201 = sphi 0, %s199
      %s202 = sphi 0, %s201
      %s216 = sphi 0, %s202
      %s220 = sphi 0, %s220
      %s222 = sphi 0, %s220
      %s223 = sphi 0, %s222
      %s237 = sphi 0, %s223
      %s241 = sphi 0, %s241
      %s243 = sphi 0, %s241
      %s244 = sphi 0, %s243
      %s258 = sphi 0, %s244
      %s262 = sphi 0, %s262
      %s264 = sphi 0, %s262
      %s265 = sphi 0, %s264
      %s279 = sphi 0, %s265
      %s285 = sphi 0, %s287
      %s288 = sphi 0, %s285
      %s289 = sphi 0, %s288
      %s305 = sphi 0, %s289
    $region4: #{tpu_custom_call.1} parent=1 // loop_header_branch
      %32 = sbr.rel (%p30) target = $region8
    $region5: #{tpu_custom_call.1} parent=1 // loop_body
      %s34 = ssub.s32 %s29, 1
      %s35 = ssub.s32 %s29, 2
      %s36 = sadd.s32 %s29, 1
      %s37 = ssub.s32 %s29, %s36
      %p38 = scmp.eq.s32.totalorder %s37, 0
      %s40 = sadd.s32 %s39, 1
      %s41 = scalar_select %p38, %s39, %s40
      %p44 = pneg %p38
      %p45 = scmp.eq.s32.totalorder %s29, 1
      %p46 = por %p44, %p45
      %p47 = scmp.ne.s32.totalorder %s39, %s42
      %p48 = scmp.eq.s32.totalorder %s29, 0
      %p49 = por %p47, %p48
      %p50 = scmp.ne.s32.totalorder %s39, %s42
      %p51 = scmp.eq.s32.totalorder %s34, 1
      %p52 = por %p50, %p51
      %p53 = scmp.ne.s32.totalorder %s42, %s43
      %p54 = scmp.eq.s32.totalorder %s34, 0
      %p55 = por %p53, %p54
      %p56 = scmp.ne.s32.totalorder %s42, %s43
      %p57 = scmp.eq.s32.totalorder %s35, 1
      %p58 = por %p56, %p57
      %p60 = scmp.ne.s32.totalorder %s43, %s59
      %p61 = scmp.eq.s32.totalorder %s35, 0
      %p62 = por %p60, %p61
      %s63 = ssub.s32 %s29, %s36
      %p64 = scmp.eq.s32.totalorder %s63, 0
      %s66 = sadd.s32 %s65, 1
      %s67 = scalar_select %p64, %s65, %s66
      %p70 = pneg %p64
      %p71 = scmp.eq.s32.totalorder %s29, 1
      %p72 = por %p70, %p71
      %p73 = scmp.ne.s32.totalorder %s65, %s68
      %p74 = scmp.eq.s32.totalorder %s29, 0
      %p75 = por %p73, %p74
      %p76 = scmp.ne.s32.totalorder %s65, %s68
      %p77 = scmp.eq.s32.totalorder %s34, 1
      %p78 = por %p76, %p77
      %p79 = scmp.ne.s32.totalorder %s68, %s69
      %p80 = scmp.eq.s32.totalorder %s34, 0
      %p81 = por %p79, %p80
      %p82 = scmp.ne.s32.totalorder %s68, %s69
      %p83 = scmp.eq.s32.totalorder %s35, 1
      %p84 = por %p82, %p83
      %p86 = scmp.ne.s32.totalorder %s69, %s85
      %p87 = scmp.eq.s32.totalorder %s35, 0
      %p88 = por %p86, %p87
      %s89 = ssub.s32 %s29, %s36
      %p90 = scmp.eq.s32.totalorder %s89, 0
      %s92 = sadd.s32 %s91, 1
      %s93 = scalar_select %p90, %s91, %s92
      %p96 = pneg %p90
      %p97 = scmp.eq.s32.totalorder %s29, 1
      %p98 = por %p96, %p97
      %p99 = scmp.ne.s32.totalorder %s91, %s94
      %p100 = scmp.eq.s32.totalorder %s29, 0
      %p101 = por %p99, %p100
      %p102 = scmp.ne.s32.totalorder %s91, %s94
      %p103 = scmp.eq.s32.totalorder %s34, 1
      %p104 = por %p102, %p103
      %p105 = scmp.ne.s32.totalorder %s94, %s95
      %p106 = scmp.eq.s32.totalorder %s34, 0
      %p107 = por %p105, %p106
      %p108 = scmp.ne.s32.totalorder %s94, %s95
      %p109 = scmp.eq.s32.totalorder %s35, 1
      %p110 = por %p108, %p109
      %p112 = scmp.ne.s32.totalorder %s95, %s111
      %p113 = scmp.eq.s32.totalorder %s35, 0
      %p114 = por %p112, %p113
      %s116 = sadd.s32 %s115, 1
      %p119 = scmp.eq.s32.totalorder %s29, 1
      %p120 = scmp.ne.s32.totalorder %s115, %s117
      %p121 = scmp.eq.s32.totalorder %s29, 0
      %p122 = por %p120, %p121
      %p123 = scmp.ne.s32.totalorder %s115, %s117
      %p124 = scmp.eq.s32.totalorder %s34, 1
      %p125 = por %p123, %p124
      %p126 = scmp.ne.s32.totalorder %s117, %s118
      %p127 = scmp.eq.s32.totalorder %s34, 0
      %p128 = por %p126, %p127
      %p129 = scmp.ne.s32.totalorder %s117, %s118
      %p130 = scmp.eq.s32.totalorder %s35, 1
      %p131 = por %p129, %p130
      %p133 = scmp.ne.s32.totalorder %s118, %s132
      %p134 = scmp.eq.s32.totalorder %s35, 0
      %p135 = por %p133, %p134
      %s137 = sadd.s32 %s136, 1
      %p140 = scmp.eq.s32.totalorder %s29, 1
      %p141 = scmp.ne.s32.totalorder %s136, %s138
      %p142 = scmp.eq.s32.totalorder %s29, 0
      %p143 = por %p141, %p142
      %p144 = scmp.ne.s32.totalorder %s136, %s138
      %p145 = scmp.eq.s32.totalorder %s34, 1
      %p146 = por %p144, %p145
      %p147 = scmp.ne.s32.totalorder %s138, %s139
      %p148 = scmp.eq.s32.totalorder %s34, 0
      %p149 = por %p147, %p148
      %p150 = scmp.ne.s32.totalorder %s138, %s139
      %p151 = scmp.eq.s32.totalorder %s35, 1
      %p152 = por %p150, %p151
      %p154 = scmp.ne.s32.totalorder %s139, %s153
      %p155 = scmp.eq.s32.totalorder %s35, 0
      %p156 = por %p154, %p155
      %s158 = sadd.s32 %s157, 1
      %p161 = scmp.eq.s32.totalorder %s29, 1
      %p162 = scmp.ne.s32.totalorder %s157, %s159
      %p163 = scmp.eq.s32.totalorder %s29, 0
      %p164 = por %p162, %p163
      %p165 = scmp.ne.s32.totalorder %s157, %s159
      %p166 = scmp.eq.s32.totalorder %s34, 1
      %p167 = por %p165, %p166
      %p168 = scmp.ne.s32.totalorder %s159, %s160
      %p169 = scmp.eq.s32.totalorder %s34, 0
      %p170 = por %p168, %p169
      %p171 = scmp.ne.s32.totalorder %s159, %s160
      %p172 = scmp.eq.s32.totalorder %s35, 1
      %p173 = por %p171, %p172
      %p175 = scmp.ne.s32.totalorder %s160, %s174
      %p176 = scmp.eq.s32.totalorder %s35, 0
      %p177 = por %p175, %p176
      %s179 = sadd.s32 %s178, 1
      %p182 = scmp.eq.s32.totalorder %s29, 1
      %p183 = scmp.ne.s32.totalorder %s178, %s180
      %p184 = scmp.eq.s32.totalorder %s29, 0
      %p185 = por %p183, %p184
      %p186 = scmp.ne.s32.totalorder %s178, %s180
      %p187 = scmp.eq.s32.totalorder %s34, 1
      %p188 = por %p186, %p187
      %p189 = scmp.ne.s32.totalorder %s180, %s181
      %p190 = scmp.eq.s32.totalorder %s34, 0
      %p191 = por %p189, %p190
      %p192 = scmp.ne.s32.totalorder %s180, %s181
      %p193 = scmp.eq.s32.totalorder %s35, 1
      %p194 = por %p192, %p193
      %p196 = scmp.ne.s32.totalorder %s181, %s195
      %p197 = scmp.eq.s32.totalorder %s35, 0
      %p198 = por %p196, %p197
      %s200 = sadd.s32 %s199, 1
      %p203 = scmp.eq.s32.totalorder %s29, 1
      %p204 = scmp.ne.s32.totalorder %s199, %s201
      %p205 = scmp.eq.s32.totalorder %s29, 0
      %p206 = por %p204, %p205
      %p207 = scmp.ne.s32.totalorder %s199, %s201
      %p208 = scmp.eq.s32.totalorder %s34, 1
      %p209 = por %p207, %p208
      %p210 = scmp.ne.s32.totalorder %s201, %s202
      %p211 = scmp.eq.s32.totalorder %s34, 0
      %p212 = por %p210, %p211
      %p213 = scmp.ne.s32.totalorder %s201, %s202
      %p214 = scmp.eq.s32.totalorder %s35, 1
      %p215 = por %p213, %p214
      %p217 = scmp.ne.s32.totalorder %s202, %s216
      %p218 = scmp.eq.s32.totalorder %s35, 0
      %p219 = por %p217, %p218
      %s221 = sadd.s32 %s220, 1
      %p224 = scmp.eq.s32.totalorder %s29, 1
      %p225 = scmp.ne.s32.totalorder %s220, %s222
      %p226 = scmp.eq.s32.totalorder %s29, 0
      %p227 = por %p225, %p226
      %p228 = scmp.ne.s32.totalorder %s220, %s222
      %p229 = scmp.eq.s32.totalorder %s34, 1
      %p230 = por %p228, %p229
      %p231 = scmp.ne.s32.totalorder %s222, %s223
      %p232 = scmp.eq.s32.totalorder %s34, 0
      %p233 = por %p231, %p232
      %p234 = scmp.ne.s32.totalorder %s222, %s223
      %p235 = scmp.eq.s32.totalorder %s35, 1
      %p236 = por %p234, %p235
      %p238 = scmp.ne.s32.totalorder %s223, %s237
      %p239 = scmp.eq.s32.totalorder %s35, 0
      %p240 = por %p238, %p239
      %s242 = sadd.s32 %s241, 1
      %p245 = scmp.eq.s32.totalorder %s29, 1
      %p246 = scmp.ne.s32.totalorder %s241, %s243
      %p247 = scmp.eq.s32.totalorder %s29, 0
      %p248 = por %p246, %p247
      %p249 = scmp.ne.s32.totalorder %s241, %s243
      %p250 = scmp.eq.s32.totalorder %s34, 1
      %p251 = por %p249, %p250
      %p252 = scmp.ne.s32.totalorder %s243, %s244
      %p253 = scmp.eq.s32.totalorder %s34, 0
      %p254 = por %p252, %p253
      %p255 = scmp.ne.s32.totalorder %s243, %s244
      %p256 = scmp.eq.s32.totalorder %s35, 1
      %p257 = por %p255, %p256
      %p259 = scmp.ne.s32.totalorder %s244, %s258
      %p260 = scmp.eq.s32.totalorder %s35, 0
      %p261 = por %p259, %p260
      %s263 = sadd.s32 %s262, 1
      %p266 = scmp.eq.s32.totalorder %s29, 1
      %p267 = scmp.ne.s32.totalorder %s262, %s264
      %p268 = scmp.eq.s32.totalorder %s29, 0
      %p269 = por %p267, %p268
      %p270 = scmp.ne.s32.totalorder %s262, %s264
      %p271 = scmp.eq.s32.totalorder %s34, 1
      %p272 = por %p270, %p271
      %p273 = scmp.ne.s32.totalorder %s264, %s265
      %p274 = scmp.eq.s32.totalorder %s34, 0
      %p275 = por %p273, %p274
      %p276 = scmp.ne.s32.totalorder %s264, %s265
      %p277 = scmp.eq.s32.totalorder %s35, 1
      %p278 = por %p276, %p277
      %p280 = scmp.ne.s32.totalorder %s265, %s279
      %p281 = scmp.eq.s32.totalorder %s35, 0
      %p282 = por %p280, %p281
      %s283 = ssub.s32 %s29, %s36
      %p284 = scmp.eq.s32.totalorder %s283, 0
      %s286 = sadd.s32 %s285, 1
      %s287 = scalar_select %p284, %s285, %s286
      %p290 = pneg %p284
      %p291 = scmp.eq.s32.totalorder %s29, 1
      %p292 = por %p290, %p291
      %p293 = scmp.ne.s32.totalorder %s285, %s288
      %p294 = scmp.eq.s32.totalorder %s29, 0
      %p295 = por %p293, %p294
      %p296 = scmp.ne.s32.totalorder %s285, %s288
      %p297 = scmp.eq.s32.totalorder %s34, 1
      %p298 = por %p296, %p297
      %p299 = scmp.ne.s32.totalorder %s288, %s289
      %p300 = scmp.eq.s32.totalorder %s34, 0
      %p301 = por %p299, %p300
      %p302 = scmp.ne.s32.totalorder %s288, %s289
      %p303 = scmp.eq.s32.totalorder %s35, 1
      %p304 = por %p302, %p303
      %p306 = scmp.ne.s32.totalorder %s289, %s305
      %p307 = scmp.eq.s32.totalorder %s35, 0
      %p308 = por %p306, %p307
      %p309 = scmp.le.s32.totalorder 1, %s29
      %p310 = scmp.lt.s32.totalorder %s29, 3
      %p311 = pnand %p309, %p310
      %p312 = pneg %p311
      // Predicated region
      $region9: #{tpu_custom_call.1} parent=5 // pred_check
        _
      $region10: #{tpu_custom_call.1} parent=5 // pred_check_branch
        %314 = sbr.rel (%p311) target = $region12
      $region11: #{tpu_custom_call.1} parent=5 // pred_region
        %s315 = ssub.s32 %s29, 1
        // Predicated region
        $region13: #{tpu_custom_call.1} parent=11 // pred_check
          %p316 = pneg %p128
        $region14: #{tpu_custom_call.1} parent=11 // pred_check_branch
          %318 = sbr.rel (%p316) target = $region16
        $region15: #{tpu_custom_call.1} parent=11 // pred_region
          %s320 = ssub.s32 256, 256
          %321 = vsyncadd [#allocation9], %s320
          %s322 = sshll.u32 [#allocation8], 4
          %s323 = int_to_ptr.vmem [resolvable:$true] %s322
          %328 = dma.hbm_to_vmem [thread:$0]  %s3, 256, %s323, [#allocation9], 64, 64, 4
        $region16: #{tpu_custom_call.1} parent=11 // pred_fallthru
          _
        // Predicated region
        $region17: #{tpu_custom_call.1} parent=11 // pred_check
          %p329 = pneg %p149
        $region18: #{tpu_custom_call.1} parent=11 // pred_check_branch
          %331 = sbr.rel (%p329) target = $region20
        $region19: #{tpu_custom_call.1} parent=11 // pred_region
          %s333 = ssub.s32 16, 16
          %334 = vsyncadd [#allocation9], %s333
          %s336 = sshll.u32 [#allocation10], 4
          %s337 = int_to_ptr.vmem [resolvable:$true] %s336
          %339 = dma.hbm_to_vmem [thread:$0]  %s4, 16, %s337, [#allocation9]
        $region20: #{tpu_custom_call.1} parent=11 // pred_fallthru
          _
        // Predicated region
        $region21: #{tpu_custom_call.1} parent=11 // pred_check
          %p340 = pneg %p170
        $region22: #{tpu_custom_call.1} parent=11 // pred_check_branch
          %342 = sbr.rel (%p340) target = $region24
        $region23: #{tpu_custom_call.1} parent=11 // pred_region
          %s344 = ssub.s32 256, 256
          %345 = vsyncadd [#allocation12], %s344
          %s346 = sshll.u32 [#allocation11], 4
          %s347 = int_to_ptr.vmem [resolvable:$true] %s346
          %352 = dma.hbm_to_vmem [thread:$0]  %s5, 256, %s347, [#allocation12], 64, 64, 4
        $region24: #{tpu_custom_call.1} parent=11 // pred_fallthru
          _
        // Predicated region
        $region25: #{tpu_custom_call.1} parent=11 // pred_check
          %p353 = pneg %p191
        $region26: #{tpu_custom_call.1} parent=11 // pred_check_branch
          %355 = sbr.rel (%p353) target = $region28
        $region27: #{tpu_custom_call.1} parent=11 // pred_region
          %s357 = ssub.s32 16, 16
          %358 = vsyncadd [#allocation12], %s357
          %s360 = sshll.u32 [#allocation13], 4
          %s361 = int_to_ptr.vmem [resolvable:$true] %s360
          %363 = dma.hbm_to_vmem [thread:$0]  %s6, 16, %s361, [#allocation12]
        $region28: #{tpu_custom_call.1} parent=11 // pred_fallthru
          _
        // Predicated region
        $region29: #{tpu_custom_call.1} parent=11 // pred_check
          %p364 = pneg %p212
        $region30: #{tpu_custom_call.1} parent=11 // pred_check_branch
          %366 = sbr.rel (%p364) target = $region32
        $region31: #{tpu_custom_call.1} parent=11 // pred_region
          %s368 = ssub.s32 256, 256
          %369 = vsyncadd [#allocation15], %s368
          %s370 = sshll.u32 [#allocation14], 4
          %s371 = int_to_ptr.vmem [resolvable:$true] %s370
          %376 = dma.hbm_to_vmem [thread:$0]  %s7, 256, %s371, [#allocation15], 64, 64, 4
        $region32: #{tpu_custom_call.1} parent=11 // pred_fallthru
          _
        // Predicated region
        $region33: #{tpu_custom_call.1} parent=11 // pred_check
          %p377 = pneg %p233
        $region34: #{tpu_custom_call.1} parent=11 // pred_check_branch
          %379 = sbr.rel (%p377) target = $region36
        $region35: #{tpu_custom_call.1} parent=11 // pred_region
          %s381 = ssub.s32 16, 16
          %382 = vsyncadd [#allocation15], %s381
          %s384 = sshll.u32 [#allocation16], 4
          %s385 = int_to_ptr.vmem [resolvable:$true] %s384
          %387 = dma.hbm_to_vmem [thread:$0]  %s8, 16, %s385, [#allocation15]
        $region36: #{tpu_custom_call.1} parent=11 // pred_fallthru
          _
        // Predicated region
        $region37: #{tpu_custom_call.1} parent=11 // pred_check
          %p388 = pneg %p254
        $region38: #{tpu_custom_call.1} parent=11 // pred_check_branch
          %390 = sbr.rel (%p388) target = $region40
        $region39: #{tpu_custom_call.1} parent=11 // pred_region
          _
        $region40: #{tpu_custom_call.1} parent=11 // pred_fallthru
          _
        // Predicated region
        $region41: #{tpu_custom_call.1} parent=11 // pred_check
          %p391 = pneg %p275
        $region42: #{tpu_custom_call.1} parent=11 // pred_check_branch
          %393 = sbr.rel (%p391) target = $region44
        $region43: #{tpu_custom_call.1} parent=11 // pred_region
          _
        $region44: #{tpu_custom_call.1} parent=11 // pred_fallthru
          _
      $region12: #{tpu_custom_call.1} parent=5 // pred_fallthru
        _
      %p394 = scmp.lt.s32.totalorder %s29, 2
      // Predicated region
      $region45: #{tpu_custom_call.1} parent=5 // pred_check
        %p395 = pneg %p394
      $region46: #{tpu_custom_call.1} parent=5 // pred_check_branch
        %397 = sbr.rel (%p395) target = $region48
      $region47: #{tpu_custom_call.1} parent=5 // pred_region
        // Predicated region
        $region49: #{tpu_custom_call.1} parent=47 // pred_check
          %p398 = pneg %p49
        $region50: #{tpu_custom_call.1} parent=47 // pred_check_branch
          %400 = sbr.rel (%p398) target = $region52
        $region51: #{tpu_custom_call.1} parent=47 // pred_region
          %s401 = sand.u32 %s39, 1
          %s402 = scalar_lea.sflag [#allocation3], %s401
          %s403 = sand.u32 %s39, 1
          %s404 = smul.addr %s403, 4
          %s405 = scalar_lea.vmem [#allocation2], %s404
          %s407 = ssub.s32 64, 64
          %408 = vsyncadd %s402, %s407
          %s409 = smul.addr %s29, 64
          %s410 = scalar_lea.hbm %s0, %s409
          %s412 = sshll.u32 %s405, 4
          %s413 = int_to_ptr.vmem [resolvable:$true] %s412
          %415 = dma.hbm_to_vmem [thread:$0]  %s410, 64, %s413, %s402
        $region52: #{tpu_custom_call.1} parent=47 // pred_fallthru
          _
        // Predicated region
        $region53: #{tpu_custom_call.1} parent=47 // pred_check
          %p416 = pneg %p75
        $region54: #{tpu_custom_call.1} parent=47 // pred_check_branch
          %418 = sbr.rel (%p416) target = $region56
        $region55: #{tpu_custom_call.1} parent=47 // pred_region
          %s419 = sand.u32 %s29, 1
          %s420 = scalar_lea.sflag [#allocation6], %s419
          %s421 = sand.u32 %s65, 1
          %s422 = smul.addr %s421, 4
          %s423 = scalar_lea.vmem [#allocation5], %s422
          %s425 = ssub.s32 64, 64
          %426 = vsyncadd %s420, %s425
          %s427 = smul.addr %s29, 64
          %s428 = scalar_lea.hbm %s1, %s427
          %s430 = sshll.u32 %s423, 4
          %s431 = int_to_ptr.vmem [resolvable:$true] %s430
          %433 = dma.hbm_to_vmem [thread:$0]  %s428, 64, %s431, %s420
        $region56: #{tpu_custom_call.1} parent=47 // pred_fallthru
          _
        // Predicated region
        $region57: #{tpu_custom_call.1} parent=47 // pred_check
          %p434 = pneg %p101
        $region58: #{tpu_custom_call.1} parent=47 // pred_check_branch
          %436 = sbr.rel (%p434) target = $region60
        $region59: #{tpu_custom_call.1} parent=47 // pred_region
          %s437 = sand.u32 %s29, 1
          %s438 = scalar_lea.sflag [#allocation6], %s437
          %s439 = sand.u32 %s91, 1
          %s440 = smul.addr %s439, 4
          %s441 = scalar_lea.vmem [#allocation7], %s440
          %s443 = ssub.s32 64, 64
          %444 = vsyncadd %s438, %s443
          %s445 = smul.addr %s29, 64
          %s446 = scalar_lea.hbm %s2, %s445
          %s448 = sshll.u32 %s441, 4
          %s449 = int_to_ptr.vmem [resolvable:$true] %s448
          %451 = dma.hbm_to_vmem [thread:$0]  %s446, 64, %s449, %s438
        $region60: #{tpu_custom_call.1} parent=47 // pred_fallthru
          _
      $region48: #{tpu_custom_call.1} parent=5 // pred_fallthru
        _
      %p452 = scmp.le.s32.totalorder 1, %s29
      %p453 = scmp.lt.s32.totalorder %s29, 3
      %p454 = pnand %p452, %p453
      %p455 = pneg %p454
      // Predicated region
      $region61: #{tpu_custom_call.1} parent=5 // pred_check
        _
      $region62: #{tpu_custom_call.1} parent=5 // pred_check_branch
        %457 = sbr.rel (%p454) target = $region64
      $region63: #{tpu_custom_call.1} parent=5 // pred_region
        %s458 = ssub.s32 %s29, 1
        %s459 = sand.u32 %s42, 1
        %s460 = scalar_lea.sflag [#allocation3], %s459
        %s461 = sand.u32 %s42, 1
        %s462 = smul.addr %s461, 4
        %s463 = scalar_lea.vmem [#allocation2], %s462
        // Predicated region
        $region65: #{tpu_custom_call.1} parent=63 // pred_check
          %p464 = pneg %p55
        $region66: #{tpu_custom_call.1} parent=63 // pred_check_branch
          %466 = sbr.rel (%p464) target = $region68
        $region67: #{tpu_custom_call.1} parent=63 // pred_region
          %467 = dma.done %s460, 64
        $region68: #{tpu_custom_call.1} parent=63 // pred_fallthru
          _
        %s468 = sand.u32 %s34, 1
        %s469 = scalar_lea.sflag [#allocation6], %s468
        %s470 = sand.u32 %s68, 1
        %s471 = smul.addr %s470, 4
        %s472 = scalar_lea.vmem [#allocation5], %s471
        // Predicated region
        $region69: #{tpu_custom_call.1} parent=63 // pred_check
          %p473 = pneg %p81
        $region70: #{tpu_custom_call.1} parent=63 // pred_check_branch
          %475 = sbr.rel (%p473) target = $region72
        $region71: #{tpu_custom_call.1} parent=63 // pred_region
          %476 = dma.done %s469, 64
        $region72: #{tpu_custom_call.1} parent=63 // pred_fallthru
          _
        %s477 = sand.u32 %s34, 1
        %s478 = scalar_lea.sflag [#allocation6], %s477
        %s479 = sand.u32 %s94, 1
        %s480 = smul.addr %s479, 4
        %s481 = scalar_lea.vmem [#allocation7], %s480
        // Predicated region
        $region73: #{tpu_custom_call.1} parent=63 // pred_check
          %p482 = pneg %p107
        $region74: #{tpu_custom_call.1} parent=63 // pred_check_branch
          %484 = sbr.rel (%p482) target = $region76
        $region75: #{tpu_custom_call.1} parent=63 // pred_region
          %485 = dma.done %s478, 64
        $region76: #{tpu_custom_call.1} parent=63 // pred_fallthru
          _
        // Predicated region
        $region77: #{tpu_custom_call.1} parent=63 // pred_check
          %p486 = pneg %p128
        $region78: #{tpu_custom_call.1} parent=63 // pred_check_branch
          %488 = sbr.rel (%p486) target = $region80
        $region79: #{tpu_custom_call.1} parent=63 // pred_region
          %489 = dma.done [#allocation9], 256
        $region80: #{tpu_custom_call.1} parent=63 // pred_fallthru
          _
        // Predicated region
        $region81: #{tpu_custom_call.1} parent=63 // pred_check
          %p490 = pneg %p149
        $region82: #{tpu_custom_call.1} parent=63 // pred_check_branch
          %492 = sbr.rel (%p490) target = $region84
        $region83: #{tpu_custom_call.1} parent=63 // pred_region
          %493 = dma.done [#allocation9], 16
        $region84: #{tpu_custom_call.1} parent=63 // pred_fallthru
          _
        // Predicated region
        $region85: #{tpu_custom_call.1} parent=63 // pred_check
          %p494 = pneg %p170
        $region86: #{tpu_custom_call.1} parent=63 // pred_check_branch
          %496 = sbr.rel (%p494) target = $region88
        $region87: #{tpu_custom_call.1} parent=63 // pred_region
          %497 = dma.done [#allocation12], 256
        $region88: #{tpu_custom_call.1} parent=63 // pred_fallthru
          _
        // Predicated region
        $region89: #{tpu_custom_call.1} parent=63 // pred_check
          %p498 = pneg %p191
        $region90: #{tpu_custom_call.1} parent=63 // pred_check_branch
          %500 = sbr.rel (%p498) target = $region92
        $region91: #{tpu_custom_call.1} parent=63 // pred_region
          %501 = dma.done [#allocation12], 16
        $region92: #{tpu_custom_call.1} parent=63 // pred_fallthru
          _
        // Predicated region
        $region93: #{tpu_custom_call.1} parent=63 // pred_check
          %p502 = pneg %p212
        $region94: #{tpu_custom_call.1} parent=63 // pred_check_branch
          %504 = sbr.rel (%p502) target = $region96
        $region95: #{tpu_custom_call.1} parent=63 // pred_region
          %505 = dma.done [#allocation15], 256
        $region96: #{tpu_custom_call.1} parent=63 // pred_fallthru
          _
        // Predicated region
        $region97: #{tpu_custom_call.1} parent=63 // pred_check
          %p506 = pneg %p233
        $region98: #{tpu_custom_call.1} parent=63 // pred_check_branch
          %508 = sbr.rel (%p506) target = $region100
        $region99: #{tpu_custom_call.1} parent=63 // pred_region
          %509 = dma.done [#allocation15], 16
        $region100: #{tpu_custom_call.1} parent=63 // pred_fallthru
          _
        %s510 = sand.u32 %s42, 1
        %s511 = scalar_lea.sflag [#allocation3], %s510
        %s512 = sand.u32 %s42, 1
        %s513 = smul.addr %s512, 4
        %s514 = scalar_lea.vmem [#allocation2], %s513
        %p515 = pneg %p55
        %p516 = pneg %p52
        %s517 = sand.u32 %s34, 1
        %s518 = scalar_lea.sflag [#allocation6], %s517
        %s519 = sand.u32 %s68, 1
        %s520 = smul.addr %s519, 4
        %s521 = scalar_lea.vmem [#allocation5], %s520
        %p522 = pneg %p81
        %p523 = pneg %p78
        %s524 = sand.u32 %s34, 1
        %s525 = scalar_lea.sflag [#allocation6], %s524
        %s526 = sand.u32 %s94, 1
        %s527 = smul.addr %s526, 4
        %s528 = scalar_lea.vmem [#allocation7], %s527
        %p529 = pneg %p107
        %p530 = pneg %p104
        %p531 = pneg %p128
        %p532 = pneg %p125
        %p533 = pneg %p149
        %p534 = pneg %p146
        %p535 = pneg %p170
        %p536 = pneg %p167
        %p537 = pneg %p191
        %p538 = pneg %p188
        %p539 = pneg %p212
        %p540 = pneg %p209
        %p541 = pneg %p233
        %p542 = pneg %p230
        %p543 = pneg %p254
        %p544 = pneg %p251
        %p545 = pneg %p275
        %p546 = pneg %p272
        %p547 = pneg %p301
        %p548 = pneg %p298
        %s549 = sand.u32 %s288, 1
        %s550 = scalar_lea.sflag [#allocation4], %s549
        %s551 = sand.u32 %s288, 1
        %s552 = smul.addr %s551, 8
        %s553 = scalar_lea.vmem [#allocation17], %s552
        %v555 = vld [vmem:[%s463] sm:$0xf]
        %v556 = vld [vmem:[%s472] sm:$0xf]
        %v557 = vld [vmem:[%s481] sm:$0xf]
        %v558 = vld [vmem:[#allocation8] sm:$0xf]
        %v559 = vld [vmem:[#allocation8 + $0x4] sm:$0xf]
        %v560 = vld [vmem:[#allocation8 + $0x8] sm:$0xf]
        %v561 = vld [vmem:[#allocation8 + $0xc] sm:$0xf]
        %v562 = vld [vmem:[#allocation10] sm:$0x1]
        %v564 = vlaneseq
        %v565 = vshrl.u32 %v564, 7
        %v566 = vsub.s32 0, %v565
        %v567 = vrot.slane %v562, %v566
        %v573 = vunpack.c.l.b16 %v558
        %v574 = vunpack.c.l.b16 %v559
        %v575 = vunpack.c.l.b16 %v560
        %v576 = vunpack.c.l.b16 %v561
        %v577 = vpack.c.b16 %v574, %v573
        %v578 = vpack.c.b16 %v576, %v575
        %vm581 = vcmask 261120
        %v583 = vsel %vm581, %v555, 0
        %585 = vmatprep.subr.bf16.mxu0 0
        %586 = vmatpush1.bf16.msra.mxu0 0
        %587 = vmatprep.subr.bf16.mxu0 0
        %588 = vmatpush1.bf16.msra.mxu0 0
        %589 = vmatprep.subr.bf16.mxu0 0
        %590 = vmatpush1.bf16.msra.mxu0 0
        %591 = vmatprep.subr.bf16.mxu0 0
        %592 = vmatpush1.bf16.msra.mxu0 0
        %593 = vmatprep.subr.bf16.mxu0 0
        %594 = vmatpush1.bf16.msra.mxu0 0
        %595 = vmatprep.subr.bf16.mxu0 0
        %596 = vmatpush1.bf16.msra.mxu0 0
        %597 = vmatprep.subr.bf16.mxu0 0
        %598 = vmatpush1.bf16.msra.mxu0 %v578
        %599 = vmatprep.subr.bf16.mxu0 0
        %600 = vmatpush1.bf16.msra.mxu0 %v577
        %601 = vmatprep.subr.bf16.mxu0 0
        %602 = vmatpush2.bf16.msra.mxu0 0
        %603 = vmatprep.subr.bf16.mxu0 0
        %604 = vmatpush2.bf16.msra.mxu0 0
        %605 = vmatprep.subr.bf16.mxu0 0
        %606 = vmatpush2.bf16.msra.mxu0 0
        %607 = vmatprep.subr.bf16.mxu0 0
        %608 = vmatpush2.bf16.msra.mxu0 0
        %609 = vmatprep.subr.bf16.mxu0 0
        %610 = vmatpush2.bf16.msra.mxu0 0
        %611 = vmatprep.subr.bf16.mxu0 0
        %612 = vmatpush2.bf16.msra.mxu0 0
        %613 = vmatprep.subr.bf16.mxu0 0
        %614 = vmatpush2.bf16.msra.mxu0 0
        %615 = vmatprep.subr.bf16.mxu0 0
        %616 = vmatpush2.bf16.msra.mxu0 0
        %617 = vmatprep.mubr.bf16.mxu0 0
        %618 = vmatmul.mubr.bf16.gmra.mxu0 %v583
        %v619 = vpop.f32.mrf.mxu0
        %v620 = vadd.f32 %v567, %v619
        %v621 = vpop.f32.mrf.mxu0
        %v622 = vpop.f32.mrf.mxu0
        %v623 = vpop.f32.mrf.mxu0
        %624 = vdwg.mxu0
        %v625 = vld [vmem:[#allocation11] sm:$0xf]
        %v626 = vld [vmem:[#allocation11 + $0x4] sm:$0xf]
        %v627 = vld [vmem:[#allocation11 + $0x8] sm:$0xf]
        %v628 = vld [vmem:[#allocation11 + $0xc] sm:$0xf]
        %v629 = vld [vmem:[#allocation13] sm:$0x1]
        %v631 = vlaneseq
        %v632 = vshrl.u32 %v631, 7
        %v633 = vsub.s32 0, %v632
        %v634 = vrot.slane %v629, %v633
        %v640 = vunpack.c.l.b16 %v625
        %v641 = vunpack.c.l.b16 %v626
        %v642 = vunpack.c.l.b16 %v627
        %v643 = vunpack.c.l.b16 %v628
        %v644 = vpack.c.b16 %v641, %v640
        %v645 = vpack.c.b16 %v643, %v642
        %v649 = vsel %vm581, %v556, 0
        %651 = vmatprep.subr.bf16.mxu0 0
        %652 = vmatpush1.bf16.msra.mxu0 0
        %653 = vmatprep.subr.bf16.mxu0 0
        %654 = vmatpush1.bf16.msra.mxu0 0
        %655 = vmatprep.subr.bf16.mxu0 0
        %656 = vmatpush1.bf16.msra.mxu0 0
        %657 = vmatprep.subr.bf16.mxu0 0
        %658 = vmatpush1.bf16.msra.mxu0 0
        %659 = vmatprep.subr.bf16.mxu0 0
        %660 = vmatpush1.bf16.msra.mxu0 0
        %661 = vmatprep.subr.bf16.mxu0 0
        %662 = vmatpush1.bf16.msra.mxu0 0
        %663 = vmatprep.subr.bf16.mxu0 0
        %664 = vmatpush1.bf16.msra.mxu0 %v645
        %665 = vmatprep.subr.bf16.mxu0 0
        %666 = vmatpush1.bf16.msra.mxu0 %v644
        %667 = vmatprep.subr.bf16.mxu0 0
        %668 = vmatpush2.bf16.msra.mxu0 0
        %669 = vmatprep.subr.bf16.mxu0 0
        %670 = vmatpush2.bf16.msra.mxu0 0
        %671 = vmatprep.subr.bf16.mxu0 0
        %672 = vmatpush2.bf16.msra.mxu0 0
        %673 = vmatprep.subr.bf16.mxu0 0
        %674 = vmatpush2.bf16.msra.mxu0 0
        %675 = vmatprep.subr.bf16.mxu0 0
        %676 = vmatpush2.bf16.msra.mxu0 0
        %677 = vmatprep.subr.bf16.mxu0 0
        %678 = vmatpush2.bf16.msra.mxu0 0
        %679 = vmatprep.subr.bf16.mxu0 0
        %680 = vmatpush2.bf16.msra.mxu0 0
        %681 = vmatprep.subr.bf16.mxu0 0
        %682 = vmatpush2.bf16.msra.mxu0 0
        %683 = vmatprep.mubr.bf16.mxu0 0
        %684 = vmatmul.mubr.bf16.gmra.mxu0 %v649
        %v685 = vpop.f32.mrf.mxu0
        %v686 = vadd.f32 %v634, %v685
        %v687 = vpop.f32.mrf.mxu0
        %v688 = vpop.f32.mrf.mxu0
        %v689 = vpop.f32.mrf.mxu0
        %690 = vdwg.mxu0
        %v691 = vld [vmem:[#allocation14] sm:$0xf]
        %v692 = vld [vmem:[#allocation14 + $0x4] sm:$0xf]
        %v693 = vld [vmem:[#allocation14 + $0x8] sm:$0xf]
        %v694 = vld [vmem:[#allocation14 + $0xc] sm:$0xf]
        %v695 = vld [vmem:[#allocation16] sm:$0x1]
        %v697 = vlaneseq
        %v698 = vshrl.u32 %v697, 7
        %v699 = vsub.s32 0, %v698
        %v700 = vrot.slane %v695, %v699
        %v706 = vunpack.c.l.b16 %v691
        %v707 = vunpack.c.l.b16 %v692
        %v708 = vunpack.c.l.b16 %v693
        %v709 = vunpack.c.l.b16 %v694
        %v710 = vpack.c.b16 %v707, %v706
        %v711 = vpack.c.b16 %v709, %v708
        %v715 = vsel %vm581, %v557, 0
        %717 = vmatprep.subr.bf16.mxu0 0
        %718 = vmatpush1.bf16.msra.mxu0 0
        %719 = vmatprep.subr.bf16.mxu0 0
        %720 = vmatpush1.bf16.msra.mxu0 0
        %721 = vmatprep.subr.bf16.mxu0 0
        %722 = vmatpush1.bf16.msra.mxu0 0
        %723 = vmatprep.subr.bf16.mxu0 0
        %724 = vmatpush1.bf16.msra.mxu0 0
        %725 = vmatprep.subr.bf16.mxu0 0
        %726 = vmatpush1.bf16.msra.mxu0 0
        %727 = vmatprep.subr.bf16.mxu0 0
        %728 = vmatpush1.bf16.msra.mxu0 0
        %729 = vmatprep.subr.bf16.mxu0 0
        %730 = vmatpush1.bf16.msra.mxu0 %v711
        %731 = vmatprep.subr.bf16.mxu0 0
        %732 = vmatpush1.bf16.msra.mxu0 %v710
        %733 = vmatprep.subr.bf16.mxu0 0
        %734 = vmatpush2.bf16.msra.mxu0 0
        %735 = vmatprep.subr.bf16.mxu0 0
        %736 = vmatpush2.bf16.msra.mxu0 0
        %737 = vmatprep.subr.bf16.mxu0 0
        %738 = vmatpush2.bf16.msra.mxu0 0
        %739 = vmatprep.subr.bf16.mxu0 0
        %740 = vmatpush2.bf16.msra.mxu0 0
        %741 = vmatprep.subr.bf16.mxu0 0
        %742 = vmatpush2.bf16.msra.mxu0 0
        %743 = vmatprep.subr.bf16.mxu0 0
        %744 = vmatpush2.bf16.msra.mxu0 0
        %745 = vmatprep.subr.bf16.mxu0 0
        %746 = vmatpush2.bf16.msra.mxu0 0
        %747 = vmatprep.subr.bf16.mxu0 0
        %748 = vmatpush2.bf16.msra.mxu0 0
        %749 = vmatprep.mubr.bf16.mxu0 0
        %750 = vmatmul.mubr.bf16.gmra.mxu0 %v715
        %v751 = vpop.f32.mrf.mxu0
        %v752 = vadd.f32 %v700, %v751
        %v753 = vpop.f32.mrf.mxu0
        %v754 = vpop.f32.mrf.mxu0
        %v755 = vpop.f32.mrf.mxu0
        %756 = vdwg.mxu0
        %v757 = vmul.f32 %v620, 0.35355338
        %759 = vrot.lane.b32.xlu0 %v757, 120
        %v760 = vpop.permute.xlu0 %759
        %762 = vrot.lane.b32.xlu0 %v757, 112
        %v763 = vpop.permute.xlu0 %762
        %765 = vrot.lane.b32.xlu0 %v757, 104
        %v766 = vpop.permute.xlu0 %765
        %v768 = vpack.c.bf16 %v757, %v757
        %v769 = vpack.c.bf16 %v760, %v760
        %v770 = vpack.c.bf16 %v763, %v763
        %v771 = vpack.c.bf16 %v766, %v766
        %773 = vrot.lane.b32.xlu0 %v686, 120
        %v774 = vpop.permute.xlu0 %773
        %776 = vrot.lane.b32.xlu0 %v686, 112
        %v777 = vpop.permute.xlu0 %776
        %779 = vrot.lane.b32.xlu0 %v686, 104
        %v780 = vpop.permute.xlu0 %779
        %v782 = vpack.c.bf16 %v686, %v686
        %v783 = vpack.c.bf16 %v774, %v774
        %v784 = vpack.c.bf16 %v777, %v777
        %v785 = vpack.c.bf16 %v780, %v780
        %787 = vrot.lane.b32.xlu0 %v752, 120
        %v788 = vpop.permute.xlu0 %787
        %790 = vrot.lane.b32.xlu0 %v752, 112
        %v791 = vpop.permute.xlu0 %790
        %793 = vrot.lane.b32.xlu0 %v752, 104
        %v794 = vpop.permute.xlu0 %793
        %v796 = vpack.c.bf16 %v752, %v752
        %v797 = vpack.c.bf16 %v788, %v788
        %v798 = vpack.c.bf16 %v791, %v791
        %v799 = vpack.c.bf16 %v794, %v794
        %vm800 = vcmask 64512
        %v802 = vsel %vm800, %v768, 0
        %v805 = vsel %vm800, %v782, 0
        %807 = vmatprep.subr.bf16.mxu0 0
        %808 = vmatpush1.bf16.xpose.msra.mxu0 0
        %809 = vmatprep.subr.bf16.mxu0 0
        %810 = vmatpush1.bf16.xpose.msra.mxu0 0
        %811 = vmatprep.subr.bf16.mxu0 0
        %812 = vmatpush1.bf16.xpose.msra.mxu0 0
        %813 = vmatprep.subr.bf16.mxu0 0
        %814 = vmatpush1.bf16.xpose.msra.mxu0 0
        %815 = vmatprep.subr.bf16.mxu0 0
        %816 = vmatpush1.bf16.xpose.msra.mxu0 0
        %817 = vmatprep.subr.bf16.mxu0 0
        %818 = vmatpush1.bf16.xpose.msra.mxu0 0
        %819 = vmatprep.subr.bf16.mxu0 0
        %820 = vmatpush1.bf16.xpose.msra.mxu0 0
        %821 = vmatprep.subr.bf16.mxu0 0
        %822 = vmatpush1.bf16.xpose.msra.mxu0 %v805
        %823 = vmatprep.subr.bf16.mxu0 0
        %824 = vmatpush2.bf16.xpose.msra.mxu0 0
        %825 = vmatprep.subr.bf16.mxu0 0
        %826 = vmatpush2.bf16.xpose.msra.mxu0 0
        %827 = vmatprep.subr.bf16.mxu0 0
        %828 = vmatpush2.bf16.xpose.msra.mxu0 0
        %829 = vmatprep.subr.bf16.mxu0 0
        %830 = vmatpush2.bf16.xpose.msra.mxu0 0
        %831 = vmatprep.subr.bf16.mxu0 0
        %832 = vmatpush2.bf16.xpose.msra.mxu0 0
        %833 = vmatprep.subr.bf16.mxu0 0
        %834 = vmatpush2.bf16.xpose.msra.mxu0 0
        %835 = vmatprep.subr.bf16.mxu0 0
        %836 = vmatpush2.bf16.xpose.msra.mxu0 0
        %837 = vmatprep.subr.bf16.mxu0 0
        %838 = vmatpush2.bf16.xpose.msra.mxu0 0
        %839 = vmatprep.mubr.bf16.mxu0 0
        %840 = vmatmul.mubr.bf16.gmra.mxu0 %v802
        %v841 = vpop.f32.mrf.mxu0
        %v842 = vadd.f32 0.0, %v841
        %v843 = vpop.f32.mrf.mxu0
        %v844 = vpop.f32.mrf.mxu0
        %v845 = vpop.f32.mrf.mxu0
        %846 = vdwg.mxu0
        %v848 = vsel %vm800, %v769, 0
        %v851 = vsel %vm800, %v783, 0
        %853 = vmatprep.subr.bf16.mxu0 0
        %854 = vmatpush1.bf16.xpose.msra.mxu0 0
        %855 = vmatprep.subr.bf16.mxu0 0
        %856 = vmatpush1.bf16.xpose.msra.mxu0 0
        %857 = vmatprep.subr.bf16.mxu0 0
        %858 = vmatpush1.bf16.xpose.msra.mxu0 0
        %859 = vmatprep.subr.bf16.mxu0 0
        %860 = vmatpush1.bf16.xpose.msra.mxu0 0
        %861 = vmatprep.subr.bf16.mxu0 0
        %862 = vmatpush1.bf16.xpose.msra.mxu0 0
        %863 = vmatprep.subr.bf16.mxu0 0
        %864 = vmatpush1.bf16.xpose.msra.mxu0 0
        %865 = vmatprep.subr.bf16.mxu0 0
        %866 = vmatpush1.bf16.xpose.msra.mxu0 0
        %867 = vmatprep.subr.bf16.mxu0 0
        %868 = vmatpush1.bf16.xpose.msra.mxu0 %v851
        %869 = vmatprep.subr.bf16.mxu0 0
        %870 = vmatpush2.bf16.xpose.msra.mxu0 0
        %871 = vmatprep.subr.bf16.mxu0 0
        %872 = vmatpush2.bf16.xpose.msra.mxu0 0
        %873 = vmatprep.subr.bf16.mxu0 0
        %874 = vmatpush2.bf16.xpose.msra.mxu0 0
        %875 = vmatprep.subr.bf16.mxu0 0
        %876 = vmatpush2.bf16.xpose.msra.mxu0 0
        %877 = vmatprep.subr.bf16.mxu0 0
        %878 = vmatpush2.bf16.xpose.msra.mxu0 0
        %879 = vmatprep.subr.bf16.mxu0 0
        %880 = vmatpush2.bf16.xpose.msra.mxu0 0
        %881 = vmatprep.subr.bf16.mxu0 0
        %882 = vmatpush2.bf16.xpose.msra.mxu0 0
        %883 = vmatprep.subr.bf16.mxu0 0
        %884 = vmatpush2.bf16.xpose.msra.mxu0 0
        %885 = vmatprep.mubr.bf16.mxu0 0
        %886 = vmatmul.mubr.bf16.gmra.mxu0 %v848
        %v887 = vpop.f32.mrf.mxu0
        %v888 = vadd.f32 0.0, %v887
        %v889 = vpop.f32.mrf.mxu0
        %v890 = vpop.f32.mrf.mxu0
        %v891 = vpop.f32.mrf.mxu0
        %892 = vdwg.mxu0
        %v894 = vsel %vm800, %v770, 0
        %v897 = vsel %vm800, %v784, 0
        %899 = vmatprep.subr.bf16.mxu0 0
        %900 = vmatpush1.bf16.xpose.msra.mxu0 0
        %901 = vmatprep.subr.bf16.mxu0 0
        %902 = vmatpush1.bf16.xpose.msra.mxu0 0
        %903 = vmatprep.subr.bf16.mxu0 0
        %904 = vmatpush1.bf16.xpose.msra.mxu0 0
        %905 = vmatprep.subr.bf16.mxu0 0
        %906 = vmatpush1.bf16.xpose.msra.mxu0 0
        %907 = vmatprep.subr.bf16.mxu0 0
        %908 = vmatpush1.bf16.xpose.msra.mxu0 0
        %909 = vmatprep.subr.bf16.mxu0 0
        %910 = vmatpush1.bf16.xpose.msra.mxu0 0
        %911 = vmatprep.subr.bf16.mxu0 0
        %912 = vmatpush1.bf16.xpose.msra.mxu0 0
        %913 = vmatprep.subr.bf16.mxu0 0
        %914 = vmatpush1.bf16.xpose.msra.mxu0 %v897
        %915 = vmatprep.subr.bf16.mxu0 0
        %916 = vmatpush2.bf16.xpose.msra.mxu0 0
        %917 = vmatprep.subr.bf16.mxu0 0
        %918 = vmatpush2.bf16.xpose.msra.mxu0 0
        %919 = vmatprep.subr.bf16.mxu0 0
        %920 = vmatpush2.bf16.xpose.msra.mxu0 0
        %921 = vmatprep.subr.bf16.mxu0 0
        %922 = vmatpush2.bf16.xpose.msra.mxu0 0
        %923 = vmatprep.subr.bf16.mxu0 0
        %924 = vmatpush2.bf16.xpose.msra.mxu0 0
        %925 = vmatprep.subr.bf16.mxu0 0
        %926 = vmatpush2.bf16.xpose.msra.mxu0 0
        %927 = vmatprep.subr.bf16.mxu0 0
        %928 = vmatpush2.bf16.xpose.msra.mxu0 0
        %929 = vmatprep.subr.bf16.mxu0 0
        %930 = vmatpush2.bf16.xpose.msra.mxu0 0
        %931 = vmatprep.mubr.bf16.mxu0 0
        %932 = vmatmul.mubr.bf16.gmra.mxu0 %v894
        %v933 = vpop.f32.mrf.mxu0
        %v934 = vadd.f32 0.0, %v933
        %v935 = vpop.f32.mrf.mxu0
        %v936 = vpop.f32.mrf.mxu0
        %v937 = vpop.f32.mrf.mxu0
        %938 = vdwg.mxu0
        %v940 = vsel %vm800, %v771, 0
        %v943 = vsel %vm800, %v785, 0
        %945 = vmatprep.subr.bf16.mxu0 0
        %946 = vmatpush1.bf16.xpose.msra.mxu0 0
        %947 = vmatprep.subr.bf16.mxu0 0
        %948 = vmatpush1.bf16.xpose.msra.mxu0 0
        %949 = vmatprep.subr.bf16.mxu0 0
        %950 = vmatpush1.bf16.xpose.msra.mxu0 0
        %951 = vmatprep.subr.bf16.mxu0 0
        %952 = vmatpush1.bf16.xpose.msra.mxu0 0
        %953 = vmatprep.subr.bf16.mxu0 0
        %954 = vmatpush1.bf16.xpose.msra.mxu0 0
        %955 = vmatprep.subr.bf16.mxu0 0
        %956 = vmatpush1.bf16.xpose.msra.mxu0 0
        %957 = vmatprep.subr.bf16.mxu0 0
        %958 = vmatpush1.bf16.xpose.msra.mxu0 0
        %959 = vmatprep.subr.bf16.mxu0 0
        %960 = vmatpush1.bf16.xpose.msra.mxu0 %v943
        %961 = vmatprep.subr.bf16.mxu0 0
        %962 = vmatpush2.bf16.xpose.msra.mxu0 0
        %963 = vmatprep.subr.bf16.mxu0 0
        %964 = vmatpush2.bf16.xpose.msra.mxu0 0
        %965 = vmatprep.subr.bf16.mxu0 0
        %966 = vmatpush2.bf16.xpose.msra.mxu0 0
        %967 = vmatprep.subr.bf16.mxu0 0
        %968 = vmatpush2.bf16.xpose.msra.mxu0 0
        %969 = vmatprep.subr.bf16.mxu0 0
        %970 = vmatpush2.bf16.xpose.msra.mxu0 0
        %971 = vmatprep.subr.bf16.mxu0 0
        %972 = vmatpush2.bf16.xpose.msra.mxu0 0
        %973 = vmatprep.subr.bf16.mxu0 0
        %974 = vmatpush2.bf16.xpose.msra.mxu0 0
        %975 = vmatprep.subr.bf16.mxu0 0
        %976 = vmatpush2.bf16.xpose.msra.mxu0 0
        %977 = vmatprep.mubr.bf16.mxu0 0
        %978 = vmatmul.mubr.bf16.gmra.mxu0 %v940
        %v979 = vpop.f32.mrf.mxu0
        %v980 = vadd.f32 0.0, %v979
        %v981 = vpop.f32.mrf.mxu0
        %v982 = vpop.f32.mrf.mxu0
        %v983 = vpop.f32.mrf.mxu0
        %984 = vdwg.mxu0
        %v985 = vsel %vm800, %v842, -inf
        %986 = vmax.xlane.f32.xlu0 %v985
        %v987 = vpop.xlane.xlu0 %986
        %v988 = vsel %vm800, %v888, -inf
        %989 = vmax.xlane.f32.xlu0 %v988
        %v990 = vpop.xlane.xlu0 %989
        %v991 = vsel %vm800, %v934, -inf
        %992 = vmax.xlane.f32.xlu0 %v991
        %v993 = vpop.xlane.xlu0 %992
        %v994 = vsel %vm800, %v980, -inf
        %995 = vmax.xlane.f32.xlu0 %v994
        %v996 = vpop.xlane.xlu0 %995
        %v997 = vsub.f32 %v842, %v987
        %v998 = vsub.f32 %v888, %v990
        %v999 = vsub.f32 %v934, %v993
        %v1000 = vsub.f32 %v980, %v996
        %v1001 = vmul.f32 %v997, 1.442695
        %v1002 = vpow.pop %v1001
        %v1003 = vmul.f32 %v998, 1.442695
        %v1004 = vpow.pop %v1003
        %v1005 = vmul.f32 %v999, 1.442695
        %v1006 = vpow.pop %v1005
        %v1007 = vmul.f32 %v1000, 1.442695
        %v1008 = vpow.pop %v1007
        %v1009 = vsel %vm800, %v1002, 0.0
        %1010 = vadd.xlane.f32.xlu0 %v1009
        %v1011 = vpop.xlane.xlu0 %1010
        %v1012 = vsel %vm800, %v1004, 0.0
        %1013 = vadd.xlane.f32.xlu0 %v1012
        %v1014 = vpop.xlane.xlu0 %1013
        %v1015 = vsel %vm800, %v1006, 0.0
        %1016 = vadd.xlane.f32.xlu0 %v1015
        %v1017 = vpop.xlane.xlu0 %1016
        %v1018 = vsel %vm800, %v1008, 0.0
        %1019 = vadd.xlane.f32.xlu0 %v1018
        %v1020 = vpop.xlane.xlu0 %1019
        %v1021 = vrcp.pop %v1011
        %v1022 = vrcp.pop %v1014
        %v1023 = vrcp.pop %v1017
        %v1024 = vrcp.pop %v1020
        %v1025 = vmul.f32 %v1002, %v1021
        %v1026 = vmul.f32 %v1004, %v1022
        %v1027 = vmul.f32 %v1006, %v1023
        %v1028 = vmul.f32 %v1008, %v1024
        %v1029 = vpack.c.bf16 %v1025, %v1025
        %v1030 = vpack.c.bf16 %v1026, %v1026
        %v1031 = vpack.c.bf16 %v1027, %v1027
        %v1032 = vpack.c.bf16 %v1028, %v1028
        %v1034 = vsel %vm800, %v1029, 0
        %vm1036 = vcmask 1043456
        %v1038 = vsel %vm1036, %v796, 0
        %1040 = vmatprep.subr.bf16.mxu0 0
        %1041 = vmatpush1.bf16.msra.mxu0 0
        %1042 = vmatprep.subr.bf16.mxu0 0
        %1043 = vmatpush1.bf16.msra.mxu0 0
        %1044 = vmatprep.subr.bf16.mxu0 0
        %1045 = vmatpush1.bf16.msra.mxu0 0
        %1046 = vmatprep.subr.bf16.mxu0 0
        %1047 = vmatpush1.bf16.msra.mxu0 0
        %1048 = vmatprep.subr.bf16.mxu0 0
        %1049 = vmatpush1.bf16.msra.mxu0 0
        %1050 = vmatprep.subr.bf16.mxu0 0
        %1051 = vmatpush1.bf16.msra.mxu0 0
        %1052 = vmatprep.subr.bf16.mxu0 0
        %1053 = vmatpush1.bf16.msra.mxu0 0
        %1054 = vmatprep.subr.bf16.mxu0 0
        %1055 = vmatpush1.bf16.msra.mxu0 %v1038
        %1056 = vmatprep.subr.bf16.mxu0 0
        %1057 = vmatpush2.bf16.msra.mxu0 0
        %1058 = vmatprep.subr.bf16.mxu0 0
        %1059 = vmatpush2.bf16.msra.mxu0 0
        %1060 = vmatprep.subr.bf16.mxu0 0
        %1061 = vmatpush2.bf16.msra.mxu0 0
        %1062 = vmatprep.subr.bf16.mxu0 0
        %1063 = vmatpush2.bf16.msra.mxu0 0
        %1064 = vmatprep.subr.bf16.mxu0 0
        %1065 = vmatpush2.bf16.msra.mxu0 0
        %1066 = vmatprep.subr.bf16.mxu0 0
        %1067 = vmatpush2.bf16.msra.mxu0 0
        %1068 = vmatprep.subr.bf16.mxu0 0
        %1069 = vmatpush2.bf16.msra.mxu0 0
        %1070 = vmatprep.subr.bf16.mxu0 0
        %1071 = vmatpush2.bf16.msra.mxu0 0
        %1072 = vmatprep.mubr.bf16.mxu0 0
        %1073 = vmatmul.mubr.bf16.gmra.mxu0 %v1034
        %v1074 = vpop.f32.mrf.mxu0
        %v1075 = vadd.f32 0.0, %v1074
        %v1076 = vpop.f32.mrf.mxu0
        %v1077 = vpop.f32.mrf.mxu0
        %v1078 = vpop.f32.mrf.mxu0
        %1079 = vdwg.mxu0
        %v1081 = vsel %vm800, %v1030, 0
        %v1084 = vsel %vm1036, %v797, 0
        %1086 = vmatprep.subr.bf16.mxu0 0
        %1087 = vmatpush1.bf16.msra.mxu0 0
        %1088 = vmatprep.subr.bf16.mxu0 0
        %1089 = vmatpush1.bf16.msra.mxu0 0
        %1090 = vmatprep.subr.bf16.mxu0 0
        %1091 = vmatpush1.bf16.msra.mxu0 0
        %1092 = vmatprep.subr.bf16.mxu0 0
        %1093 = vmatpush1.bf16.msra.mxu0 0
        %1094 = vmatprep.subr.bf16.mxu0 0
        %1095 = vmatpush1.bf16.msra.mxu0 0
        %1096 = vmatprep.subr.bf16.mxu0 0
        %1097 = vmatpush1.bf16.msra.mxu0 0
        %1098 = vmatprep.subr.bf16.mxu0 0
        %1099 = vmatpush1.bf16.msra.mxu0 0
        %1100 = vmatprep.subr.bf16.mxu0 0
        %1101 = vmatpush1.bf16.msra.mxu0 %v1084
        %1102 = vmatprep.subr.bf16.mxu0 0
        %1103 = vmatpush2.bf16.msra.mxu0 0
        %1104 = vmatprep.subr.bf16.mxu0 0
        %1105 = vmatpush2.bf16.msra.mxu0 0
        %1106 = vmatprep.subr.bf16.mxu0 0
        %1107 = vmatpush2.bf16.msra.mxu0 0
        %1108 = vmatprep.subr.bf16.mxu0 0
        %1109 = vmatpush2.bf16.msra.mxu0 0
        %1110 = vmatprep.subr.bf16.mxu0 0
        %1111 = vmatpush2.bf16.msra.mxu0 0
        %1112 = vmatprep.subr.bf16.mxu0 0
        %1113 = vmatpush2.bf16.msra.mxu0 0
        %1114 = vmatprep.subr.bf16.mxu0 0
        %1115 = vmatpush2.bf16.msra.mxu0 0
        %1116 = vmatprep.subr.bf16.mxu0 0
        %1117 = vmatpush2.bf16.msra.mxu0 0
        %1118 = vmatprep.mubr.bf16.mxu0 0
        %1119 = vmatmul.mubr.bf16.gmra.mxu0 %v1081
        %v1120 = vpop.f32.mrf.mxu0
        %v1121 = vadd.f32 0.0, %v1120
        %v1122 = vpop.f32.mrf.mxu0
        %v1123 = vpop.f32.mrf.mxu0
        %v1124 = vpop.f32.mrf.mxu0
        %1125 = vdwg.mxu0
        %v1127 = vsel %vm800, %v1031, 0
        %v1130 = vsel %vm1036, %v798, 0
        %1132 = vmatprep.subr.bf16.mxu0 0
        %1133 = vmatpush1.bf16.msra.mxu0 0
        %1134 = vmatprep.subr.bf16.mxu0 0
        %1135 = vmatpush1.bf16.msra.mxu0 0
        %1136 = vmatprep.subr.bf16.mxu0 0
        %1137 = vmatpush1.bf16.msra.mxu0 0
        %1138 = vmatprep.subr.bf16.mxu0 0
        %1139 = vmatpush1.bf16.msra.mxu0 0
        %1140 = vmatprep.subr.bf16.mxu0 0
        %1141 = vmatpush1.bf16.msra.mxu0 0
        %1142 = vmatprep.subr.bf16.mxu0 0
        %1143 = vmatpush1.bf16.msra.mxu0 0
        %1144 = vmatprep.subr.bf16.mxu0 0
        %1145 = vmatpush1.bf16.msra.mxu0 0
        %1146 = vmatprep.subr.bf16.mxu0 0
        %1147 = vmatpush1.bf16.msra.mxu0 %v1130
        %1148 = vmatprep.subr.bf16.mxu0 0
        %1149 = vmatpush2.bf16.msra.mxu0 0
        %1150 = vmatprep.subr.bf16.mxu0 0
        %1151 = vmatpush2.bf16.msra.mxu0 0
        %1152 = vmatprep.subr.bf16.mxu0 0
        %1153 = vmatpush2.bf16.msra.mxu0 0
        %1154 = vmatprep.subr.bf16.mxu0 0
        %1155 = vmatpush2.bf16.msra.mxu0 0
        %1156 = vmatprep.subr.bf16.mxu0 0
        %1157 = vmatpush2.bf16.msra.mxu0 0
        %1158 = vmatprep.subr.bf16.mxu0 0
        %1159 = vmatpush2.bf16.msra.mxu0 0
        %1160 = vmatprep.subr.bf16.mxu0 0
        %1161 = vmatpush2.bf16.msra.mxu0 0
        %1162 = vmatprep.subr.bf16.mxu0 0
        %1163 = vmatpush2.bf16.msra.mxu0 0
        %1164 = vmatprep.mubr.bf16.mxu0 0
        %1165 = vmatmul.mubr.bf16.gmra.mxu0 %v1127
        %v1166 = vpop.f32.mrf.mxu0
        %v1167 = vadd.f32 0.0, %v1166
        %v1168 = vpop.f32.mrf.mxu0
        %v1169 = vpop.f32.mrf.mxu0
        %v1170 = vpop.f32.mrf.mxu0
        %1171 = vdwg.mxu0
        %v1173 = vsel %vm800, %v1032, 0
        %v1176 = vsel %vm1036, %v799, 0
        %1178 = vmatprep.subr.bf16.mxu0 0
        %1179 = vmatpush1.bf16.msra.mxu0 0
        %1180 = vmatprep.subr.bf16.mxu0 0
        %1181 = vmatpush1.bf16.msra.mxu0 0
        %1182 = vmatprep.subr.bf16.mxu0 0
        %1183 = vmatpush1.bf16.msra.mxu0 0
        %1184 = vmatprep.subr.bf16.mxu0 0
        %1185 = vmatpush1.bf16.msra.mxu0 0
        %1186 = vmatprep.subr.bf16.mxu0 0
        %1187 = vmatpush1.bf16.msra.mxu0 0
        %1188 = vmatprep.subr.bf16.mxu0 0
        %1189 = vmatpush1.bf16.msra.mxu0 0
        %1190 = vmatprep.subr.bf16.mxu0 0
        %1191 = vmatpush1.bf16.msra.mxu0 0
        %1192 = vmatprep.subr.bf16.mxu0 0
        %1193 = vmatpush1.bf16.msra.mxu0 %v1176
        %1194 = vmatprep.subr.bf16.mxu0 0
        %1195 = vmatpush2.bf16.msra.mxu0 0
        %1196 = vmatprep.subr.bf16.mxu0 0
        %1197 = vmatpush2.bf16.msra.mxu0 0
        %1198 = vmatprep.subr.bf16.mxu0 0
        %1199 = vmatpush2.bf16.msra.mxu0 0
        %1200 = vmatprep.subr.bf16.mxu0 0
        %1201 = vmatpush2.bf16.msra.mxu0 0
        %1202 = vmatprep.subr.bf16.mxu0 0
        %1203 = vmatpush2.bf16.msra.mxu0 0
        %1204 = vmatprep.subr.bf16.mxu0 0
        %1205 = vmatpush2.bf16.msra.mxu0 0
        %1206 = vmatprep.subr.bf16.mxu0 0
        %1207 = vmatpush2.bf16.msra.mxu0 0
        %1208 = vmatprep.subr.bf16.mxu0 0
        %1209 = vmatpush2.bf16.msra.mxu0 0
        %1210 = vmatprep.mubr.bf16.mxu0 0
        %1211 = vmatmul.mubr.bf16.gmra.mxu0 %v1173
        %v1212 = vpop.f32.mrf.mxu0
        %v1213 = vadd.f32 0.0, %v1212
        %v1214 = vpop.f32.mrf.mxu0
        %v1215 = vpop.f32.mrf.mxu0
        %v1216 = vpop.f32.mrf.mxu0
        %1217 = vdwg.mxu0
        %1219 = vrot.lane.b32.xlu0 %v1121, 8
        %v1220 = vpop.permute.xlu0 %1219
        %1223 = vrot.lane.b32.xlu0 %v1167, 16
        %v1224 = vpop.permute.xlu0 %1223
        %1227 = vrot.lane.b32.xlu0 %v1213, 24
        %v1228 = vpop.permute.xlu0 %1227
        %v1230 = vsel %vm800, %v1075, %v1220
        %vm1231 = vcmask 130048
        %v1232 = vsel %vm1231, %v1230, %v1224
        %vm1233 = vcmask 195584
        %v1234 = vsel %vm1233, %v1232, %v1228
        %v1235 = vpack.c.bf16 %v1234, %v1234
        %v1236 = vld [vmem:[%s9] sm:$0xf]
        %v1237 = vld [vmem:[%s9 + $0x4] sm:$0xf]
        %v1238 = vld [vmem:[%s9 + $0x8] sm:$0xf]
        %v1239 = vld [vmem:[%s9 + $0xc] sm:$0xf]
        %v1240 = vld [vmem:[%s10] sm:$0x1]
        %v1242 = vlaneseq
        %v1243 = vshrl.u32 %v1242, 7
        %v1244 = vsub.s32 0, %v1243
        %v1245 = vrot.slane %v1240, %v1244
        %v1251 = vunpack.c.l.b16 %v1236
        %v1252 = vunpack.c.l.b16 %v1237
        %v1253 = vunpack.c.l.b16 %v1238
        %v1254 = vunpack.c.l.b16 %v1239
        %v1255 = vpack.c.b16 %v1252, %v1251
        %v1256 = vpack.c.b16 %v1254, %v1253
        %v1260 = vsel %vm581, %v1235, 0
        %1262 = vmatprep.subr.bf16.mxu0 0
        %1263 = vmatpush1.bf16.msra.mxu0 0
        %1264 = vmatprep.subr.bf16.mxu0 0
        %1265 = vmatpush1.bf16.msra.mxu0 0
        %1266 = vmatprep.subr.bf16.mxu0 0
        %1267 = vmatpush1.bf16.msra.mxu0 0
        %1268 = vmatprep.subr.bf16.mxu0 0
        %1269 = vmatpush1.bf16.msra.mxu0 0
        %1270 = vmatprep.subr.bf16.mxu0 0
        %1271 = vmatpush1.bf16.msra.mxu0 0
        %1272 = vmatprep.subr.bf16.mxu0 0
        %1273 = vmatpush1.bf16.msra.mxu0 0
        %1274 = vmatprep.subr.bf16.mxu0 0
        %1275 = vmatpush1.bf16.msra.mxu0 %v1256
        %1276 = vmatprep.subr.bf16.mxu0 0
        %1277 = vmatpush1.bf16.msra.mxu0 %v1255
        %1278 = vmatprep.subr.bf16.mxu0 0
        %1279 = vmatpush2.bf16.msra.mxu0 0
        %1280 = vmatprep.subr.bf16.mxu0 0
        %1281 = vmatpush2.bf16.msra.mxu0 0
        %1282 = vmatprep.subr.bf16.mxu0 0
        %1283 = vmatpush2.bf16.msra.mxu0 0
        %1284 = vmatprep.subr.bf16.mxu0 0
        %1285 = vmatpush2.bf16.msra.mxu0 0
        %1286 = vmatprep.subr.bf16.mxu0 0
        %1287 = vmatpush2.bf16.msra.mxu0 0
        %1288 = vmatprep.subr.bf16.mxu0 0
        %1289 = vmatpush2.bf16.msra.mxu0 0
        %1290 = vmatprep.subr.bf16.mxu0 0
        %1291 = vmatpush2.bf16.msra.mxu0 0
        %1292 = vmatprep.subr.bf16.mxu0 0
        %1293 = vmatpush2.bf16.msra.mxu0 0
        %1294 = vmatprep.mubr.bf16.mxu0 0
        %1295 = vmatmul.mubr.bf16.gmra.mxu0 %v1260
        %v1296 = vpop.f32.mrf.mxu0
        %v1297 = vadd.f32 %v1245, %v1296
        %v1298 = vpop.f32.mrf.mxu0
        %v1299 = vpop.f32.mrf.mxu0
        %v1300 = vpop.f32.mrf.mxu0
        %1301 = vdwg.mxu0
        %1302 = vst.msk [vmem:[%s553] sm:$0xff] %vm581, %v1297
        %s1303 = sand.u32 %s288, 1
        %s1304 = scalar_lea.sflag [#allocation4], %s1303
        %s1305 = sand.u32 %s288, 1
        %s1306 = smul.addr %s1305, 8
        %s1307 = scalar_lea.vmem [#allocation17], %s1306
        // Predicated region
        $region101: #{tpu_custom_call.1} parent=63 // pred_check
          %p1308 = pneg %p298
        $region102: #{tpu_custom_call.1} parent=63 // pred_check_branch
          %1310 = sbr.rel (%p1308) target = $region104
        $region103: #{tpu_custom_call.1} parent=63 // pred_region
          %s1312 = ssub.s32 128, 128
          %1313 = vsyncadd %s1304, %s1312
          %s1314 = smul.addr %s34, 128
          %s1315 = scalar_lea.hbm %s11, %s1314
          %s1317 = sshll.u32 %s1307, 4
          %s1318 = int_to_ptr.vmem [resolvable:$true] %s1317
          %1320 = dma.vmem_to_hbm [thread:$0]  %s1318, 128, %s1315, %s1304
        $region104: #{tpu_custom_call.1} parent=63 // pred_fallthru
          _
      $region64: #{tpu_custom_call.1} parent=5 // pred_fallthru
        _
      %p1321 = scmp.le.s32.totalorder 2, %s29
      // Predicated region
      $region105: #{tpu_custom_call.1} parent=5 // pred_check
        %p1322 = pneg %p1321
      $region106: #{tpu_custom_call.1} parent=5 // pred_check_branch
        %1324 = sbr.rel (%p1322) target = $region108
      $region107: #{tpu_custom_call.1} parent=5 // pred_region
        %s1325 = ssub.s32 %s29, 2
        // Predicated region
        $region109: #{tpu_custom_call.1} parent=107 // pred_check
          %p1326 = pneg %p304
        $region110: #{tpu_custom_call.1} parent=107 // pred_check_branch
          %1328 = sbr.rel (%p1326) target = $region112
        $region111: #{tpu_custom_call.1} parent=107 // pred_region
          %s1329 = sand.u32 %s289, 1
          %s1330 = scalar_lea.sflag [#allocation4], %s1329
          %s1331 = sand.u32 %s289, 1
          %s1332 = smul.addr %s1331, 8
          %s1333 = scalar_lea.vmem [#allocation17], %s1332
          %1334 = dma.done %s1330, 128
        $region112: #{tpu_custom_call.1} parent=107 // pred_fallthru
          _
      $region108: #{tpu_custom_call.1} parent=5 // pred_fallthru
        _
    $region6: #{tpu_custom_call.1} parent=1 // loop_footer
      %s33 = sadd.s32 1, %s29
    $region7: #{tpu_custom_call.1} parent=1 // loop_footer_branch
      %28 = sbr.rel target = $region3
    $region8: #{tpu_custom_call.1} parent=1 // loop_exit
      _
    %1335 = vsyncpa [#allocation3], 1
    %s1336 = scalar_lea.sflag [#allocation3], 1
    %1337 = vsyncpa %s1336, 1
    %1338 = vsyncpa [#allocation6], 1
    %s1339 = scalar_lea.sflag [#allocation6], 1
    %1340 = vsyncpa %s1339, 1
    %1341 = vsyncpa [#allocation9], 1
    %1342 = vsyncpa [#allocation12], 1
    %1343 = vsyncpa [#allocation15], 1
    %1344 = vsyncpa [#allocation4], 1
    %s1345 = scalar_lea.sflag [#allocation4], 1
    %1346 = vsyncpa %s1345, 1

</llo_original>
